<compile_context>
chip_gen: v7x
topology: tpu7x:2x2x1
jax: 0.10.0
libtpu: 0.0.40
codegen_flags: <defaults>
</compile_context>

<pallas_src>
import math

import jax
import jax.numpy as jnp
from jax import lax
from jax.experimental import pallas as pl
from jax.experimental.pallas import tpu as pltpu

EMBED = 32
HEADS = 4
HEAD_DIM = EMBED // HEADS
FWD_EXP = 4
HIDDEN = FWD_EXP * EMBED          # 128 (lane-dense)
SEQ = 8
BATCH = 2
LN_EPS = 1e-5                     # torch.nn.LayerNorm default


def transformer_block_kernel(x_ref, mask_ref, wqkv_ref, wo_ref, w1_ref,
                             w2_ref, vec_ref, out_ref):
    nb, _, L, E = x_ref.shape            # (N, 3, L, E)
    H = wo_ref.shape[0]
    D = E // H
    scale = 1.0 / math.sqrt(D)

    wqkv = wqkv_ref[...]                 # (3H, E, D): [q heads | k heads | v heads]
    wo_h = wo_ref[...]                   # (H, D, E)
    vecs = vec_ref[...]                  # (8, HIDDEN): packed small vectors

    bo  = vecs[0:1, :E]                  # fc_out bias
    g1  = vecs[1:2, :E]                  # norm1 weight
    be1 = vecs[2:3, :E]                  # norm1 bias
    g2  = vecs[3:4, :E]                  # norm2 weight
    be2 = vecs[4:5, :E]                  # norm2 bias
    b2  = vecs[5:6, :E]                  # ffn second bias
    b1  = vecs[6:7, :]                   # ffn first bias (full 128 lanes)

    attn_rows = []
    query_rows = []
    for n in range(nb):                  # static, fully unrolled (N=2)
        x3 = x_ref[n]                    # (3, L, E) = [query, key, value]
        q_in, k_in, v_in = x3[0], x3[1], x3[2]
        query_rows.append(q_in)

        # Fused Q/K/V projection: one einsum, heads land on the leading (batch)
        # axis -> no lane-axis head slicing or transposes downstream.
        xg = jnp.concatenate(
            [jnp.broadcast_to(q_in, (H, L, E)),
             jnp.broadcast_to(k_in, (H, L, E)),
             jnp.broadcast_to(v_in, (H, L, E))], axis=0)               # (3H, L, E)
        proj = jnp.einsum("gle,ged->gld", xg, wqkv,
                          preferred_element_type=jnp.float32)          # (3H, L, D)
        qh = proj[0:H]                   # (H, L, D)
        kh = proj[H:2 * H]
        vh = proj[2 * H:3 * H]

        energy = jnp.einsum("hqd,hkd->hqk", qh, kh,
                            preferred_element_type=jnp.float32)        # (H, L, L)
        # masked_fill(mask == 0, -1e-20), applied BEFORE scaling (as in PyTorch;
        # the tiny fill value faithfully reproduces the original code's bug).
        mask_n = mask_ref[n]                                           # (L, L)
        energy = jnp.where(mask_n[None, :, :] == 0.0,
                           jnp.float32(-1e-20), energy)
        logits = energy * scale
        m = jnp.max(logits, axis=-1, keepdims=True)
        p = jnp.exp(logits - m)
        denom = jnp.sum(p, axis=-1, keepdims=True)
        att = p * pl.reciprocal(denom, approx=True)                    # (H, L, L)

        ctx = jnp.einsum("hqk,hkd->hqd", att, vh,
                         preferred_element_type=jnp.float32)           # (H, L, D)
        # fc_out folded per head: sum_h ctx[h] @ Wo[h*D:(h+1)*D, :]
        per_head = jnp.einsum("hld,hde->hle", ctx, wo_h,
                              preferred_element_type=jnp.float32)      # (H, L, E)
        attn_rows.append(jnp.sum(per_head, axis=0))                    # (L, E)

    attn = jnp.concatenate(attn_rows, axis=0) + bo                     # (N*L, E)
    q_res = jnp.concatenate(query_rows, axis=0)                        # (N*L, E)

    # dropout -> identity (eval mode); norm1(attention + query)
    x1 = attn + q_res
    mu1 = jnp.mean(x1, axis=-1, keepdims=True)
    var1 = jnp.mean(jnp.square(x1 - mu1), axis=-1, keepdims=True)
    x1n = (x1 - mu1) * lax.rsqrt(var1 + LN_EPS) * g1 + be1

    # feed-forward: Linear -> ReLU -> Linear  (hidden dim 128 is lane-dense)
    h1 = jnp.maximum(
        jnp.dot(x1n, w1_ref[...], preferred_element_type=jnp.float32) + b1, 0.0)
    ff = jnp.dot(h1, w2_ref[...], preferred_element_type=jnp.float32) + b2

    # dropout -> identity; norm2(forward + x1n)
    x2 = ff + x1n
    mu2 = jnp.mean(x2, axis=-1, keepdims=True)
    var2 = jnp.mean(jnp.square(x2 - mu2), axis=-1, keepdims=True)
    out_ref[...] = (x2 - mu2) * lax.rsqrt(var2 + LN_EPS) * g2 + be2


@jax.jit
def transformer_block(value, key, query, mask, params):
    N, L, E = query.shape

    # Pack the three sequence inputs into one array -> one DMA.
    x_in = jnp.stack([query, key, value], axis=1)                      # (N, 3, L, E)

    # Per-head Q/K/V weights packed into a single (3H, E, D) slab.
    def heads_of(w):                                                   # (E, E) -> (H, E, D)
        return w.reshape(E, HEADS, HEAD_DIM).transpose(1, 0, 2)
    w_qkv_h = jnp.concatenate(
        [heads_of(params["wq"]), heads_of(params["wk"]), heads_of(params["wv"])],
        axis=0)                                                        # (3H, E, D)
    wo_h = params["wo"].reshape(HEADS, HEAD_DIM, E)                    # (H, D, E)

    # All small bias / gamma / beta vectors in one (8, HIDDEN) array.
    vecs = jnp.zeros((8, HIDDEN), jnp.float32)
    vecs = vecs.at[0, :E].set(params["bo"][0])
    vecs = vecs.at[1, :E].set(params["g1"][0])
    vecs = vecs.at[2, :E].set(params["be1"][0])
    vecs = vecs.at[3, :E].set(params["g2"][0])
    vecs = vecs.at[4, :E].set(params["be2"][0])
    vecs = vecs.at[5, :E].set(params["b2"][0])
    vecs = vecs.at[6, :].set(params["b1"][0])

    vmem = pl.BlockSpec(memory_space=pltpu.MemorySpace.VMEM)
    out2d = pl.pallas_call(
        transformer_block_kernel,
        out_shape=jax.ShapeDtypeStruct((N * L, E), jnp.float32),
        in_specs=[vmem] * 7,
        out_specs=vmem,
    )(x_in, mask, w_qkv_h, wo_h, params["w1"], params["w2"], vecs)
    return out2d.reshape(N, L, E)


def reference_block(value, key, query, mask, p):
    """Pure-JAX reference reproducing the PyTorch forward (eval mode)."""
    N, L, E = query.shape
    vals = value @ p["wv"]
    keys = key @ p["wk"]
    qrys = query @ p["wq"]
    vals = vals.reshape(N, L, HEADS, HEAD_DIM)
    keys = keys.reshape(N, L, HEADS, HEAD_DIM)
    qrys = qrys.reshape(N, L, HEADS, HEAD_DIM)
    energy = jnp.einsum("nqhd,nkhd->nhqk", qrys, keys)
    energy = jnp.where(mask[:, None, :, :] == 0.0, -1e-20, energy)
    att = jax.nn.softmax(energy / math.sqrt(HEAD_DIM), axis=3)
    out = jnp.einsum("nhqk,nkhd->nqhd", att, vals).reshape(N, L, E)
    attn = out @ p["wo"] + p["bo"][0]

    def ln(x, g, b):
        m = jnp.mean(x, axis=-1, keepdims=True)
        v = jnp.mean((x - m) ** 2, axis=-1, keepdims=True)
        return (x - m) / jnp.sqrt(v + LN_EPS) * g[0] + b[0]

    x1 = ln(attn + query, p["g1"], p["be1"])
    ff = jnp.maximum(x1 @ p["w1"] + p["b1"][0], 0.0) @ p["w2"] + p["b2"][0]
    return ln(ff + x1, p["g2"], p["be2"])


def init_params(key):
    ks = jax.random.split(key, 8)
    s = 0.1
    return {
        "wq": s * jax.random.normal(ks[0], (EMBED, EMBED), jnp.float32),
        "wk": s * jax.random.normal(ks[1], (EMBED, EMBED), jnp.float32),
        "wv": s * jax.random.normal(ks[2], (EMBED, EMBED), jnp.float32),
        "wo": s * jax.random.normal(ks[3], (EMBED, EMBED), jnp.float32),
        "bo": s * jax.random.normal(ks[4], (1, EMBED), jnp.float32),
        "g1": jnp.ones((1, EMBED), jnp.float32),
        "be1": jnp.zeros((1, EMBED), jnp.float32),
        "w1": s * jax.random.normal(ks[5], (EMBED, HIDDEN), jnp.float32),
        "b1": s * jax.random.normal(ks[6], (1, HIDDEN), jnp.float32),
        "w2": s * jax.random.normal(ks[7], (HIDDEN, EMBED), jnp.float32),
        "b2": jnp.zeros((1, EMBED), jnp.float32),
        "g2": jnp.ones((1, EMBED), jnp.float32),
        "be2": jnp.zeros((1, EMBED), jnp.float32),
    }


if __name__ == "__main__":
    root = jax.random.PRNGKey(0)
    k_v, k_k, k_q, k_p = jax.random.split(root, 4)

    value = jax.random.normal(k_v, (BATCH, SEQ, EMBED), jnp.float32)
    key_t = jax.random.normal(k_k, (BATCH, SEQ, EMBED), jnp.float32)
    query = jax.random.normal(k_q, (BATCH, SEQ, EMBED), jnp.float32)
    # causal 0/1 mask broadcast over heads (shape [batch, q_len, k_len])
    mask = jnp.broadcast_to(
        jnp.tril(jnp.ones((SEQ, SEQ), jnp.float32)), (BATCH, SEQ, SEQ)
    )
    params = init_params(k_p)

    out = transformer_block(value, key_t, query, mask, params)
    out = jax.block_until_ready(out)

    ref = reference_block(value, key_t, query, mask, params)
    # Tolerance accounts for the approximate EUP reciprocal used in the softmax
    # and the per-head summation order in the folded fc_out projection.
    err = float(jnp.max(jnp.abs(out - ref)))
    assert err < 2e-3, err
    print("KERNEL_OK")
</pallas_src>

<mosaic_0001>
module attributes {stable_mosaic.version = 11 : i64} {
  func.func @transformer_block_kernel(%arg0: memref<2x3x8x32xf32, #tpu.memory_space<vmem>>, %arg1: memref<2x8x8xf32, #tpu.memory_space<vmem>>, %arg2: memref<12x32x8xf32, #tpu.memory_space<vmem>>, %arg3: memref<4x8x32xf32, #tpu.memory_space<vmem>>, %arg4: memref<32x128xf32, #tpu.memory_space<vmem>>, %arg5: memref<128x32xf32, #tpu.memory_space<vmem>>, %arg6: memref<8x128xf32, #tpu.memory_space<vmem>>, %arg7: memref<16x32xf32, #tpu.memory_space<vmem>>) attributes {dimension_semantics = [], scalar_prefetch = 0 : i64, scratch_operands = 0 : i64, tpu.core_type = #tpu.core_type<tc>} {
    %c0 = arith.constant 0 : index
    %c0_0 = arith.constant 0 : index
    %c0_1 = arith.constant 0 : index
    %0 = vector.load %arg2[%c0, %c0_0, %c0_1] : memref<12x32x8xf32, #tpu.memory_space<vmem>>, vector<12x32x8xf32>
    %c0_2 = arith.constant 0 : index
    %c0_3 = arith.constant 0 : index
    %c0_4 = arith.constant 0 : index
    %1 = vector.load %arg3[%c0_2, %c0_3, %c0_4] : memref<4x8x32xf32, #tpu.memory_space<vmem>>, vector<4x8x32xf32>
    %c0_5 = arith.constant 0 : index
    %c0_6 = arith.constant 0 : index
    %2 = vector.load %arg6[%c0_5, %c0_6] : memref<8x128xf32, #tpu.memory_space<vmem>>, vector<8x128xf32>
    %3 = vector.extract_strided_slice %2 {offsets = [0, 0], sizes = [1, 32], strides = [1, 1]} : vector<8x128xf32> to vector<1x32xf32>
    %4 = vector.extract_strided_slice %2 {offsets = [1, 0], sizes = [1, 32], strides = [1, 1]} : vector<8x128xf32> to vector<1x32xf32>
    %5 = vector.extract_strided_slice %2 {offsets = [2, 0], sizes = [1, 32], strides = [1, 1]} : vector<8x128xf32> to vector<1x32xf32>
    %6 = vector.extract_strided_slice %2 {offsets = [3, 0], sizes = [1, 32], strides = [1, 1]} : vector<8x128xf32> to vector<1x32xf32>
    %7 = vector.extract_strided_slice %2 {offsets = [4, 0], sizes = [1, 32], strides = [1, 1]} : vector<8x128xf32> to vector<1x32xf32>
    %8 = vector.extract_strided_slice %2 {offsets = [5, 0], sizes = [1, 32], strides = [1, 1]} : vector<8x128xf32> to vector<1x32xf32>
    %9 = vector.extract_strided_slice %2 {offsets = [6, 0], sizes = [1, 128], strides = [1, 1]} : vector<8x128xf32> to vector<1x128xf32>
    %c0_7 = arith.constant 0 : index
    %c0_8 = arith.constant 0 : index
    %c0_9 = arith.constant 0 : index
    %c0_10 = arith.constant 0 : index
    %10 = vector.load %arg0[%c0_7, %c0_8, %c0_9, %c0_10] : memref<2x3x8x32xf32, #tpu.memory_space<vmem>>, vector<1x3x8x32xf32>
    %11 = vector.shape_cast %10 : vector<1x3x8x32xf32> to vector<3x8x32xf32>
    %12 = vector.extract_strided_slice %11 {offsets = [0, 0, 0], sizes = [1, 8, 32], strides = [1, 1, 1]} : vector<3x8x32xf32> to vector<1x8x32xf32>
    %13 = vector.shape_cast %12 : vector<1x8x32xf32> to vector<8x32xf32>
    %14 = vector.extract_strided_slice %11 {offsets = [1, 0, 0], sizes = [1, 8, 32], strides = [1, 1, 1]} : vector<3x8x32xf32> to vector<1x8x32xf32>
    %15 = vector.shape_cast %14 : vector<1x8x32xf32> to vector<8x32xf32>
    %16 = vector.extract_strided_slice %11 {offsets = [2, 0, 0], sizes = [1, 8, 32], strides = [1, 1, 1]} : vector<3x8x32xf32> to vector<1x8x32xf32>
    %17 = vector.shape_cast %16 : vector<1x8x32xf32> to vector<8x32xf32>
    %18 = vector.shape_cast %13 : vector<8x32xf32> to vector<1x8x32xf32>
    %19 = vector.broadcast %18 : vector<1x8x32xf32> to vector<4x8x32xf32>
    %20 = vector.shape_cast %15 : vector<8x32xf32> to vector<1x8x32xf32>
    %21 = vector.broadcast %20 : vector<1x8x32xf32> to vector<4x8x32xf32>
    %22 = vector.shape_cast %17 : vector<8x32xf32> to vector<1x8x32xf32>
    %23 = vector.broadcast %22 : vector<1x8x32xf32> to vector<4x8x32xf32>
    %24 = tpu.concatenate %19, %21, %23 in 0 : vector<4x8x32xf32>, vector<4x8x32xf32>, vector<4x8x32xf32> -> vector<12x8x32xf32>
    "tpu.trace_start"() <{level = 10 : i32, message = "gle,ged->gld"}> : () -> ()
    %cst = arith.constant dense<0.000000e+00> : vector<12x8x8xf32>
    %25 = tpu.matmul %24, %0, %cst {dimension_numbers = #tpu.dot_dimension_numbers<[2], [1], [1], [2], [0, 0, 0, 1, 1, 2], [0], [0]>} : vector<12x8x32xf32>, vector<12x32x8xf32>, vector<12x8x8xf32> -> vector<12x8x8xf32>
    "tpu.trace_stop"() : () -> ()
    %26 = vector.extract_strided_slice %25 {offsets = [0, 0, 0], sizes = [4, 8, 8], strides = [1, 1, 1]} : vector<12x8x8xf32> to vector<4x8x8xf32>
    %27 = vector.extract_strided_slice %25 {offsets = [4, 0, 0], sizes = [4, 8, 8], strides = [1, 1, 1]} : vector<12x8x8xf32> to vector<4x8x8xf32>
    %28 = vector.extract_strided_slice %25 {offsets = [8, 0, 0], sizes = [4, 8, 8], strides = [1, 1, 1]} : vector<12x8x8xf32> to vector<4x8x8xf32>
    "tpu.trace_start"() <{level = 10 : i32, message = "hqd,hkd->hqk"}> : () -> ()
    %cst_11 = arith.constant dense<0.000000e+00> : vector<4x8x8xf32>
    %29 = tpu.matmul %26, %27, %cst_11 {dimension_numbers = #tpu.dot_dimension_numbers<[2], [2], [1], [1], [0, 0, 0, 1, 1, 1], [0], [0]>} : vector<4x8x8xf32>, vector<4x8x8xf32>, vector<4x8x8xf32> -> vector<4x8x8xf32>
    "tpu.trace_stop"() : () -> ()
    %c0_12 = arith.constant 0 : index
    %c0_13 = arith.constant 0 : index
    %c0_14 = arith.constant 0 : index
    %30 = vector.load %arg1[%c0_12, %c0_13, %c0_14] : memref<2x8x8xf32, #tpu.memory_space<vmem>>, vector<1x8x8xf32>
    %31 = vector.shape_cast %30 : vector<1x8x8xf32> to vector<8x8xf32>
    %32 = vector.shape_cast %31 : vector<8x8xf32> to vector<1x8x8xf32>
    %cst_15 = arith.constant 0.000000e+00 : f32
    %33 = vector.broadcast %cst_15 : f32 to vector<1x8x8xf32>
    %34 = arith.cmpf oeq, %32, %33 : vector<1x8x8xf32>
    %cst_16 = arith.constant -9.99999968E-21 : f32
    %35 = vector.shape_cast %34 : vector<1x8x8xi1> to vector<1x8x8xi1>
    %36 = vector.broadcast %35 : vector<1x8x8xi1> to vector<4x8x8xi1>
    %37 = vector.broadcast %cst_16 : f32 to vector<4x8x8xf32>
    %38 = arith.select %36, %37, %29 : vector<4x8x8xi1>, vector<4x8x8xf32>
    %cst_17 = arith.constant 0.353553385 : f32
    %39 = vector.broadcast %cst_17 : f32 to vector<4x8x8xf32>
    %40 = arith.mulf %38, %39 : vector<4x8x8xf32>
    %cst_18 = arith.constant dense<0xFF800000> : vector<4x8xf32>
    %41 = vector.multi_reduction <maximumf>, %40, %cst_18 [2] : vector<4x8x8xf32> to vector<4x8xf32>
    %42 = vector.shape_cast %41 : vector<4x8xf32> to vector<4x8x1xf32>
    %43 = vector.broadcast %42 : vector<4x8x1xf32> to vector<4x8x8xf32>
    %44 = arith.subf %40, %43 : vector<4x8x8xf32>
    %45 = math.exp %44 : vector<4x8x8xf32>
    %cst_19 = arith.constant dense<0.000000e+00> : vector<4x8xf32>
    %46 = vector.multi_reduction <add>, %45, %cst_19 [2] : vector<4x8x8xf32> to vector<4x8xf32>
    %47 = vector.shape_cast %46 : vector<4x8xf32> to vector<4x8x1xf32>
    %48 = tpu.reciprocal %47 {approx = true} : vector<4x8x1xf32> -> vector<4x8x1xf32>
    %49 = vector.broadcast %48 : vector<4x8x1xf32> to vector<4x8x8xf32>
    %50 = arith.mulf %45, %49 : vector<4x8x8xf32>
    "tpu.trace_start"() <{level = 10 : i32, message = "hqk,hkd->hqd"}> : () -> ()
    %cst_20 = arith.constant dense<0.000000e+00> : vector<4x8x8xf32>
    %51 = tpu.matmul %50, %28, %cst_20 {dimension_numbers = #tpu.dot_dimension_numbers<[2], [1], [1], [2], [0, 0, 0, 1, 1, 2], [0], [0]>} : vector<4x8x8xf32>, vector<4x8x8xf32>, vector<4x8x8xf32> -> vector<4x8x8xf32>
    "tpu.trace_stop"() : () -> ()
    "tpu.trace_start"() <{level = 10 : i32, message = "hld,hde->hle"}> : () -> ()
    %cst_21 = arith.constant dense<0.000000e+00> : vector<4x8x32xf32>
    %52 = tpu.matmul %51, %1, %cst_21 {dimension_numbers = #tpu.dot_dimension_numbers<[2], [1], [1], [2], [0, 0, 0, 1, 1, 2], [0], [0]>} : vector<4x8x8xf32>, vector<4x8x32xf32>, vector<4x8x32xf32> -> vector<4x8x32xf32>
    "tpu.trace_stop"() : () -> ()
    %cst_22 = arith.constant dense<0.000000e+00> : vector<8x32xf32>
    %53 = vector.multi_reduction <add>, %52, %cst_22 [0] : vector<4x8x32xf32> to vector<8x32xf32>
    %c1 = arith.constant 1 : index
    %c0_23 = arith.constant 0 : index
    %c0_24 = arith.constant 0 : index
    %c0_25 = arith.constant 0 : index
    %54 = vector.load %arg0[%c1, %c0_23, %c0_24, %c0_25] : memref<2x3x8x32xf32, #tpu.memory_space<vmem>>, vector<1x3x8x32xf32>
    %55 = vector.shape_cast %54 : vector<1x3x8x32xf32> to vector<3x8x32xf32>
    %56 = vector.extract_strided_slice %55 {offsets = [0, 0, 0], sizes = [1, 8, 32], strides = [1, 1, 1]} : vector<3x8x32xf32> to vector<1x8x32xf32>
    %57 = vector.shape_cast %56 : vector<1x8x32xf32> to vector<8x32xf32>
    %58 = vector.extract_strided_slice %55 {offsets = [1, 0, 0], sizes = [1, 8, 32], strides = [1, 1, 1]} : vector<3x8x32xf32> to vector<1x8x32xf32>
    %59 = vector.shape_cast %58 : vector<1x8x32xf32> to vector<8x32xf32>
    %60 = vector.extract_strided_slice %55 {offsets = [2, 0, 0], sizes = [1, 8, 32], strides = [1, 1, 1]} : vector<3x8x32xf32> to vector<1x8x32xf32>
    %61 = vector.shape_cast %60 : vector<1x8x32xf32> to vector<8x32xf32>
    %62 = vector.shape_cast %57 : vector<8x32xf32> to vector<1x8x32xf32>
    %63 = vector.broadcast %62 : vector<1x8x32xf32> to vector<4x8x32xf32>
    %64 = vector.shape_cast %59 : vector<8x32xf32> to vector<1x8x32xf32>
    %65 = vector.broadcast %64 : vector<1x8x32xf32> to vector<4x8x32xf32>
    %66 = vector.shape_cast %61 : vector<8x32xf32> to vector<1x8x32xf32>
    %67 = vector.broadcast %66 : vector<1x8x32xf32> to vector<4x8x32xf32>
    %68 = tpu.concatenate %63, %65, %67 in 0 : vector<4x8x32xf32>, vector<4x8x32xf32>, vector<4x8x32xf32> -> vector<12x8x32xf32>
    "tpu.trace_start"() <{level = 10 : i32, message = "gle,ged->gld"}> : () -> ()
    %cst_26 = arith.constant dense<0.000000e+00> : vector<12x8x8xf32>
    %69 = tpu.matmul %68, %0, %cst_26 {dimension_numbers = #tpu.dot_dimension_numbers<[2], [1], [1], [2], [0, 0, 0, 1, 1, 2], [0], [0]>} : vector<12x8x32xf32>, vector<12x32x8xf32>, vector<12x8x8xf32> -> vector<12x8x8xf32>
    "tpu.trace_stop"() : () -> ()
    %70 = vector.extract_strided_slice %69 {offsets = [0, 0, 0], sizes = [4, 8, 8], strides = [1, 1, 1]} : vector<12x8x8xf32> to vector<4x8x8xf32>
    %71 = vector.extract_strided_slice %69 {offsets = [4, 0, 0], sizes = [4, 8, 8], strides = [1, 1, 1]} : vector<12x8x8xf32> to vector<4x8x8xf32>
    %72 = vector.extract_strided_slice %69 {offsets = [8, 0, 0], sizes = [4, 8, 8], strides = [1, 1, 1]} : vector<12x8x8xf32> to vector<4x8x8xf32>
    "tpu.trace_start"() <{level = 10 : i32, message = "hqd,hkd->hqk"}> : () -> ()
    %cst_27 = arith.constant dense<0.000000e+00> : vector<4x8x8xf32>
    %73 = tpu.matmul %70, %71, %cst_27 {dimension_numbers = #tpu.dot_dimension_numbers<[2], [2], [1], [1], [0, 0, 0, 1, 1, 1], [0], [0]>} : vector<4x8x8xf32>, vector<4x8x8xf32>, vector<4x8x8xf32> -> vector<4x8x8xf32>
    "tpu.trace_stop"() : () -> ()
    %c1_28 = arith.constant 1 : index
    %c0_29 = arith.constant 0 : index
    %c0_30 = arith.constant 0 : index
    %74 = vector.load %arg1[%c1_28, %c0_29, %c0_30] : memref<2x8x8xf32, #tpu.memory_space<vmem>>, vector<1x8x8xf32>
    %75 = vector.shape_cast %74 : vector<1x8x8xf32> to vector<8x8xf32>
    %76 = vector.shape_cast %75 : vector<8x8xf32> to vector<1x8x8xf32>
    %cst_31 = arith.constant 0.000000e+00 : f32
    %77 = vector.broadcast %cst_31 : f32 to vector<1x8x8xf32>
    %78 = arith.cmpf oeq, %76, %77 : vector<1x8x8xf32>
    %cst_32 = arith.constant -9.99999968E-21 : f32
    %79 = vector.shape_cast %78 : vector<1x8x8xi1> to vector<1x8x8xi1>
    %80 = vector.broadcast %79 : vector<1x8x8xi1> to vector<4x8x8xi1>
    %81 = vector.broadcast %cst_32 : f32 to vector<4x8x8xf32>
    %82 = arith.select %80, %81, %73 : vector<4x8x8xi1>, vector<4x8x8xf32>
    %cst_33 = arith.constant 0.353553385 : f32
    %83 = vector.broadcast %cst_33 : f32 to vector<4x8x8xf32>
    %84 = arith.mulf %82, %83 : vector<4x8x8xf32>
    %cst_34 = arith.constant dense<0xFF800000> : vector<4x8xf32>
    %85 = vector.multi_reduction <maximumf>, %84, %cst_34 [2] : vector<4x8x8xf32> to vector<4x8xf32>
    %86 = vector.shape_cast %85 : vector<4x8xf32> to vector<4x8x1xf32>
    %87 = vector.broadcast %86 : vector<4x8x1xf32> to vector<4x8x8xf32>
    %88 = arith.subf %84, %87 : vector<4x8x8xf32>
    %89 = math.exp %88 : vector<4x8x8xf32>
    %cst_35 = arith.constant dense<0.000000e+00> : vector<4x8xf32>
    %90 = vector.multi_reduction <add>, %89, %cst_35 [2] : vector<4x8x8xf32> to vector<4x8xf32>
    %91 = vector.shape_cast %90 : vector<4x8xf32> to vector<4x8x1xf32>
    %92 = tpu.reciprocal %91 {approx = true} : vector<4x8x1xf32> -> vector<4x8x1xf32>
    %93 = vector.broadcast %92 : vector<4x8x1xf32> to vector<4x8x8xf32>
    %94 = arith.mulf %89, %93 : vector<4x8x8xf32>
    "tpu.trace_start"() <{level = 10 : i32, message = "hqk,hkd->hqd"}> : () -> ()
    %cst_36 = arith.constant dense<0.000000e+00> : vector<4x8x8xf32>
    %95 = tpu.matmul %94, %72, %cst_36 {dimension_numbers = #tpu.dot_dimension_numbers<[2], [1], [1], [2], [0, 0, 0, 1, 1, 2], [0], [0]>} : vector<4x8x8xf32>, vector<4x8x8xf32>, vector<4x8x8xf32> -> vector<4x8x8xf32>
    "tpu.trace_stop"() : () -> ()
    "tpu.trace_start"() <{level = 10 : i32, message = "hld,hde->hle"}> : () -> ()
    %cst_37 = arith.constant dense<0.000000e+00> : vector<4x8x32xf32>
    %96 = tpu.matmul %95, %1, %cst_37 {dimension_numbers = #tpu.dot_dimension_numbers<[2], [1], [1], [2], [0, 0, 0, 1, 1, 2], [0], [0]>} : vector<4x8x8xf32>, vector<4x8x32xf32>, vector<4x8x32xf32> -> vector<4x8x32xf32>
    "tpu.trace_stop"() : () -> ()
    %cst_38 = arith.constant dense<0.000000e+00> : vector<8x32xf32>
    %97 = vector.multi_reduction <add>, %96, %cst_38 [0] : vector<4x8x32xf32> to vector<8x32xf32>
    %98 = tpu.concatenate %53, %97 in 0 : vector<8x32xf32>, vector<8x32xf32> -> vector<16x32xf32>
    %99 = vector.broadcast %3 : vector<1x32xf32> to vector<16x32xf32>
    %100 = arith.addf %98, %99 : vector<16x32xf32>
    %101 = tpu.concatenate %13, %57 in 0 : vector<8x32xf32>, vector<8x32xf32> -> vector<16x32xf32>
    %102 = arith.addf %100, %101 : vector<16x32xf32>
    %cst_39 = arith.constant dense<0.000000e+00> : vector<16xf32>
    %103 = vector.multi_reduction <add>, %102, %cst_39 [1] : vector<16x32xf32> to vector<16xf32>
    %104 = vector.shape_cast %103 : vector<16xf32> to vector<16x1xf32>
    %cst_40 = arith.constant 3.200000e+01 : f32
    %105 = vector.broadcast %cst_40 : f32 to vector<16x1xf32>
    %106 = arith.divf %104, %105 : vector<16x1xf32>
    %107 = vector.broadcast %106 : vector<16x1xf32> to vector<16x32xf32>
    %108 = arith.subf %102, %107 : vector<16x32xf32>
    %109 = arith.mulf %108, %108 : vector<16x32xf32>
    %cst_41 = arith.constant dense<0.000000e+00> : vector<16xf32>
    %110 = vector.multi_reduction <add>, %109, %cst_41 [1] : vector<16x32xf32> to vector<16xf32>
    %111 = vector.shape_cast %110 : vector<16xf32> to vector<16x1xf32>
    %cst_42 = arith.constant 3.200000e+01 : f32
    %112 = vector.broadcast %cst_42 : f32 to vector<16x1xf32>
    %113 = arith.divf %111, %112 : vector<16x1xf32>
    %114 = vector.broadcast %106 : vector<16x1xf32> to vector<16x32xf32>
    %115 = arith.subf %102, %114 : vector<16x32xf32>
    %cst_43 = arith.constant 9.99999974E-6 : f32
    %116 = vector.broadcast %cst_43 : f32 to vector<16x1xf32>
    %117 = arith.addf %113, %116 : vector<16x1xf32>
    %118 = math.rsqrt %117 : vector<16x1xf32>
    %119 = vector.broadcast %118 : vector<16x1xf32> to vector<16x32xf32>
    %120 = arith.mulf %115, %119 : vector<16x32xf32>
    %121 = vector.broadcast %4 : vector<1x32xf32> to vector<16x32xf32>
    %122 = arith.mulf %120, %121 : vector<16x32xf32>
    %123 = vector.broadcast %5 : vector<1x32xf32> to vector<16x32xf32>
    %124 = arith.addf %122, %123 : vector<16x32xf32>
    %c0_44 = arith.constant 0 : index
    %c0_45 = arith.constant 0 : index
    %125 = vector.load %arg4[%c0_44, %c0_45] : memref<32x128xf32, #tpu.memory_space<vmem>>, vector<32x128xf32>
    %cst_46 = arith.constant dense<0.000000e+00> : vector<16x128xf32>
    %126 = tpu.matmul %124, %125, %cst_46 {dimension_numbers = #tpu.dot_dimension_numbers<[1], [0], [0], [1], [0, 0, 1, 1], [], []>} : vector<16x32xf32>, vector<32x128xf32>, vector<16x128xf32> -> vector<16x128xf32>
    %127 = vector.broadcast %9 : vector<1x128xf32> to vector<16x128xf32>
    %128 = arith.addf %126, %127 : vector<16x128xf32>
    %cst_47 = arith.constant 0.000000e+00 : f32
    %129 = vector.broadcast %cst_47 : f32 to vector<16x128xf32>
    %130 = arith.maximumf %128, %129 : vector<16x128xf32>
    %c0_48 = arith.constant 0 : index
    %c0_49 = arith.constant 0 : index
    %131 = vector.load %arg5[%c0_48, %c0_49] : memref<128x32xf32, #tpu.memory_space<vmem>>, vector<128x32xf32>
    %cst_50 = arith.constant dense<0.000000e+00> : vector<16x32xf32>
    %132 = tpu.matmul %130, %131, %cst_50 {dimension_numbers = #tpu.dot_dimension_numbers<[1], [0], [0], [1], [0, 0, 1, 1], [], []>} : vector<16x128xf32>, vector<128x32xf32>, vector<16x32xf32> -> vector<16x32xf32>
    %133 = vector.broadcast %8 : vector<1x32xf32> to vector<16x32xf32>
    %134 = arith.addf %132, %133 : vector<16x32xf32>
    %135 = arith.addf %134, %124 : vector<16x32xf32>
    %cst_51 = arith.constant dense<0.000000e+00> : vector<16xf32>
    %136 = vector.multi_reduction <add>, %135, %cst_51 [1] : vector<16x32xf32> to vector<16xf32>
    %137 = vector.shape_cast %136 : vector<16xf32> to vector<16x1xf32>
    %cst_52 = arith.constant 3.200000e+01 : f32
    %138 = vector.broadcast %cst_52 : f32 to vector<16x1xf32>
    %139 = arith.divf %137, %138 : vector<16x1xf32>
    %140 = vector.broadcast %139 : vector<16x1xf32> to vector<16x32xf32>
    %141 = arith.subf %135, %140 : vector<16x32xf32>
    %142 = arith.mulf %141, %141 : vector<16x32xf32>
    %cst_53 = arith.constant dense<0.000000e+00> : vector<16xf32>
    %143 = vector.multi_reduction <add>, %142, %cst_53 [1] : vector<16x32xf32> to vector<16xf32>
    %144 = vector.shape_cast %143 : vector<16xf32> to vector<16x1xf32>
    %cst_54 = arith.constant 3.200000e+01 : f32
    %145 = vector.broadcast %cst_54 : f32 to vector<16x1xf32>
    %146 = arith.divf %144, %145 : vector<16x1xf32>
    %147 = vector.broadcast %139 : vector<16x1xf32> to vector<16x32xf32>
    %148 = arith.subf %135, %147 : vector<16x32xf32>
    %cst_55 = arith.constant 9.99999974E-6 : f32
    %149 = vector.broadcast %cst_55 : f32 to vector<16x1xf32>
    %150 = arith.addf %146, %149 : vector<16x1xf32>
    %151 = math.rsqrt %150 : vector<16x1xf32>
    %152 = vector.broadcast %151 : vector<16x1xf32> to vector<16x32xf32>
    %153 = arith.mulf %148, %152 : vector<16x32xf32>
    %154 = vector.broadcast %6 : vector<1x32xf32> to vector<16x32xf32>
    %155 = arith.mulf %153, %154 : vector<16x32xf32>
    %156 = vector.broadcast %7 : vector<1x32xf32> to vector<16x32xf32>
    %157 = arith.addf %155, %156 : vector<16x32xf32>
    %c0_56 = arith.constant 0 : index
    %c0_57 = arith.constant 0 : index
    %158 = vector.load %arg7[%c0_56, %c0_57] : memref<16x32xf32, #tpu.memory_space<vmem>>, vector<16x32xf32>
    tpu.vector_store %arg7[%c0_56, %c0_57], %157 {strides = array<i32>} : memref<16x32xf32, #tpu.memory_space<vmem>>, vector<16x32xf32>,
    return
  }
}

</mosaic_0001>

<llo_original>
// kernel: transformer_block.1
$region0: #{transformer_block.1}
  #allocation0 [shape = 'u32[]', space=smem, size = 0x4, offset = 0x4, fixed_abs, tag = 'smem constant byte address 0x4 - core index']
  #allocation1 [shape = 'u32[144,128]{1,0:T(1,128)}', space=vmem, size = 0x12000, scoped, tag = 'internal scratch']
  %s0 = inlined_call_operand.vmem [shape: f32[2,3,8,32], index: 0, kind: input, shape index: {}]
  %s1 = inlined_call_operand.vmem [shape: f32[2,8,8], index: 1, kind: input, shape index: {}]
  %s2 = inlined_call_operand.vmem [shape: f32[12,32,8], index: 2, kind: input, shape index: {}]
  %s3 = inlined_call_operand.vmem [shape: f32[4,8,32], index: 3, kind: input, shape index: {}]
  %s4 = inlined_call_operand.vmem [shape: f32[32,128], index: 4, kind: input, shape index: {}]
  %s5 = inlined_call_operand.vmem [shape: f32[128,32], index: 5, kind: input, shape index: {}]
  %s6 = inlined_call_operand.vmem [shape: f32[8,128], index: 6, kind: input, shape index: {}]
  %s7 = inlined_call_operand.hbm [shape: f32[16,32], index: 7, kind: output, shape index: {}]
  %s8 = sld [smem:[#allocation0]]
  $region38: #{transformer_block.1} parent=0
    _
  %s10 = ssub.s32 1, %s8
  %s11 = scalar_select 0, %s10, %s8
  $region1: #{transformer_block.1} parent=0
    #allocation2 [shape = 'u8[8192]{0}', space=vmem, size = 0x2000, scoped, tag = 'output window, operand 0, single buffered']
    #allocation3 [shape = 's32[1]{0}', space=sflag, size = 0x4, scoped, tag = 'scoped memory for transformer_block.1']
    %12 = vsyncpa [#allocation3], 0
    // Predicated region
    $region2: #{transformer_block.1} parent=1 // pred_check
      _
    $region3: #{transformer_block.1} parent=1 // pred_check_branch
      %14 = sbr.rel (0) target = $region5
    $region4: #{transformer_block.1} parent=1 // pred_region
      _
    $region5: #{transformer_block.1} parent=1 // pred_fallthru
      _
    // Predicated region
    $region6: #{transformer_block.1} parent=1 // pred_check
      _
    $region7: #{transformer_block.1} parent=1 // pred_check_branch
      %16 = sbr.rel (0) target = $region9
    $region8: #{transformer_block.1} parent=1 // pred_region
      _
    $region9: #{transformer_block.1} parent=1 // pred_fallthru
      _
    // Predicated region
    $region10: #{transformer_block.1} parent=1 // pred_check
      _
    $region11: #{transformer_block.1} parent=1 // pred_check_branch
      %18 = sbr.rel (0) target = $region13
    $region12: #{transformer_block.1} parent=1 // pred_region
      _
    $region13: #{transformer_block.1} parent=1 // pred_fallthru
      _
    // Predicated region
    $region14: #{transformer_block.1} parent=1 // pred_check
      _
    $region15: #{transformer_block.1} parent=1 // pred_check_branch
      %20 = sbr.rel (0) target = $region17
    $region16: #{transformer_block.1} parent=1 // pred_region
      _
    $region17: #{transformer_block.1} parent=1 // pred_fallthru
      _
    // Predicated region
    $region18: #{transformer_block.1} parent=1 // pred_check
      _
    $region19: #{transformer_block.1} parent=1 // pred_check_branch
      %22 = sbr.rel (0) target = $region21
    $region20: #{transformer_block.1} parent=1 // pred_region
      _
    $region21: #{transformer_block.1} parent=1 // pred_fallthru
      _
    // Predicated region
    $region22: #{transformer_block.1} parent=1 // pred_check
      _
    $region23: #{transformer_block.1} parent=1 // pred_check_branch
      %24 = sbr.rel (0) target = $region25
    $region24: #{transformer_block.1} parent=1 // pred_region
      _
    $region25: #{transformer_block.1} parent=1 // pred_fallthru
      _
    // Predicated region
    $region26: #{transformer_block.1} parent=1 // pred_check
      _
    $region27: #{transformer_block.1} parent=1 // pred_check_branch
      %26 = sbr.rel (0) target = $region29
    $region28: #{transformer_block.1} parent=1 // pred_region
      _
    $region29: #{transformer_block.1} parent=1 // pred_fallthru
      _
    %v27 = vld [vmem:[%s2] sm:$0xff]
    %v28 = vld [vmem:[%s2 + $0x8] sm:$0xff]
    %v29 = vld [vmem:[%s2 + $0x10] sm:$0xff]
    %v30 = vld [vmem:[%s2 + $0x18] sm:$0xff]
    %v31 = vld [vmem:[%s2 + $0x20] sm:$0xff]
    %v32 = vld [vmem:[%s2 + $0x28] sm:$0xff]
    %v33 = vld [vmem:[%s2 + $0x30] sm:$0xff]
    %v34 = vld [vmem:[%s2 + $0x38] sm:$0xff]
    %v35 = vld [vmem:[%s2 + $0x40] sm:$0xff]
    %v36 = vld [vmem:[%s2 + $0x48] sm:$0xff]
    %v37 = vld [vmem:[%s2 + $0x50] sm:$0xff]
    %v38 = vld [vmem:[%s2 + $0x58] sm:$0xff]
    %v39 = vld [vmem:[%s2 + $0x60] sm:$0xff]
    %v40 = vld [vmem:[%s2 + $0x68] sm:$0xff]
    %v41 = vld [vmem:[%s2 + $0x70] sm:$0xff]
    %v42 = vld [vmem:[%s2 + $0x78] sm:$0xff]
    %v43 = vld [vmem:[%s2 + $0x80] sm:$0xff]
    %v44 = vld [vmem:[%s2 + $0x88] sm:$0xff]
    %v45 = vld [vmem:[%s2 + $0x90] sm:$0xff]
    %v46 = vld [vmem:[%s2 + $0x98] sm:$0xff]
    %v47 = vld [vmem:[%s2 + $0xa0] sm:$0xff]
    %v48 = vld [vmem:[%s2 + $0xa8] sm:$0xff]
    %v49 = vld [vmem:[%s2 + $0xb0] sm:$0xff]
    %v50 = vld [vmem:[%s2 + $0xb8] sm:$0xff]
    %v51 = vld [vmem:[%s2 + $0xc0] sm:$0xff]
    %v52 = vld [vmem:[%s2 + $0xc8] sm:$0xff]
    %v53 = vld [vmem:[%s2 + $0xd0] sm:$0xff]
    %v54 = vld [vmem:[%s2 + $0xd8] sm:$0xff]
    %v55 = vld [vmem:[%s2 + $0xe0] sm:$0xff]
    %v56 = vld [vmem:[%s2 + $0xe8] sm:$0xff]
    %v57 = vld [vmem:[%s2 + $0xf0] sm:$0xff]
    %v58 = vld [vmem:[%s2 + $0xf8] sm:$0xff]
    %v59 = vld [vmem:[%s2 + $0x100] sm:$0xff]
    %v60 = vld [vmem:[%s2 + $0x108] sm:$0xff]
    %v61 = vld [vmem:[%s2 + $0x110] sm:$0xff]
    %v62 = vld [vmem:[%s2 + $0x118] sm:$0xff]
    %v63 = vld [vmem:[%s2 + $0x120] sm:$0xff]
    %v64 = vld [vmem:[%s2 + $0x128] sm:$0xff]
    %v65 = vld [vmem:[%s2 + $0x130] sm:$0xff]
    %v66 = vld [vmem:[%s2 + $0x138] sm:$0xff]
    %v67 = vld [vmem:[%s2 + $0x140] sm:$0xff]
    %v68 = vld [vmem:[%s2 + $0x148] sm:$0xff]
    %v69 = vld [vmem:[%s2 + $0x150] sm:$0xff]
    %v70 = vld [vmem:[%s2 + $0x158] sm:$0xff]
    %v71 = vld [vmem:[%s2 + $0x160] sm:$0xff]
    %v72 = vld [vmem:[%s2 + $0x168] sm:$0xff]
    %v73 = vld [vmem:[%s2 + $0x170] sm:$0xff]
    %v74 = vld [vmem:[%s2 + $0x178] sm:$0xff]
    %v75 = vld [vmem:[%s3] sm:$0xff]
    %v76 = vld [vmem:[%s3 + $0x8] sm:$0xff]
    %v77 = vld [vmem:[%s3 + $0x10] sm:$0xff]
    %v78 = vld [vmem:[%s3 + $0x18] sm:$0xff]
    %v79 = vld [vmem:[%s6] sm:$0xff]
    %v80 = vld [vmem:[%s0] sm:$0xff]
    %v81 = vld [vmem:[%s0 + $0x8] sm:$0xff]
    %v82 = vld [vmem:[%s0 + $0x10] sm:$0xff]
    %vm83 = vcmask 261120
    %v85 = vsel %vm83, %v80, 0
    %87 = vmatprep.subr.mxu0 0.0
    %88 = vmatpush1.msra.mxu0 %v27
    %89 = vmatprep.subr.mxu0 0.0
    %90 = vmatpush1.msra.mxu0 %v28
    %91 = vmatprep.subr.mxu0 0.0
    %92 = vmatpush1.msra.mxu0 %v29
    %93 = vmatprep.subr.mxu0 0.0
    %94 = vmatpush1.msra.mxu0 %v30
    %95 = vmatprep.subr.mxu0 0.0
    %96 = vmatpush1.msra.mxu0 0.0
    %97 = vmatprep.subr.mxu0 0.0
    %98 = vmatpush1.msra.mxu0 0.0
    %99 = vmatprep.subr.mxu0 0.0
    %100 = vmatpush1.msra.mxu0 0.0
    %101 = vmatprep.subr.mxu0 0.0
    %102 = vmatpush1.msra.mxu0 0.0
    %103 = vmatprep.subr.mxu0 0.0
    %104 = vmatpush1.msra.mxu0 0.0
    %105 = vmatprep.subr.mxu0 0.0
    %106 = vmatpush1.msra.mxu0 0.0
    %107 = vmatprep.subr.mxu0 0.0
    %108 = vmatpush1.msra.mxu0 0.0
    %109 = vmatprep.subr.mxu0 0.0
    %110 = vmatpush1.msra.mxu0 0.0
    %111 = vmatprep.subr.mxu0 0.0
    %112 = vmatpush1.msra.mxu0 0.0
    %113 = vmatprep.subr.mxu0 0.0
    %114 = vmatpush1.msra.mxu0 0.0
    %115 = vmatprep.subr.mxu0 0.0
    %116 = vmatpush1.msra.mxu0 0.0
    %117 = vmatprep.subr.mxu0 0.0
    %118 = vmatpush1.msra.mxu0 0.0
    %119 = vmatprep.subr.mxu0 0.0
    %120 = vmatpush1.msra.mxu0 0.0
    %121 = vmatprep.subr.mxu0 0.0
    %122 = vmatpush1.msra.mxu0 0.0
    %123 = vmatprep.subr.mxu0 0.0
    %124 = vmatpush1.msra.mxu0 0.0
    %125 = vmatprep.subr.mxu0 0.0
    %126 = vmatpush1.msra.mxu0 0.0
    %127 = vmatprep.subr.mxu0 0.0
    %128 = vmatpush1.msra.mxu0 0.0
    %129 = vmatprep.subr.mxu0 0.0
    %130 = vmatpush1.msra.mxu0 0.0
    %131 = vmatprep.subr.mxu0 0.0
    %132 = vmatpush1.msra.mxu0 0.0
    %133 = vmatprep.subr.mxu0 0.0
    %134 = vmatpush1.msra.mxu0 0.0
    %135 = vmatprep.subr.mxu0 0.0
    %136 = vmatpush1.msra.mxu0 0.0
    %137 = vmatprep.subr.mxu0 0.0
    %138 = vmatpush1.msra.mxu0 0.0
    %139 = vmatprep.subr.mxu0 0.0
    %140 = vmatpush1.msra.mxu0 0.0
    %141 = vmatprep.subr.mxu0 0.0
    %142 = vmatpush1.msra.mxu0 0.0
    %143 = vmatprep.subr.mxu0 0.0
    %144 = vmatpush1.msra.mxu0 0.0
    %145 = vmatprep.subr.mxu0 0.0
    %146 = vmatpush1.msra.mxu0 0.0
    %147 = vmatprep.subr.mxu0 0.0
    %148 = vmatpush1.msra.mxu0 0.0
    %149 = vmatprep.subr.mxu0 0.0
    %150 = vmatpush1.msra.mxu0 0.0
    %151 = vmatprep.mubr.f32.mxu0 0.0
    %152 = vmatmul.mubr.f32.gmra.mrb[0].mxu0 %v85
    %v153 = vpop.f32.mrb[0].mxu0
    %v154 = vadd.f32 0.0, %v153
    %v155 = vpop.f32.mrb[0].mxu0
    %156 = vdwg.mxu0
    %157 = vmatprep.subr.mxu0 0.0
    %158 = vmatpush1.msra.mxu0 %v31
    %159 = vmatprep.subr.mxu0 0.0
    %160 = vmatpush1.msra.mxu0 %v32
    %161 = vmatprep.subr.mxu0 0.0
    %162 = vmatpush1.msra.mxu0 %v33
    %163 = vmatprep.subr.mxu0 0.0
    %164 = vmatpush1.msra.mxu0 %v34
    %165 = vmatprep.subr.mxu0 0.0
    %166 = vmatpush1.msra.mxu0 0.0
    %167 = vmatprep.subr.mxu0 0.0
    %168 = vmatpush1.msra.mxu0 0.0
    %169 = vmatprep.subr.mxu0 0.0
    %170 = vmatpush1.msra.mxu0 0.0
    %171 = vmatprep.subr.mxu0 0.0
    %172 = vmatpush1.msra.mxu0 0.0
    %173 = vmatprep.subr.mxu0 0.0
    %174 = vmatpush1.msra.mxu0 0.0
    %175 = vmatprep.subr.mxu0 0.0
    %176 = vmatpush1.msra.mxu0 0.0
    %177 = vmatprep.subr.mxu0 0.0
    %178 = vmatpush1.msra.mxu0 0.0
    %179 = vmatprep.subr.mxu0 0.0
    %180 = vmatpush1.msra.mxu0 0.0
    %181 = vmatprep.subr.mxu0 0.0
    %182 = vmatpush1.msra.mxu0 0.0
    %183 = vmatprep.subr.mxu0 0.0
    %184 = vmatpush1.msra.mxu0 0.0
    %185 = vmatprep.subr.mxu0 0.0
    %186 = vmatpush1.msra.mxu0 0.0
    %187 = vmatprep.subr.mxu0 0.0
    %188 = vmatpush1.msra.mxu0 0.0
    %189 = vmatprep.subr.mxu0 0.0
    %190 = vmatpush1.msra.mxu0 0.0
    %191 = vmatprep.subr.mxu0 0.0
    %192 = vmatpush1.msra.mxu0 0.0
    %193 = vmatprep.subr.mxu0 0.0
    %194 = vmatpush1.msra.mxu0 0.0
    %195 = vmatprep.subr.mxu0 0.0
    %196 = vmatpush1.msra.mxu0 0.0
    %197 = vmatprep.subr.mxu0 0.0
    %198 = vmatpush1.msra.mxu0 0.0
    %199 = vmatprep.subr.mxu0 0.0
    %200 = vmatpush1.msra.mxu0 0.0
    %201 = vmatprep.subr.mxu0 0.0
    %202 = vmatpush1.msra.mxu0 0.0
    %203 = vmatprep.subr.mxu0 0.0
    %204 = vmatpush1.msra.mxu0 0.0
    %205 = vmatprep.subr.mxu0 0.0
    %206 = vmatpush1.msra.mxu0 0.0
    %207 = vmatprep.subr.mxu0 0.0
    %208 = vmatpush1.msra.mxu0 0.0
    %209 = vmatprep.subr.mxu0 0.0
    %210 = vmatpush1.msra.mxu0 0.0
    %211 = vmatprep.subr.mxu0 0.0
    %212 = vmatpush1.msra.mxu0 0.0
    %213 = vmatprep.subr.mxu0 0.0
    %214 = vmatpush1.msra.mxu0 0.0
    %215 = vmatprep.subr.mxu0 0.0
    %216 = vmatpush1.msra.mxu0 0.0
    %217 = vmatprep.subr.mxu0 0.0
    %218 = vmatpush1.msra.mxu0 0.0
    %219 = vmatprep.subr.mxu0 0.0
    %220 = vmatpush1.msra.mxu0 0.0
    %221 = vmatprep.mubr.f32.mxu0 0.0
    %222 = vmatmul.mubr.f32.gmra.mrb[0].mxu0 %v85
    %v223 = vpop.f32.mrb[0].mxu0
    %v224 = vadd.f32 0.0, %v223
    %v225 = vpop.f32.mrb[0].mxu0
    %226 = vdwg.mxu0
    %227 = vmatprep.subr.mxu0 0.0
    %228 = vmatpush1.msra.mxu0 %v35
    %229 = vmatprep.subr.mxu0 0.0
    %230 = vmatpush1.msra.mxu0 %v36
    %231 = vmatprep.subr.mxu0 0.0
    %232 = vmatpush1.msra.mxu0 %v37
    %233 = vmatprep.subr.mxu0 0.0
    %234 = vmatpush1.msra.mxu0 %v38
    %235 = vmatprep.subr.mxu0 0.0
    %236 = vmatpush1.msra.mxu0 0.0
    %237 = vmatprep.subr.mxu0 0.0
    %238 = vmatpush1.msra.mxu0 0.0
    %239 = vmatprep.subr.mxu0 0.0
    %240 = vmatpush1.msra.mxu0 0.0
    %241 = vmatprep.subr.mxu0 0.0
    %242 = vmatpush1.msra.mxu0 0.0
    %243 = vmatprep.subr.mxu0 0.0
    %244 = vmatpush1.msra.mxu0 0.0
    %245 = vmatprep.subr.mxu0 0.0
    %246 = vmatpush1.msra.mxu0 0.0
    %247 = vmatprep.subr.mxu0 0.0
    %248 = vmatpush1.msra.mxu0 0.0
    %249 = vmatprep.subr.mxu0 0.0
    %250 = vmatpush1.msra.mxu0 0.0
    %251 = vmatprep.subr.mxu0 0.0
    %252 = vmatpush1.msra.mxu0 0.0
    %253 = vmatprep.subr.mxu0 0.0
    %254 = vmatpush1.msra.mxu0 0.0
    %255 = vmatprep.subr.mxu0 0.0
    %256 = vmatpush1.msra.mxu0 0.0
    %257 = vmatprep.subr.mxu0 0.0
    %258 = vmatpush1.msra.mxu0 0.0
    %259 = vmatprep.subr.mxu0 0.0
    %260 = vmatpush1.msra.mxu0 0.0
    %261 = vmatprep.subr.mxu0 0.0
    %262 = vmatpush1.msra.mxu0 0.0
    %263 = vmatprep.subr.mxu0 0.0
    %264 = vmatpush1.msra.mxu0 0.0
    %265 = vmatprep.subr.mxu0 0.0
    %266 = vmatpush1.msra.mxu0 0.0
    %267 = vmatprep.subr.mxu0 0.0
    %268 = vmatpush1.msra.mxu0 0.0
    %269 = vmatprep.subr.mxu0 0.0
    %270 = vmatpush1.msra.mxu0 0.0
    %271 = vmatprep.subr.mxu0 0.0
    %272 = vmatpush1.msra.mxu0 0.0
    %273 = vmatprep.subr.mxu0 0.0
    %274 = vmatpush1.msra.mxu0 0.0
    %275 = vmatprep.subr.mxu0 0.0
    %276 = vmatpush1.msra.mxu0 0.0
    %277 = vmatprep.subr.mxu0 0.0
    %278 = vmatpush1.msra.mxu0 0.0
    %279 = vmatprep.subr.mxu0 0.0
    %280 = vmatpush1.msra.mxu0 0.0
    %281 = vmatprep.subr.mxu0 0.0
    %282 = vmatpush1.msra.mxu0 0.0
    %283 = vmatprep.subr.mxu0 0.0
    %284 = vmatpush1.msra.mxu0 0.0
    %285 = vmatprep.subr.mxu0 0.0
    %286 = vmatpush1.msra.mxu0 0.0
    %287 = vmatprep.subr.mxu0 0.0
    %288 = vmatpush1.msra.mxu0 0.0
    %289 = vmatprep.subr.mxu0 0.0
    %290 = vmatpush1.msra.mxu0 0.0
    %291 = vmatprep.mubr.f32.mxu0 0.0
    %292 = vmatmul.mubr.f32.gmra.mrb[0].mxu0 %v85
    %v293 = vpop.f32.mrb[0].mxu0
    %v294 = vadd.f32 0.0, %v293
    %v295 = vpop.f32.mrb[0].mxu0
    %296 = vdwg.mxu0
    %297 = vmatprep.subr.mxu0 0.0
    %298 = vmatpush1.msra.mxu0 %v39
    %299 = vmatprep.subr.mxu0 0.0
    %300 = vmatpush1.msra.mxu0 %v40
    %301 = vmatprep.subr.mxu0 0.0
    %302 = vmatpush1.msra.mxu0 %v41
    %303 = vmatprep.subr.mxu0 0.0
    %304 = vmatpush1.msra.mxu0 %v42
    %305 = vmatprep.subr.mxu0 0.0
    %306 = vmatpush1.msra.mxu0 0.0
    %307 = vmatprep.subr.mxu0 0.0
    %308 = vmatpush1.msra.mxu0 0.0
    %309 = vmatprep.subr.mxu0 0.0
    %310 = vmatpush1.msra.mxu0 0.0
    %311 = vmatprep.subr.mxu0 0.0
    %312 = vmatpush1.msra.mxu0 0.0
    %313 = vmatprep.subr.mxu0 0.0
    %314 = vmatpush1.msra.mxu0 0.0
    %315 = vmatprep.subr.mxu0 0.0
    %316 = vmatpush1.msra.mxu0 0.0
    %317 = vmatprep.subr.mxu0 0.0
    %318 = vmatpush1.msra.mxu0 0.0
    %319 = vmatprep.subr.mxu0 0.0
    %320 = vmatpush1.msra.mxu0 0.0
    %321 = vmatprep.subr.mxu0 0.0
    %322 = vmatpush1.msra.mxu0 0.0
    %323 = vmatprep.subr.mxu0 0.0
    %324 = vmatpush1.msra.mxu0 0.0
    %325 = vmatprep.subr.mxu0 0.0
    %326 = vmatpush1.msra.mxu0 0.0
    %327 = vmatprep.subr.mxu0 0.0
    %328 = vmatpush1.msra.mxu0 0.0
    %329 = vmatprep.subr.mxu0 0.0
    %330 = vmatpush1.msra.mxu0 0.0
    %331 = vmatprep.subr.mxu0 0.0
    %332 = vmatpush1.msra.mxu0 0.0
    %333 = vmatprep.subr.mxu0 0.0
    %334 = vmatpush1.msra.mxu0 0.0
    %335 = vmatprep.subr.mxu0 0.0
    %336 = vmatpush1.msra.mxu0 0.0
    %337 = vmatprep.subr.mxu0 0.0
    %338 = vmatpush1.msra.mxu0 0.0
    %339 = vmatprep.subr.mxu0 0.0
    %340 = vmatpush1.msra.mxu0 0.0
    %341 = vmatprep.subr.mxu0 0.0
    %342 = vmatpush1.msra.mxu0 0.0
    %343 = vmatprep.subr.mxu0 0.0
    %344 = vmatpush1.msra.mxu0 0.0
    %345 = vmatprep.subr.mxu0 0.0
    %346 = vmatpush1.msra.mxu0 0.0
    %347 = vmatprep.subr.mxu0 0.0
    %348 = vmatpush1.msra.mxu0 0.0
    %349 = vmatprep.subr.mxu0 0.0
    %350 = vmatpush1.msra.mxu0 0.0
    %351 = vmatprep.subr.mxu0 0.0
    %352 = vmatpush1.msra.mxu0 0.0
    %353 = vmatprep.subr.mxu0 0.0
    %354 = vmatpush1.msra.mxu0 0.0
    %355 = vmatprep.subr.mxu0 0.0
    %356 = vmatpush1.msra.mxu0 0.0
    %357 = vmatprep.subr.mxu0 0.0
    %358 = vmatpush1.msra.mxu0 0.0
    %359 = vmatprep.subr.mxu0 0.0
    %360 = vmatpush1.msra.mxu0 0.0
    %361 = vmatprep.mubr.f32.mxu0 0.0
    %362 = vmatmul.mubr.f32.gmra.mrb[0].mxu0 %v85
    %v363 = vpop.f32.mrb[0].mxu0
    %v364 = vadd.f32 0.0, %v363
    %v365 = vpop.f32.mrb[0].mxu0
    %366 = vdwg.mxu0
    %v368 = vsel %vm83, %v81, 0
    %370 = vmatprep.subr.mxu0 0.0
    %371 = vmatpush1.msra.mxu0 %v43
    %372 = vmatprep.subr.mxu0 0.0
    %373 = vmatpush1.msra.mxu0 %v44
    %374 = vmatprep.subr.mxu0 0.0
    %375 = vmatpush1.msra.mxu0 %v45
    %376 = vmatprep.subr.mxu0 0.0
    %377 = vmatpush1.msra.mxu0 %v46
    %378 = vmatprep.subr.mxu0 0.0
    %379 = vmatpush1.msra.mxu0 0.0
    %380 = vmatprep.subr.mxu0 0.0
    %381 = vmatpush1.msra.mxu0 0.0
    %382 = vmatprep.subr.mxu0 0.0
    %383 = vmatpush1.msra.mxu0 0.0
    %384 = vmatprep.subr.mxu0 0.0
    %385 = vmatpush1.msra.mxu0 0.0
    %386 = vmatprep.subr.mxu0 0.0
    %387 = vmatpush1.msra.mxu0 0.0
    %388 = vmatprep.subr.mxu0 0.0
    %389 = vmatpush1.msra.mxu0 0.0
    %390 = vmatprep.subr.mxu0 0.0
    %391 = vmatpush1.msra.mxu0 0.0
    %392 = vmatprep.subr.mxu0 0.0
    %393 = vmatpush1.msra.mxu0 0.0
    %394 = vmatprep.subr.mxu0 0.0
    %395 = vmatpush1.msra.mxu0 0.0
    %396 = vmatprep.subr.mxu0 0.0
    %397 = vmatpush1.msra.mxu0 0.0
    %398 = vmatprep.subr.mxu0 0.0
    %399 = vmatpush1.msra.mxu0 0.0
    %400 = vmatprep.subr.mxu0 0.0
    %401 = vmatpush1.msra.mxu0 0.0
    %402 = vmatprep.subr.mxu0 0.0
    %403 = vmatpush1.msra.mxu0 0.0
    %404 = vmatprep.subr.mxu0 0.0
    %405 = vmatpush1.msra.mxu0 0.0
    %406 = vmatprep.subr.mxu0 0.0
    %407 = vmatpush1.msra.mxu0 0.0
    %408 = vmatprep.subr.mxu0 0.0
    %409 = vmatpush1.msra.mxu0 0.0
    %410 = vmatprep.subr.mxu0 0.0
    %411 = vmatpush1.msra.mxu0 0.0
    %412 = vmatprep.subr.mxu0 0.0
    %413 = vmatpush1.msra.mxu0 0.0
    %414 = vmatprep.subr.mxu0 0.0
    %415 = vmatpush1.msra.mxu0 0.0
    %416 = vmatprep.subr.mxu0 0.0
    %417 = vmatpush1.msra.mxu0 0.0
    %418 = vmatprep.subr.mxu0 0.0
    %419 = vmatpush1.msra.mxu0 0.0
    %420 = vmatprep.subr.mxu0 0.0
    %421 = vmatpush1.msra.mxu0 0.0
    %422 = vmatprep.subr.mxu0 0.0
    %423 = vmatpush1.msra.mxu0 0.0
    %424 = vmatprep.subr.mxu0 0.0
    %425 = vmatpush1.msra.mxu0 0.0
    %426 = vmatprep.subr.mxu0 0.0
    %427 = vmatpush1.msra.mxu0 0.0
    %428 = vmatprep.subr.mxu0 0.0
    %429 = vmatpush1.msra.mxu0 0.0
    %430 = vmatprep.subr.mxu0 0.0
    %431 = vmatpush1.msra.mxu0 0.0
    %432 = vmatprep.subr.mxu0 0.0
    %433 = vmatpush1.msra.mxu0 0.0
    %434 = vmatprep.mubr.f32.mxu0 0.0
    %435 = vmatmul.mubr.f32.gmra.mrb[0].mxu0 %v368
    %v436 = vpop.f32.mrb[0].mxu0
    %v437 = vadd.f32 0.0, %v436
    %v438 = vpop.f32.mrb[0].mxu0
    %439 = vdwg.mxu0
    %440 = vmatprep.subr.mxu0 0.0
    %441 = vmatpush1.msra.mxu0 %v47
    %442 = vmatprep.subr.mxu0 0.0
    %443 = vmatpush1.msra.mxu0 %v48
    %444 = vmatprep.subr.mxu0 0.0
    %445 = vmatpush1.msra.mxu0 %v49
    %446 = vmatprep.subr.mxu0 0.0
    %447 = vmatpush1.msra.mxu0 %v50
    %448 = vmatprep.subr.mxu0 0.0
    %449 = vmatpush1.msra.mxu0 0.0
    %450 = vmatprep.subr.mxu0 0.0
    %451 = vmatpush1.msra.mxu0 0.0
    %452 = vmatprep.subr.mxu0 0.0
    %453 = vmatpush1.msra.mxu0 0.0
    %454 = vmatprep.subr.mxu0 0.0
    %455 = vmatpush1.msra.mxu0 0.0
    %456 = vmatprep.subr.mxu0 0.0
    %457 = vmatpush1.msra.mxu0 0.0
    %458 = vmatprep.subr.mxu0 0.0
    %459 = vmatpush1.msra.mxu0 0.0
    %460 = vmatprep.subr.mxu0 0.0
    %461 = vmatpush1.msra.mxu0 0.0
    %462 = vmatprep.subr.mxu0 0.0
    %463 = vmatpush1.msra.mxu0 0.0
    %464 = vmatprep.subr.mxu0 0.0
    %465 = vmatpush1.msra.mxu0 0.0
    %466 = vmatprep.subr.mxu0 0.0
    %467 = vmatpush1.msra.mxu0 0.0
    %468 = vmatprep.subr.mxu0 0.0
    %469 = vmatpush1.msra.mxu0 0.0
    %470 = vmatprep.subr.mxu0 0.0
    %471 = vmatpush1.msra.mxu0 0.0
    %472 = vmatprep.subr.mxu0 0.0
    %473 = vmatpush1.msra.mxu0 0.0
    %474 = vmatprep.subr.mxu0 0.0
    %475 = vmatpush1.msra.mxu0 0.0
    %476 = vmatprep.subr.mxu0 0.0
    %477 = vmatpush1.msra.mxu0 0.0
    %478 = vmatprep.subr.mxu0 0.0
    %479 = vmatpush1.msra.mxu0 0.0
    %480 = vmatprep.subr.mxu0 0.0
    %481 = vmatpush1.msra.mxu0 0.0
    %482 = vmatprep.subr.mxu0 0.0
    %483 = vmatpush1.msra.mxu0 0.0
    %484 = vmatprep.subr.mxu0 0.0
    %485 = vmatpush1.msra.mxu0 0.0
    %486 = vmatprep.subr.mxu0 0.0
    %487 = vmatpush1.msra.mxu0 0.0
    %488 = vmatprep.subr.mxu0 0.0
    %489 = vmatpush1.msra.mxu0 0.0
    %490 = vmatprep.subr.mxu0 0.0
    %491 = vmatpush1.msra.mxu0 0.0
    %492 = vmatprep.subr.mxu0 0.0
    %493 = vmatpush1.msra.mxu0 0.0
    %494 = vmatprep.subr.mxu0 0.0
    %495 = vmatpush1.msra.mxu0 0.0
    %496 = vmatprep.subr.mxu0 0.0
    %497 = vmatpush1.msra.mxu0 0.0
    %498 = vmatprep.subr.mxu0 0.0
    %499 = vmatpush1.msra.mxu0 0.0
    %500 = vmatprep.subr.mxu0 0.0
    %501 = vmatpush1.msra.mxu0 0.0
    %502 = vmatprep.subr.mxu0 0.0
    %503 = vmatpush1.msra.mxu0 0.0
    %504 = vmatprep.mubr.f32.mxu0 0.0
    %505 = vmatmul.mubr.f32.gmra.mrb[0].mxu0 %v368
    %v506 = vpop.f32.mrb[0].mxu0
    %v507 = vadd.f32 0.0, %v506
    %v508 = vpop.f32.mrb[0].mxu0
    %509 = vdwg.mxu0
    %510 = vmatprep.subr.mxu0 0.0
    %511 = vmatpush1.msra.mxu0 %v51
    %512 = vmatprep.subr.mxu0 0.0
    %513 = vmatpush1.msra.mxu0 %v52
    %514 = vmatprep.subr.mxu0 0.0
    %515 = vmatpush1.msra.mxu0 %v53
    %516 = vmatprep.subr.mxu0 0.0
    %517 = vmatpush1.msra.mxu0 %v54
    %518 = vmatprep.subr.mxu0 0.0
    %519 = vmatpush1.msra.mxu0 0.0
    %520 = vmatprep.subr.mxu0 0.0
    %521 = vmatpush1.msra.mxu0 0.0
    %522 = vmatprep.subr.mxu0 0.0
    %523 = vmatpush1.msra.mxu0 0.0
    %524 = vmatprep.subr.mxu0 0.0
    %525 = vmatpush1.msra.mxu0 0.0
    %526 = vmatprep.subr.mxu0 0.0
    %527 = vmatpush1.msra.mxu0 0.0
    %528 = vmatprep.subr.mxu0 0.0
    %529 = vmatpush1.msra.mxu0 0.0
    %530 = vmatprep.subr.mxu0 0.0
    %531 = vmatpush1.msra.mxu0 0.0
    %532 = vmatprep.subr.mxu0 0.0
    %533 = vmatpush1.msra.mxu0 0.0
    %534 = vmatprep.subr.mxu0 0.0
    %535 = vmatpush1.msra.mxu0 0.0
    %536 = vmatprep.subr.mxu0 0.0
    %537 = vmatpush1.msra.mxu0 0.0
    %538 = vmatprep.subr.mxu0 0.0
    %539 = vmatpush1.msra.mxu0 0.0
    %540 = vmatprep.subr.mxu0 0.0
    %541 = vmatpush1.msra.mxu0 0.0
    %542 = vmatprep.subr.mxu0 0.0
    %543 = vmatpush1.msra.mxu0 0.0
    %544 = vmatprep.subr.mxu0 0.0
    %545 = vmatpush1.msra.mxu0 0.0
    %546 = vmatprep.subr.mxu0 0.0
    %547 = vmatpush1.msra.mxu0 0.0
    %548 = vmatprep.subr.mxu0 0.0
    %549 = vmatpush1.msra.mxu0 0.0
    %550 = vmatprep.subr.mxu0 0.0
    %551 = vmatpush1.msra.mxu0 0.0
    %552 = vmatprep.subr.mxu0 0.0
    %553 = vmatpush1.msra.mxu0 0.0
    %554 = vmatprep.subr.mxu0 0.0
    %555 = vmatpush1.msra.mxu0 0.0
    %556 = vmatprep.subr.mxu0 0.0
    %557 = vmatpush1.msra.mxu0 0.0
    %558 = vmatprep.subr.mxu0 0.0
    %559 = vmatpush1.msra.mxu0 0.0
    %560 = vmatprep.subr.mxu0 0.0
    %561 = vmatpush1.msra.mxu0 0.0
    %562 = vmatprep.subr.mxu0 0.0
    %563 = vmatpush1.msra.mxu0 0.0
    %564 = vmatprep.subr.mxu0 0.0
    %565 = vmatpush1.msra.mxu0 0.0
    %566 = vmatprep.subr.mxu0 0.0
    %567 = vmatpush1.msra.mxu0 0.0
    %568 = vmatprep.subr.mxu0 0.0
    %569 = vmatpush1.msra.mxu0 0.0
    %570 = vmatprep.subr.mxu0 0.0
    %571 = vmatpush1.msra.mxu0 0.0
    %572 = vmatprep.subr.mxu0 0.0
    %573 = vmatpush1.msra.mxu0 0.0
    %574 = vmatprep.mubr.f32.mxu0 0.0
    %575 = vmatmul.mubr.f32.gmra.mrb[0].mxu0 %v368
    %v576 = vpop.f32.mrb[0].mxu0
    %v577 = vadd.f32 0.0, %v576
    %v578 = vpop.f32.mrb[0].mxu0
    %579 = vdwg.mxu0
    %580 = vmatprep.subr.mxu0 0.0
    %581 = vmatpush1.msra.mxu0 %v55
    %582 = vmatprep.subr.mxu0 0.0
    %583 = vmatpush1.msra.mxu0 %v56
    %584 = vmatprep.subr.mxu0 0.0
    %585 = vmatpush1.msra.mxu0 %v57
    %586 = vmatprep.subr.mxu0 0.0
    %587 = vmatpush1.msra.mxu0 %v58
    %588 = vmatprep.subr.mxu0 0.0
    %589 = vmatpush1.msra.mxu0 0.0
    %590 = vmatprep.subr.mxu0 0.0
    %591 = vmatpush1.msra.mxu0 0.0
    %592 = vmatprep.subr.mxu0 0.0
    %593 = vmatpush1.msra.mxu0 0.0
    %594 = vmatprep.subr.mxu0 0.0
    %595 = vmatpush1.msra.mxu0 0.0
    %596 = vmatprep.subr.mxu0 0.0
    %597 = vmatpush1.msra.mxu0 0.0
    %598 = vmatprep.subr.mxu0 0.0
    %599 = vmatpush1.msra.mxu0 0.0
    %600 = vmatprep.subr.mxu0 0.0
    %601 = vmatpush1.msra.mxu0 0.0
    %602 = vmatprep.subr.mxu0 0.0
    %603 = vmatpush1.msra.mxu0 0.0
    %604 = vmatprep.subr.mxu0 0.0
    %605 = vmatpush1.msra.mxu0 0.0
    %606 = vmatprep.subr.mxu0 0.0
    %607 = vmatpush1.msra.mxu0 0.0
    %608 = vmatprep.subr.mxu0 0.0
    %609 = vmatpush1.msra.mxu0 0.0
    %610 = vmatprep.subr.mxu0 0.0
    %611 = vmatpush1.msra.mxu0 0.0
    %612 = vmatprep.subr.mxu0 0.0
    %613 = vmatpush1.msra.mxu0 0.0
    %614 = vmatprep.subr.mxu0 0.0
    %615 = vmatpush1.msra.mxu0 0.0
    %616 = vmatprep.subr.mxu0 0.0
    %617 = vmatpush1.msra.mxu0 0.0
    %618 = vmatprep.subr.mxu0 0.0
    %619 = vmatpush1.msra.mxu0 0.0
    %620 = vmatprep.subr.mxu0 0.0
    %621 = vmatpush1.msra.mxu0 0.0
    %622 = vmatprep.subr.mxu0 0.0
    %623 = vmatpush1.msra.mxu0 0.0
    %624 = vmatprep.subr.mxu0 0.0
    %625 = vmatpush1.msra.mxu0 0.0
    %626 = vmatprep.subr.mxu0 0.0
    %627 = vmatpush1.msra.mxu0 0.0
    %628 = vmatprep.subr.mxu0 0.0
    %629 = vmatpush1.msra.mxu0 0.0
    %630 = vmatprep.subr.mxu0 0.0
    %631 = vmatpush1.msra.mxu0 0.0
    %632 = vmatprep.subr.mxu0 0.0
    %633 = vmatpush1.msra.mxu0 0.0
    %634 = vmatprep.subr.mxu0 0.0
    %635 = vmatpush1.msra.mxu0 0.0
    %636 = vmatprep.subr.mxu0 0.0
    %637 = vmatpush1.msra.mxu0 0.0
    %638 = vmatprep.subr.mxu0 0.0
    %639 = vmatpush1.msra.mxu0 0.0
    %640 = vmatprep.subr.mxu0 0.0
    %641 = vmatpush1.msra.mxu0 0.0
    %642 = vmatprep.subr.mxu0 0.0
    %643 = vmatpush1.msra.mxu0 0.0
    %644 = vmatprep.mubr.f32.mxu0 0.0
    %645 = vmatmul.mubr.f32.gmra.mrb[0].mxu0 %v368
    %v646 = vpop.f32.mrb[0].mxu0
    %v647 = vadd.f32 0.0, %v646
    %v648 = vpop.f32.mrb[0].mxu0
    %649 = vdwg.mxu0
    %v651 = vsel %vm83, %v82, 0
    %653 = vmatprep.subr.mxu0 0.0
    %654 = vmatpush1.msra.mxu0 %v59
    %655 = vmatprep.subr.mxu0 0.0
    %656 = vmatpush1.msra.mxu0 %v60
    %657 = vmatprep.subr.mxu0 0.0
    %658 = vmatpush1.msra.mxu0 %v61
    %659 = vmatprep.subr.mxu0 0.0
    %660 = vmatpush1.msra.mxu0 %v62
    %661 = vmatprep.subr.mxu0 0.0
    %662 = vmatpush1.msra.mxu0 0.0
    %663 = vmatprep.subr.mxu0 0.0
    %664 = vmatpush1.msra.mxu0 0.0
    %665 = vmatprep.subr.mxu0 0.0
    %666 = vmatpush1.msra.mxu0 0.0
    %667 = vmatprep.subr.mxu0 0.0
    %668 = vmatpush1.msra.mxu0 0.0
    %669 = vmatprep.subr.mxu0 0.0
    %670 = vmatpush1.msra.mxu0 0.0
    %671 = vmatprep.subr.mxu0 0.0
    %672 = vmatpush1.msra.mxu0 0.0
    %673 = vmatprep.subr.mxu0 0.0
    %674 = vmatpush1.msra.mxu0 0.0
    %675 = vmatprep.subr.mxu0 0.0
    %676 = vmatpush1.msra.mxu0 0.0
    %677 = vmatprep.subr.mxu0 0.0
    %678 = vmatpush1.msra.mxu0 0.0
    %679 = vmatprep.subr.mxu0 0.0
    %680 = vmatpush1.msra.mxu0 0.0
    %681 = vmatprep.subr.mxu0 0.0
    %682 = vmatpush1.msra.mxu0 0.0
    %683 = vmatprep.subr.mxu0 0.0
    %684 = vmatpush1.msra.mxu0 0.0
    %685 = vmatprep.subr.mxu0 0.0
    %686 = vmatpush1.msra.mxu0 0.0
    %687 = vmatprep.subr.mxu0 0.0
    %688 = vmatpush1.msra.mxu0 0.0
    %689 = vmatprep.subr.mxu0 0.0
    %690 = vmatpush1.msra.mxu0 0.0
    %691 = vmatprep.subr.mxu0 0.0
    %692 = vmatpush1.msra.mxu0 0.0
    %693 = vmatprep.subr.mxu0 0.0
    %694 = vmatpush1.msra.mxu0 0.0
    %695 = vmatprep.subr.mxu0 0.0
    %696 = vmatpush1.msra.mxu0 0.0
    %697 = vmatprep.subr.mxu0 0.0
    %698 = vmatpush1.msra.mxu0 0.0
    %699 = vmatprep.subr.mxu0 0.0
    %700 = vmatpush1.msra.mxu0 0.0
    %701 = vmatprep.subr.mxu0 0.0
    %702 = vmatpush1.msra.mxu0 0.0
    %703 = vmatprep.subr.mxu0 0.0
    %704 = vmatpush1.msra.mxu0 0.0
    %705 = vmatprep.subr.mxu0 0.0
    %706 = vmatpush1.msra.mxu0 0.0
    %707 = vmatprep.subr.mxu0 0.0
    %708 = vmatpush1.msra.mxu0 0.0
    %709 = vmatprep.subr.mxu0 0.0
    %710 = vmatpush1.msra.mxu0 0.0
    %711 = vmatprep.subr.mxu0 0.0
    %712 = vmatpush1.msra.mxu0 0.0
    %713 = vmatprep.subr.mxu0 0.0
    %714 = vmatpush1.msra.mxu0 0.0
    %715 = vmatprep.subr.mxu0 0.0
    %716 = vmatpush1.msra.mxu0 0.0
    %717 = vmatprep.mubr.f32.mxu0 0.0
    %718 = vmatmul.mubr.f32.gmra.mrb[0].mxu0 %v651
    %v719 = vpop.f32.mrb[0].mxu0
    %v720 = vadd.f32 0.0, %v719
    %v721 = vpop.f32.mrb[0].mxu0
    %722 = vdwg.mxu0
    %723 = vmatprep.subr.mxu0 0.0
    %724 = vmatpush1.msra.mxu0 %v63
    %725 = vmatprep.subr.mxu0 0.0
    %726 = vmatpush1.msra.mxu0 %v64
    %727 = vmatprep.subr.mxu0 0.0
    %728 = vmatpush1.msra.mxu0 %v65
    %729 = vmatprep.subr.mxu0 0.0
    %730 = vmatpush1.msra.mxu0 %v66
    %731 = vmatprep.subr.mxu0 0.0
    %732 = vmatpush1.msra.mxu0 0.0
    %733 = vmatprep.subr.mxu0 0.0
    %734 = vmatpush1.msra.mxu0 0.0
    %735 = vmatprep.subr.mxu0 0.0
    %736 = vmatpush1.msra.mxu0 0.0
    %737 = vmatprep.subr.mxu0 0.0
    %738 = vmatpush1.msra.mxu0 0.0
    %739 = vmatprep.subr.mxu0 0.0
    %740 = vmatpush1.msra.mxu0 0.0
    %741 = vmatprep.subr.mxu0 0.0
    %742 = vmatpush1.msra.mxu0 0.0
    %743 = vmatprep.subr.mxu0 0.0
    %744 = vmatpush1.msra.mxu0 0.0
    %745 = vmatprep.subr.mxu0 0.0
    %746 = vmatpush1.msra.mxu0 0.0
    %747 = vmatprep.subr.mxu0 0.0
    %748 = vmatpush1.msra.mxu0 0.0
    %749 = vmatprep.subr.mxu0 0.0
    %750 = vmatpush1.msra.mxu0 0.0
    %751 = vmatprep.subr.mxu0 0.0
    %752 = vmatpush1.msra.mxu0 0.0
    %753 = vmatprep.subr.mxu0 0.0
    %754 = vmatpush1.msra.mxu0 0.0
    %755 = vmatprep.subr.mxu0 0.0
    %756 = vmatpush1.msra.mxu0 0.0
    %757 = vmatprep.subr.mxu0 0.0
    %758 = vmatpush1.msra.mxu0 0.0
    %759 = vmatprep.subr.mxu0 0.0
    %760 = vmatpush1.msra.mxu0 0.0
    %761 = vmatprep.subr.mxu0 0.0
    %762 = vmatpush1.msra.mxu0 0.0
    %763 = vmatprep.subr.mxu0 0.0
    %764 = vmatpush1.msra.mxu0 0.0
    %765 = vmatprep.subr.mxu0 0.0
    %766 = vmatpush1.msra.mxu0 0.0
    %767 = vmatprep.subr.mxu0 0.0
    %768 = vmatpush1.msra.mxu0 0.0
    %769 = vmatprep.subr.mxu0 0.0
    %770 = vmatpush1.msra.mxu0 0.0
    %771 = vmatprep.subr.mxu0 0.0
    %772 = vmatpush1.msra.mxu0 0.0
    %773 = vmatprep.subr.mxu0 0.0
    %774 = vmatpush1.msra.mxu0 0.0
    %775 = vmatprep.subr.mxu0 0.0
    %776 = vmatpush1.msra.mxu0 0.0
    %777 = vmatprep.subr.mxu0 0.0
    %778 = vmatpush1.msra.mxu0 0.0
    %779 = vmatprep.subr.mxu0 0.0
    %780 = vmatpush1.msra.mxu0 0.0
    %781 = vmatprep.subr.mxu0 0.0
    %782 = vmatpush1.msra.mxu0 0.0
    %783 = vmatprep.subr.mxu0 0.0
    %784 = vmatpush1.msra.mxu0 0.0
    %785 = vmatprep.subr.mxu0 0.0
    %786 = vmatpush1.msra.mxu0 0.0
    %787 = vmatprep.mubr.f32.mxu0 0.0
    %788 = vmatmul.mubr.f32.gmra.mrb[0].mxu0 %v651
    %v789 = vpop.f32.mrb[0].mxu0
    %v790 = vadd.f32 0.0, %v789
    %v791 = vpop.f32.mrb[0].mxu0
    %792 = vdwg.mxu0
    %793 = vmatprep.subr.mxu0 0.0
    %794 = vmatpush1.msra.mxu0 %v67
    %795 = vmatprep.subr.mxu0 0.0
    %796 = vmatpush1.msra.mxu0 %v68
    %797 = vmatprep.subr.mxu0 0.0
    %798 = vmatpush1.msra.mxu0 %v69
    %799 = vmatprep.subr.mxu0 0.0
    %800 = vmatpush1.msra.mxu0 %v70
    %801 = vmatprep.subr.mxu0 0.0
    %802 = vmatpush1.msra.mxu0 0.0
    %803 = vmatprep.subr.mxu0 0.0
    %804 = vmatpush1.msra.mxu0 0.0
    %805 = vmatprep.subr.mxu0 0.0
    %806 = vmatpush1.msra.mxu0 0.0
    %807 = vmatprep.subr.mxu0 0.0
    %808 = vmatpush1.msra.mxu0 0.0
    %809 = vmatprep.subr.mxu0 0.0
    %810 = vmatpush1.msra.mxu0 0.0
    %811 = vmatprep.subr.mxu0 0.0
    %812 = vmatpush1.msra.mxu0 0.0
    %813 = vmatprep.subr.mxu0 0.0
    %814 = vmatpush1.msra.mxu0 0.0
    %815 = vmatprep.subr.mxu0 0.0
    %816 = vmatpush1.msra.mxu0 0.0
    %817 = vmatprep.subr.mxu0 0.0
    %818 = vmatpush1.msra.mxu0 0.0
    %819 = vmatprep.subr.mxu0 0.0
    %820 = vmatpush1.msra.mxu0 0.0
    %821 = vmatprep.subr.mxu0 0.0
    %822 = vmatpush1.msra.mxu0 0.0
    %823 = vmatprep.subr.mxu0 0.0
    %824 = vmatpush1.msra.mxu0 0.0
    %825 = vmatprep.subr.mxu0 0.0
    %826 = vmatpush1.msra.mxu0 0.0
    %827 = vmatprep.subr.mxu0 0.0
    %828 = vmatpush1.msra.mxu0 0.0
    %829 = vmatprep.subr.mxu0 0.0
    %830 = vmatpush1.msra.mxu0 0.0
    %831 = vmatprep.subr.mxu0 0.0
    %832 = vmatpush1.msra.mxu0 0.0
    %833 = vmatprep.subr.mxu0 0.0
    %834 = vmatpush1.msra.mxu0 0.0
    %835 = vmatprep.subr.mxu0 0.0
    %836 = vmatpush1.msra.mxu0 0.0
    %837 = vmatprep.subr.mxu0 0.0
    %838 = vmatpush1.msra.mxu0 0.0
    %839 = vmatprep.subr.mxu0 0.0
    %840 = vmatpush1.msra.mxu0 0.0
    %841 = vmatprep.subr.mxu0 0.0
    %842 = vmatpush1.msra.mxu0 0.0
    %843 = vmatprep.subr.mxu0 0.0
    %844 = vmatpush1.msra.mxu0 0.0
    %845 = vmatprep.subr.mxu0 0.0
    %846 = vmatpush1.msra.mxu0 0.0
    %847 = vmatprep.subr.mxu0 0.0
    %848 = vmatpush1.msra.mxu0 0.0
    %849 = vmatprep.subr.mxu0 0.0
    %850 = vmatpush1.msra.mxu0 0.0
    %851 = vmatprep.subr.mxu0 0.0
    %852 = vmatpush1.msra.mxu0 0.0
    %853 = vmatprep.subr.mxu0 0.0
    %854 = vmatpush1.msra.mxu0 0.0
    %855 = vmatprep.subr.mxu0 0.0
    %856 = vmatpush1.msra.mxu0 0.0
    %857 = vmatprep.mubr.f32.mxu0 0.0
    %858 = vmatmul.mubr.f32.gmra.mrb[0].mxu0 %v651
    %v859 = vpop.f32.mrb[0].mxu0
    %v860 = vadd.f32 0.0, %v859
    %v861 = vpop.f32.mrb[0].mxu0
    %862 = vdwg.mxu0
    %863 = vmatprep.subr.mxu0 0.0
    %864 = vmatpush1.msra.mxu0 %v71
    %865 = vmatprep.subr.mxu0 0.0
    %866 = vmatpush1.msra.mxu0 %v72
    %867 = vmatprep.subr.mxu0 0.0
    %868 = vmatpush1.msra.mxu0 %v73
    %869 = vmatprep.subr.mxu0 0.0
    %870 = vmatpush1.msra.mxu0 %v74
    %871 = vmatprep.subr.mxu0 0.0
    %872 = vmatpush1.msra.mxu0 0.0
    %873 = vmatprep.subr.mxu0 0.0
    %874 = vmatpush1.msra.mxu0 0.0
    %875 = vmatprep.subr.mxu0 0.0
    %876 = vmatpush1.msra.mxu0 0.0
    %877 = vmatprep.subr.mxu0 0.0
    %878 = vmatpush1.msra.mxu0 0.0
    %879 = vmatprep.subr.mxu0 0.0
    %880 = vmatpush1.msra.mxu0 0.0
    %881 = vmatprep.subr.mxu0 0.0
    %882 = vmatpush1.msra.mxu0 0.0
    %883 = vmatprep.subr.mxu0 0.0
    %884 = vmatpush1.msra.mxu0 0.0
    %885 = vmatprep.subr.mxu0 0.0
    %886 = vmatpush1.msra.mxu0 0.0
    %887 = vmatprep.subr.mxu0 0.0
    %888 = vmatpush1.msra.mxu0 0.0
    %889 = vmatprep.subr.mxu0 0.0
    %890 = vmatpush1.msra.mxu0 0.0
    %891 = vmatprep.subr.mxu0 0.0
    %892 = vmatpush1.msra.mxu0 0.0
    %893 = vmatprep.subr.mxu0 0.0
    %894 = vmatpush1.msra.mxu0 0.0
    %895 = vmatprep.subr.mxu0 0.0
    %896 = vmatpush1.msra.mxu0 0.0
    %897 = vmatprep.subr.mxu0 0.0
    %898 = vmatpush1.msra.mxu0 0.0
    %899 = vmatprep.subr.mxu0 0.0
    %900 = vmatpush1.msra.mxu0 0.0
    %901 = vmatprep.subr.mxu0 0.0
    %902 = vmatpush1.msra.mxu0 0.0
    %903 = vmatprep.subr.mxu0 0.0
    %904 = vmatpush1.msra.mxu0 0.0
    %905 = vmatprep.subr.mxu0 0.0
    %906 = vmatpush1.msra.mxu0 0.0
    %907 = vmatprep.subr.mxu0 0.0
    %908 = vmatpush1.msra.mxu0 0.0
    %909 = vmatprep.subr.mxu0 0.0
    %910 = vmatpush1.msra.mxu0 0.0
    %911 = vmatprep.subr.mxu0 0.0
    %912 = vmatpush1.msra.mxu0 0.0
    %913 = vmatprep.subr.mxu0 0.0
    %914 = vmatpush1.msra.mxu0 0.0
    %915 = vmatprep.subr.mxu0 0.0
    %916 = vmatpush1.msra.mxu0 0.0
    %917 = vmatprep.subr.mxu0 0.0
    %918 = vmatpush1.msra.mxu0 0.0
    %919 = vmatprep.subr.mxu0 0.0
    %920 = vmatpush1.msra.mxu0 0.0
    %921 = vmatprep.subr.mxu0 0.0
    %922 = vmatpush1.msra.mxu0 0.0
    %923 = vmatprep.subr.mxu0 0.0
    %924 = vmatpush1.msra.mxu0 0.0
    %925 = vmatprep.subr.mxu0 0.0
    %926 = vmatpush1.msra.mxu0 0.0
    %927 = vmatprep.mubr.f32.mxu0 0.0
    %928 = vmatmul.mubr.f32.gmra.mrb[0].mxu0 %v651
    %v929 = vpop.f32.mrb[0].mxu0
    %v930 = vadd.f32 0.0, %v929
    %v931 = vpop.f32.mrb[0].mxu0
    %932 = vdwg.mxu0
    %vm933 = vcmask 64512
    %v935 = vsel %vm933, %v154, 0
    %v938 = vsel %vm933, %v437, 0
    %940 = vmatprep.subr.mxu0 0.0
    %941 = vmatpush1.xpose.msra.mxu0 %v938
    %942 = vmatprep.subr.mxu0 0.0
    %943 = vmatpush1.xpose.msra.mxu0 0.0
    %944 = vmatprep.subr.mxu0 0.0
    %945 = vmatpush1.xpose.msra.mxu0 0.0
    %946 = vmatprep.subr.mxu0 0.0
    %947 = vmatpush1.xpose.msra.mxu0 0.0
    %948 = vmatprep.subr.mxu0 0.0
    %949 = vmatpush1.xpose.msra.mxu0 0.0
    %950 = vmatprep.subr.mxu0 0.0
    %951 = vmatpush1.xpose.msra.mxu0 0.0
    %952 = vmatprep.subr.mxu0 0.0
    %953 = vmatpush1.xpose.msra.mxu0 0.0
    %954 = vmatprep.subr.mxu0 0.0
    %955 = vmatpush1.xpose.msra.mxu0 0.0
    %956 = vmatprep.subr.mxu0 0.0
    %957 = vmatpush1.xpose.msra.mxu0 0.0
    %958 = vmatprep.subr.mxu0 0.0
    %959 = vmatpush1.xpose.msra.mxu0 0.0
    %960 = vmatprep.subr.mxu0 0.0
    %961 = vmatpush1.xpose.msra.mxu0 0.0
    %962 = vmatprep.subr.mxu0 0.0
    %963 = vmatpush1.xpose.msra.mxu0 0.0
    %964 = vmatprep.subr.mxu0 0.0
    %965 = vmatpush1.xpose.msra.mxu0 0.0
    %966 = vmatprep.subr.mxu0 0.0
    %967 = vmatpush1.xpose.msra.mxu0 0.0
    %968 = vmatprep.subr.mxu0 0.0
    %969 = vmatpush1.xpose.msra.mxu0 0.0
    %970 = vmatprep.subr.mxu0 0.0
    %971 = vmatpush1.xpose.msra.mxu0 0.0
    %972 = vmatprep.subr.mxu0 0.0
    %973 = vmatpush1.xpose.msra.mxu0 0.0
    %974 = vmatprep.subr.mxu0 0.0
    %975 = vmatpush1.xpose.msra.mxu0 0.0
    %976 = vmatprep.subr.mxu0 0.0
    %977 = vmatpush1.xpose.msra.mxu0 0.0
    %978 = vmatprep.subr.mxu0 0.0
    %979 = vmatpush1.xpose.msra.mxu0 0.0
    %980 = vmatprep.subr.mxu0 0.0
    %981 = vmatpush1.xpose.msra.mxu0 0.0
    %982 = vmatprep.subr.mxu0 0.0
    %983 = vmatpush1.xpose.msra.mxu0 0.0
    %984 = vmatprep.subr.mxu0 0.0
    %985 = vmatpush1.xpose.msra.mxu0 0.0
    %986 = vmatprep.subr.mxu0 0.0
    %987 = vmatpush1.xpose.msra.mxu0 0.0
    %988 = vmatprep.subr.mxu0 0.0
    %989 = vmatpush1.xpose.msra.mxu0 0.0
    %990 = vmatprep.subr.mxu0 0.0
    %991 = vmatpush1.xpose.msra.mxu0 0.0
    %992 = vmatprep.subr.mxu0 0.0
    %993 = vmatpush1.xpose.msra.mxu0 0.0
    %994 = vmatprep.subr.mxu0 0.0
    %995 = vmatpush1.xpose.msra.mxu0 0.0
    %996 = vmatprep.subr.mxu0 0.0
    %997 = vmatpush1.xpose.msra.mxu0 0.0
    %998 = vmatprep.subr.mxu0 0.0
    %999 = vmatpush1.xpose.msra.mxu0 0.0
    %1000 = vmatprep.subr.mxu0 0.0
    %1001 = vmatpush1.xpose.msra.mxu0 0.0
    %1002 = vmatprep.subr.mxu0 0.0
    %1003 = vmatpush1.xpose.msra.mxu0 0.0
    %1004 = vmatprep.mubr.f32.mxu0 0.0
    %1005 = vmatmul.mubr.f32.gmra.mrb[0].mxu0 %v935
    %v1006 = vpop.f32.mrb[0].mxu0
    %v1007 = vadd.f32 0.0, %v1006
    %v1008 = vpop.f32.mrb[0].mxu0
    %1009 = vdwg.mxu0
    %v1011 = vsel %vm933, %v224, 0
    %v1014 = vsel %vm933, %v507, 0
    %1016 = vmatprep.subr.mxu0 0.0
    %1017 = vmatpush1.xpose.msra.mxu0 %v1014
    %1018 = vmatprep.subr.mxu0 0.0
    %1019 = vmatpush1.xpose.msra.mxu0 0.0
    %1020 = vmatprep.subr.mxu0 0.0
    %1021 = vmatpush1.xpose.msra.mxu0 0.0
    %1022 = vmatprep.subr.mxu0 0.0
    %1023 = vmatpush1.xpose.msra.mxu0 0.0
    %1024 = vmatprep.subr.mxu0 0.0
    %1025 = vmatpush1.xpose.msra.mxu0 0.0
    %1026 = vmatprep.subr.mxu0 0.0
    %1027 = vmatpush1.xpose.msra.mxu0 0.0
    %1028 = vmatprep.subr.mxu0 0.0
    %1029 = vmatpush1.xpose.msra.mxu0 0.0
    %1030 = vmatprep.subr.mxu0 0.0
    %1031 = vmatpush1.xpose.msra.mxu0 0.0
    %1032 = vmatprep.subr.mxu0 0.0
    %1033 = vmatpush1.xpose.msra.mxu0 0.0
    %1034 = vmatprep.subr.mxu0 0.0
    %1035 = vmatpush1.xpose.msra.mxu0 0.0
    %1036 = vmatprep.subr.mxu0 0.0
    %1037 = vmatpush1.xpose.msra.mxu0 0.0
    %1038 = vmatprep.subr.mxu0 0.0
    %1039 = vmatpush1.xpose.msra.mxu0 0.0
    %1040 = vmatprep.subr.mxu0 0.0
    %1041 = vmatpush1.xpose.msra.mxu0 0.0
    %1042 = vmatprep.subr.mxu0 0.0
    %1043 = vmatpush1.xpose.msra.mxu0 0.0
    %1044 = vmatprep.subr.mxu0 0.0
    %1045 = vmatpush1.xpose.msra.mxu0 0.0
    %1046 = vmatprep.subr.mxu0 0.0
    %1047 = vmatpush1.xpose.msra.mxu0 0.0
    %1048 = vmatprep.subr.mxu0 0.0
    %1049 = vmatpush1.xpose.msra.mxu0 0.0
    %1050 = vmatprep.subr.mxu0 0.0
    %1051 = vmatpush1.xpose.msra.mxu0 0.0
    %1052 = vmatprep.subr.mxu0 0.0
    %1053 = vmatpush1.xpose.msra.mxu0 0.0
    %1054 = vmatprep.subr.mxu0 0.0
    %1055 = vmatpush1.xpose.msra.mxu0 0.0
    %1056 = vmatprep.subr.mxu0 0.0
    %1057 = vmatpush1.xpose.msra.mxu0 0.0
    %1058 = vmatprep.subr.mxu0 0.0
    %1059 = vmatpush1.xpose.msra.mxu0 0.0
    %1060 = vmatprep.subr.mxu0 0.0
    %1061 = vmatpush1.xpose.msra.mxu0 0.0
    %1062 = vmatprep.subr.mxu0 0.0
    %1063 = vmatpush1.xpose.msra.mxu0 0.0
    %1064 = vmatprep.subr.mxu0 0.0
    %1065 = vmatpush1.xpose.msra.mxu0 0.0
    %1066 = vmatprep.subr.mxu0 0.0
    %1067 = vmatpush1.xpose.msra.mxu0 0.0
    %1068 = vmatprep.subr.mxu0 0.0
    %1069 = vmatpush1.xpose.msra.mxu0 0.0
    %1070 = vmatprep.subr.mxu0 0.0
    %1071 = vmatpush1.xpose.msra.mxu0 0.0
    %1072 = vmatprep.subr.mxu0 0.0
    %1073 = vmatpush1.xpose.msra.mxu0 0.0
    %1074 = vmatprep.subr.mxu0 0.0
    %1075 = vmatpush1.xpose.msra.mxu0 0.0
    %1076 = vmatprep.subr.mxu0 0.0
    %1077 = vmatpush1.xpose.msra.mxu0 0.0
    %1078 = vmatprep.subr.mxu0 0.0
    %1079 = vmatpush1.xpose.msra.mxu0 0.0
    %1080 = vmatprep.mubr.f32.mxu0 0.0
    %1081 = vmatmul.mubr.f32.gmra.mrb[0].mxu0 %v1011
    %v1082 = vpop.f32.mrb[0].mxu0
    %v1083 = vadd.f32 0.0, %v1082
    %v1084 = vpop.f32.mrb[0].mxu0
    %1085 = vdwg.mxu0
    %v1087 = vsel %vm933, %v294, 0
    %v1090 = vsel %vm933, %v577, 0
    %1092 = vmatprep.subr.mxu0 0.0
    %1093 = vmatpush1.xpose.msra.mxu0 %v1090
    %1094 = vmatprep.subr.mxu0 0.0
    %1095 = vmatpush1.xpose.msra.mxu0 0.0
    %1096 = vmatprep.subr.mxu0 0.0
    %1097 = vmatpush1.xpose.msra.mxu0 0.0
    %1098 = vmatprep.subr.mxu0 0.0
    %1099 = vmatpush1.xpose.msra.mxu0 0.0
    %1100 = vmatprep.subr.mxu0 0.0
    %1101 = vmatpush1.xpose.msra.mxu0 0.0
    %1102 = vmatprep.subr.mxu0 0.0
    %1103 = vmatpush1.xpose.msra.mxu0 0.0
    %1104 = vmatprep.subr.mxu0 0.0
    %1105 = vmatpush1.xpose.msra.mxu0 0.0
    %1106 = vmatprep.subr.mxu0 0.0
    %1107 = vmatpush1.xpose.msra.mxu0 0.0
    %1108 = vmatprep.subr.mxu0 0.0
    %1109 = vmatpush1.xpose.msra.mxu0 0.0
    %1110 = vmatprep.subr.mxu0 0.0
    %1111 = vmatpush1.xpose.msra.mxu0 0.0
    %1112 = vmatprep.subr.mxu0 0.0
    %1113 = vmatpush1.xpose.msra.mxu0 0.0
    %1114 = vmatprep.subr.mxu0 0.0
    %1115 = vmatpush1.xpose.msra.mxu0 0.0
    %1116 = vmatprep.subr.mxu0 0.0
    %1117 = vmatpush1.xpose.msra.mxu0 0.0
    %1118 = vmatprep.subr.mxu0 0.0
    %1119 = vmatpush1.xpose.msra.mxu0 0.0
    %1120 = vmatprep.subr.mxu0 0.0
    %1121 = vmatpush1.xpose.msra.mxu0 0.0
    %1122 = vmatprep.subr.mxu0 0.0
    %1123 = vmatpush1.xpose.msra.mxu0 0.0
    %1124 = vmatprep.subr.mxu0 0.0
    %1125 = vmatpush1.xpose.msra.mxu0 0.0
    %1126 = vmatprep.subr.mxu0 0.0
    %1127 = vmatpush1.xpose.msra.mxu0 0.0
    %1128 = vmatprep.subr.mxu0 0.0
    %1129 = vmatpush1.xpose.msra.mxu0 0.0
    %1130 = vmatprep.subr.mxu0 0.0
    %1131 = vmatpush1.xpose.msra.mxu0 0.0
    %1132 = vmatprep.subr.mxu0 0.0
    %1133 = vmatpush1.xpose.msra.mxu0 0.0
    %1134 = vmatprep.subr.mxu0 0.0
    %1135 = vmatpush1.xpose.msra.mxu0 0.0
    %1136 = vmatprep.subr.mxu0 0.0
    %1137 = vmatpush1.xpose.msra.mxu0 0.0
    %1138 = vmatprep.subr.mxu0 0.0
    %1139 = vmatpush1.xpose.msra.mxu0 0.0
    %1140 = vmatprep.subr.mxu0 0.0
    %1141 = vmatpush1.xpose.msra.mxu0 0.0
    %1142 = vmatprep.subr.mxu0 0.0
    %1143 = vmatpush1.xpose.msra.mxu0 0.0
    %1144 = vmatprep.subr.mxu0 0.0
    %1145 = vmatpush1.xpose.msra.mxu0 0.0
    %1146 = vmatprep.subr.mxu0 0.0
    %1147 = vmatpush1.xpose.msra.mxu0 0.0
    %1148 = vmatprep.subr.mxu0 0.0
    %1149 = vmatpush1.xpose.msra.mxu0 0.0
    %1150 = vmatprep.subr.mxu0 0.0
    %1151 = vmatpush1.xpose.msra.mxu0 0.0
    %1152 = vmatprep.subr.mxu0 0.0
    %1153 = vmatpush1.xpose.msra.mxu0 0.0
    %1154 = vmatprep.subr.mxu0 0.0
    %1155 = vmatpush1.xpose.msra.mxu0 0.0
    %1156 = vmatprep.mubr.f32.mxu0 0.0
    %1157 = vmatmul.mubr.f32.gmra.mrb[0].mxu0 %v1087
    %v1158 = vpop.f32.mrb[0].mxu0
    %v1159 = vadd.f32 0.0, %v1158
    %v1160 = vpop.f32.mrb[0].mxu0
    %1161 = vdwg.mxu0
    %v1163 = vsel %vm933, %v364, 0
    %v1166 = vsel %vm933, %v647, 0
    %1168 = vmatprep.subr.mxu0 0.0
    %1169 = vmatpush1.xpose.msra.mxu0 %v1166
    %1170 = vmatprep.subr.mxu0 0.0
    %1171 = vmatpush1.xpose.msra.mxu0 0.0
    %1172 = vmatprep.subr.mxu0 0.0
    %1173 = vmatpush1.xpose.msra.mxu0 0.0
    %1174 = vmatprep.subr.mxu0 0.0
    %1175 = vmatpush1.xpose.msra.mxu0 0.0
    %1176 = vmatprep.subr.mxu0 0.0
    %1177 = vmatpush1.xpose.msra.mxu0 0.0
    %1178 = vmatprep.subr.mxu0 0.0
    %1179 = vmatpush1.xpose.msra.mxu0 0.0
    %1180 = vmatprep.subr.mxu0 0.0
    %1181 = vmatpush1.xpose.msra.mxu0 0.0
    %1182 = vmatprep.subr.mxu0 0.0
    %1183 = vmatpush1.xpose.msra.mxu0 0.0
    %1184 = vmatprep.subr.mxu0 0.0
    %1185 = vmatpush1.xpose.msra.mxu0 0.0
    %1186 = vmatprep.subr.mxu0 0.0
    %1187 = vmatpush1.xpose.msra.mxu0 0.0
    %1188 = vmatprep.subr.mxu0 0.0
    %1189 = vmatpush1.xpose.msra.mxu0 0.0
    %1190 = vmatprep.subr.mxu0 0.0
    %1191 = vmatpush1.xpose.msra.mxu0 0.0
    %1192 = vmatprep.subr.mxu0 0.0
    %1193 = vmatpush1.xpose.msra.mxu0 0.0
    %1194 = vmatprep.subr.mxu0 0.0
    %1195 = vmatpush1.xpose.msra.mxu0 0.0
    %1196 = vmatprep.subr.mxu0 0.0
    %1197 = vmatpush1.xpose.msra.mxu0 0.0
    %1198 = vmatprep.subr.mxu0 0.0
    %1199 = vmatpush1.xpose.msra.mxu0 0.0
    %1200 = vmatprep.subr.mxu0 0.0
    %1201 = vmatpush1.xpose.msra.mxu0 0.0
    %1202 = vmatprep.subr.mxu0 0.0
    %1203 = vmatpush1.xpose.msra.mxu0 0.0
    %1204 = vmatprep.subr.mxu0 0.0
    %1205 = vmatpush1.xpose.msra.mxu0 0.0
    %1206 = vmatprep.subr.mxu0 0.0
    %1207 = vmatpush1.xpose.msra.mxu0 0.0
    %1208 = vmatprep.subr.mxu0 0.0
    %1209 = vmatpush1.xpose.msra.mxu0 0.0
    %1210 = vmatprep.subr.mxu0 0.0
    %1211 = vmatpush1.xpose.msra.mxu0 0.0
    %1212 = vmatprep.subr.mxu0 0.0
    %1213 = vmatpush1.xpose.msra.mxu0 0.0
    %1214 = vmatprep.subr.mxu0 0.0
    %1215 = vmatpush1.xpose.msra.mxu0 0.0
    %1216 = vmatprep.subr.mxu0 0.0
    %1217 = vmatpush1.xpose.msra.mxu0 0.0
    %1218 = vmatprep.subr.mxu0 0.0
    %1219 = vmatpush1.xpose.msra.mxu0 0.0
    %1220 = vmatprep.subr.mxu0 0.0
    %1221 = vmatpush1.xpose.msra.mxu0 0.0
    %1222 = vmatprep.subr.mxu0 0.0
    %1223 = vmatpush1.xpose.msra.mxu0 0.0
    %1224 = vmatprep.subr.mxu0 0.0
    %1225 = vmatpush1.xpose.msra.mxu0 0.0
    %1226 = vmatprep.subr.mxu0 0.0
    %1227 = vmatpush1.xpose.msra.mxu0 0.0
    %1228 = vmatprep.subr.mxu0 0.0
    %1229 = vmatpush1.xpose.msra.mxu0 0.0
    %1230 = vmatprep.subr.mxu0 0.0
    %1231 = vmatpush1.xpose.msra.mxu0 0.0
    %1232 = vmatprep.mubr.f32.mxu0 0.0
    %1233 = vmatmul.mubr.f32.gmra.mrb[0].mxu0 %v1163
    %v1234 = vpop.f32.mrb[0].mxu0
    %v1235 = vadd.f32 0.0, %v1234
    %v1236 = vpop.f32.mrb[0].mxu0
    %1237 = vdwg.mxu0
    %v1238 = vld [vmem:[%s1] sm:$0xff]
    %vm1239 = vcmp.eq.f32.partialorder %v1238, 0.0
    %v1240 = vsel %vm1239, 1, 0
    %vm1241 = vcmp.eq.s32.totalorder %v1240, 1
    %v1242 = vsel %vm1241, -1e-20, %v1007
    %v1243 = vsel %vm1241, -1e-20, %v1083
    %v1244 = vsel %vm1241, -1e-20, %v1159
    %v1245 = vsel %vm1241, -1e-20, %v1235
    %v1246 = vmul.f32 %v1242, 0.35355338
    %v1247 = vmul.f32 %v1243, 0.35355338
    %v1248 = vmul.f32 %v1244, 0.35355338
    %v1249 = vmul.f32 %v1245, 0.35355338
    %v1250 = vsel %vm933, %v1246, -inf
    %1251 = vmax.xlane.f32.xlu0 %v1250
    %v1252 = vpop.xlane.xlu0 %1251
    %v1253 = vsel %vm933, %v1247, -inf
    %1254 = vmax.xlane.f32.xlu0 %v1253
    %v1255 = vpop.xlane.xlu0 %1254
    %v1256 = vsel %vm933, %v1248, -inf
    %1257 = vmax.xlane.f32.xlu0 %v1256
    %v1258 = vpop.xlane.xlu0 %1257
    %v1259 = vsel %vm933, %v1249, -inf
    %1260 = vmax.xlane.f32.xlu0 %v1259
    %v1261 = vpop.xlane.xlu0 %1260
    %v1262 = vsub.f32 %v1246, %v1252
    %v1263 = vsub.f32 %v1247, %v1255
    %v1264 = vsub.f32 %v1248, %v1258
    %v1265 = vsub.f32 %v1249, %v1261
    %v1266 = vmul.f32 %v1262, 1.442695
    %v1267 = vpow.pop %v1266
    %v1268 = vmul.f32 %v1263, 1.442695
    %v1269 = vpow.pop %v1268
    %v1270 = vmul.f32 %v1264, 1.442695
    %v1271 = vpow.pop %v1270
    %v1272 = vmul.f32 %v1265, 1.442695
    %v1273 = vpow.pop %v1272
    %v1274 = vsel %vm933, %v1267, 0.0
    %1275 = vadd.xlane.f32.xlu0 %v1274
    %v1276 = vpop.xlane.xlu0 %1275
    %v1277 = vsel %vm933, %v1269, 0.0
    %1278 = vadd.xlane.f32.xlu0 %v1277
    %v1279 = vpop.xlane.xlu0 %1278
    %v1280 = vsel %vm933, %v1271, 0.0
    %1281 = vadd.xlane.f32.xlu0 %v1280
    %v1282 = vpop.xlane.xlu0 %1281
    %v1283 = vsel %vm933, %v1273, 0.0
    %1284 = vadd.xlane.f32.xlu0 %v1283
    %v1285 = vpop.xlane.xlu0 %1284
    %v1286 = vrcp.pop %v1276
    %v1287 = vrcp.pop %v1279
    %v1288 = vrcp.pop %v1282
    %v1289 = vrcp.pop %v1285
    %v1290 = vmul.f32 %v1267, %v1286
    %v1291 = vmul.f32 %v1269, %v1287
    %v1292 = vmul.f32 %v1271, %v1288
    %v1293 = vmul.f32 %v1273, %v1289
    %v1295 = vsel %vm933, %v1290, 0
    %1297 = vmatprep.subr.mxu0 0.0
    %1298 = vmatpush1.msra.mxu0 %v720
    %1299 = vmatprep.subr.mxu0 0.0
    %1300 = vmatpush1.msra.mxu0 0.0
    %1301 = vmatprep.subr.mxu0 0.0
    %1302 = vmatpush1.msra.mxu0 0.0
    %1303 = vmatprep.subr.mxu0 0.0
    %1304 = vmatpush1.msra.mxu0 0.0
    %1305 = vmatprep.subr.mxu0 0.0
    %1306 = vmatpush1.msra.mxu0 0.0
    %1307 = vmatprep.subr.mxu0 0.0
    %1308 = vmatpush1.msra.mxu0 0.0
    %1309 = vmatprep.subr.mxu0 0.0
    %1310 = vmatpush1.msra.mxu0 0.0
    %1311 = vmatprep.subr.mxu0 0.0
    %1312 = vmatpush1.msra.mxu0 0.0
    %1313 = vmatprep.subr.mxu0 0.0
    %1314 = vmatpush1.msra.mxu0 0.0
    %1315 = vmatprep.subr.mxu0 0.0
    %1316 = vmatpush1.msra.mxu0 0.0
    %1317 = vmatprep.subr.mxu0 0.0
    %1318 = vmatpush1.msra.mxu0 0.0
    %1319 = vmatprep.subr.mxu0 0.0
    %1320 = vmatpush1.msra.mxu0 0.0
    %1321 = vmatprep.subr.mxu0 0.0
    %1322 = vmatpush1.msra.mxu0 0.0
    %1323 = vmatprep.subr.mxu0 0.0
    %1324 = vmatpush1.msra.mxu0 0.0
    %1325 = vmatprep.subr.mxu0 0.0
    %1326 = vmatpush1.msra.mxu0 0.0
    %1327 = vmatprep.subr.mxu0 0.0
    %1328 = vmatpush1.msra.mxu0 0.0
    %1329 = vmatprep.subr.mxu0 0.0
    %1330 = vmatpush1.msra.mxu0 0.0
    %1331 = vmatprep.subr.mxu0 0.0
    %1332 = vmatpush1.msra.mxu0 0.0
    %1333 = vmatprep.subr.mxu0 0.0
    %1334 = vmatpush1.msra.mxu0 0.0
    %1335 = vmatprep.subr.mxu0 0.0
    %1336 = vmatpush1.msra.mxu0 0.0
    %1337 = vmatprep.subr.mxu0 0.0
    %1338 = vmatpush1.msra.mxu0 0.0
    %1339 = vmatprep.subr.mxu0 0.0
    %1340 = vmatpush1.msra.mxu0 0.0
    %1341 = vmatprep.subr.mxu0 0.0
    %1342 = vmatpush1.msra.mxu0 0.0
    %1343 = vmatprep.subr.mxu0 0.0
    %1344 = vmatpush1.msra.mxu0 0.0
    %1345 = vmatprep.subr.mxu0 0.0
    %1346 = vmatpush1.msra.mxu0 0.0
    %1347 = vmatprep.subr.mxu0 0.0
    %1348 = vmatpush1.msra.mxu0 0.0
    %1349 = vmatprep.subr.mxu0 0.0
    %1350 = vmatpush1.msra.mxu0 0.0
    %1351 = vmatprep.subr.mxu0 0.0
    %1352 = vmatpush1.msra.mxu0 0.0
    %1353 = vmatprep.subr.mxu0 0.0
    %1354 = vmatpush1.msra.mxu0 0.0
    %1355 = vmatprep.subr.mxu0 0.0
    %1356 = vmatpush1.msra.mxu0 0.0
    %1357 = vmatprep.subr.mxu0 0.0
    %1358 = vmatpush1.msra.mxu0 0.0
    %1359 = vmatprep.subr.mxu0 0.0
    %1360 = vmatpush1.msra.mxu0 0.0
    %1361 = vmatprep.mubr.f32.mxu0 0.0
    %1362 = vmatmul.mubr.f32.gmra.mrb[0].mxu0 %v1295
    %v1363 = vpop.f32.mrb[0].mxu0
    %v1364 = vadd.f32 0.0, %v1363
    %v1365 = vpop.f32.mrb[0].mxu0
    %1366 = vdwg.mxu0
    %v1368 = vsel %vm933, %v1291, 0
    %1370 = vmatprep.subr.mxu0 0.0
    %1371 = vmatpush1.msra.mxu0 %v790
    %1372 = vmatprep.subr.mxu0 0.0
    %1373 = vmatpush1.msra.mxu0 0.0
    %1374 = vmatprep.subr.mxu0 0.0
    %1375 = vmatpush1.msra.mxu0 0.0
    %1376 = vmatprep.subr.mxu0 0.0
    %1377 = vmatpush1.msra.mxu0 0.0
    %1378 = vmatprep.subr.mxu0 0.0
    %1379 = vmatpush1.msra.mxu0 0.0
    %1380 = vmatprep.subr.mxu0 0.0
    %1381 = vmatpush1.msra.mxu0 0.0
    %1382 = vmatprep.subr.mxu0 0.0
    %1383 = vmatpush1.msra.mxu0 0.0
    %1384 = vmatprep.subr.mxu0 0.0
    %1385 = vmatpush1.msra.mxu0 0.0
    %1386 = vmatprep.subr.mxu0 0.0
    %1387 = vmatpush1.msra.mxu0 0.0
    %1388 = vmatprep.subr.mxu0 0.0
    %1389 = vmatpush1.msra.mxu0 0.0
    %1390 = vmatprep.subr.mxu0 0.0
    %1391 = vmatpush1.msra.mxu0 0.0
    %1392 = vmatprep.subr.mxu0 0.0
    %1393 = vmatpush1.msra.mxu0 0.0
    %1394 = vmatprep.subr.mxu0 0.0
    %1395 = vmatpush1.msra.mxu0 0.0
    %1396 = vmatprep.subr.mxu0 0.0
    %1397 = vmatpush1.msra.mxu0 0.0
    %1398 = vmatprep.subr.mxu0 0.0
    %1399 = vmatpush1.msra.mxu0 0.0
    %1400 = vmatprep.subr.mxu0 0.0
    %1401 = vmatpush1.msra.mxu0 0.0
    %1402 = vmatprep.subr.mxu0 0.0
    %1403 = vmatpush1.msra.mxu0 0.0
    %1404 = vmatprep.subr.mxu0 0.0
    %1405 = vmatpush1.msra.mxu0 0.0
    %1406 = vmatprep.subr.mxu0 0.0
    %1407 = vmatpush1.msra.mxu0 0.0
    %1408 = vmatprep.subr.mxu0 0.0
    %1409 = vmatpush1.msra.mxu0 0.0
    %1410 = vmatprep.subr.mxu0 0.0
    %1411 = vmatpush1.msra.mxu0 0.0
    %1412 = vmatprep.subr.mxu0 0.0
    %1413 = vmatpush1.msra.mxu0 0.0
    %1414 = vmatprep.subr.mxu0 0.0
    %1415 = vmatpush1.msra.mxu0 0.0
    %1416 = vmatprep.subr.mxu0 0.0
    %1417 = vmatpush1.msra.mxu0 0.0
    %1418 = vmatprep.subr.mxu0 0.0
    %1419 = vmatpush1.msra.mxu0 0.0
    %1420 = vmatprep.subr.mxu0 0.0
    %1421 = vmatpush1.msra.mxu0 0.0
    %1422 = vmatprep.subr.mxu0 0.0
    %1423 = vmatpush1.msra.mxu0 0.0
    %1424 = vmatprep.subr.mxu0 0.0
    %1425 = vmatpush1.msra.mxu0 0.0
    %1426 = vmatprep.subr.mxu0 0.0
    %1427 = vmatpush1.msra.mxu0 0.0
    %1428 = vmatprep.subr.mxu0 0.0
    %1429 = vmatpush1.msra.mxu0 0.0
    %1430 = vmatprep.subr.mxu0 0.0
    %1431 = vmatpush1.msra.mxu0 0.0
    %1432 = vmatprep.subr.mxu0 0.0
    %1433 = vmatpush1.msra.mxu0 0.0
    %1434 = vmatprep.mubr.f32.mxu0 0.0
    %1435 = vmatmul.mubr.f32.gmra.mrb[0].mxu0 %v1368
    %v1436 = vpop.f32.mrb[0].mxu0
    %v1437 = vadd.f32 0.0, %v1436
    %v1438 = vpop.f32.mrb[0].mxu0
    %1439 = vdwg.mxu0
    %v1441 = vsel %vm933, %v1292, 0
    %1443 = vmatprep.subr.mxu0 0.0
    %1444 = vmatpush1.msra.mxu0 %v860
    %1445 = vmatprep.subr.mxu0 0.0
    %1446 = vmatpush1.msra.mxu0 0.0
    %1447 = vmatprep.subr.mxu0 0.0
    %1448 = vmatpush1.msra.mxu0 0.0
    %1449 = vmatprep.subr.mxu0 0.0
    %1450 = vmatpush1.msra.mxu0 0.0
    %1451 = vmatprep.subr.mxu0 0.0
    %1452 = vmatpush1.msra.mxu0 0.0
    %1453 = vmatprep.subr.mxu0 0.0
    %1454 = vmatpush1.msra.mxu0 0.0
    %1455 = vmatprep.subr.mxu0 0.0
    %1456 = vmatpush1.msra.mxu0 0.0
    %1457 = vmatprep.subr.mxu0 0.0
    %1458 = vmatpush1.msra.mxu0 0.0
    %1459 = vmatprep.subr.mxu0 0.0
    %1460 = vmatpush1.msra.mxu0 0.0
    %1461 = vmatprep.subr.mxu0 0.0
    %1462 = vmatpush1.msra.mxu0 0.0
    %1463 = vmatprep.subr.mxu0 0.0
    %1464 = vmatpush1.msra.mxu0 0.0
    %1465 = vmatprep.subr.mxu0 0.0
    %1466 = vmatpush1.msra.mxu0 0.0
    %1467 = vmatprep.subr.mxu0 0.0
    %1468 = vmatpush1.msra.mxu0 0.0
    %1469 = vmatprep.subr.mxu0 0.0
    %1470 = vmatpush1.msra.mxu0 0.0
    %1471 = vmatprep.subr.mxu0 0.0
    %1472 = vmatpush1.msra.mxu0 0.0
    %1473 = vmatprep.subr.mxu0 0.0
    %1474 = vmatpush1.msra.mxu0 0.0
    %1475 = vmatprep.subr.mxu0 0.0
    %1476 = vmatpush1.msra.mxu0 0.0
    %1477 = vmatprep.subr.mxu0 0.0
    %1478 = vmatpush1.msra.mxu0 0.0
    %1479 = vmatprep.subr.mxu0 0.0
    %1480 = vmatpush1.msra.mxu0 0.0
    %1481 = vmatprep.subr.mxu0 0.0
    %1482 = vmatpush1.msra.mxu0 0.0
    %1483 = vmatprep.subr.mxu0 0.0
    %1484 = vmatpush1.msra.mxu0 0.0
    %1485 = vmatprep.subr.mxu0 0.0
    %1486 = vmatpush1.msra.mxu0 0.0
    %1487 = vmatprep.subr.mxu0 0.0
    %1488 = vmatpush1.msra.mxu0 0.0
    %1489 = vmatprep.subr.mxu0 0.0
    %1490 = vmatpush1.msra.mxu0 0.0
    %1491 = vmatprep.subr.mxu0 0.0
    %1492 = vmatpush1.msra.mxu0 0.0
    %1493 = vmatprep.subr.mxu0 0.0
    %1494 = vmatpush1.msra.mxu0 0.0
    %1495 = vmatprep.subr.mxu0 0.0
    %1496 = vmatpush1.msra.mxu0 0.0
    %1497 = vmatprep.subr.mxu0 0.0
    %1498 = vmatpush1.msra.mxu0 0.0
    %1499 = vmatprep.subr.mxu0 0.0
    %1500 = vmatpush1.msra.mxu0 0.0
    %1501 = vmatprep.subr.mxu0 0.0
    %1502 = vmatpush1.msra.mxu0 0.0
    %1503 = vmatprep.subr.mxu0 0.0
    %1504 = vmatpush1.msra.mxu0 0.0
    %1505 = vmatprep.subr.mxu0 0.0
    %1506 = vmatpush1.msra.mxu0 0.0
    %1507 = vmatprep.mubr.f32.mxu0 0.0
    %1508 = vmatmul.mubr.f32.gmra.mrb[0].mxu0 %v1441
    %v1509 = vpop.f32.mrb[0].mxu0
    %v1510 = vadd.f32 0.0, %v1509
    %v1511 = vpop.f32.mrb[0].mxu0
    %1512 = vdwg.mxu0
    %v1514 = vsel %vm933, %v1293, 0
    %1516 = vmatprep.subr.mxu0 0.0
    %1517 = vmatpush1.msra.mxu0 %v930
    %1518 = vmatprep.subr.mxu0 0.0
    %1519 = vmatpush1.msra.mxu0 0.0
    %1520 = vmatprep.subr.mxu0 0.0
    %1521 = vmatpush1.msra.mxu0 0.0
    %1522 = vmatprep.subr.mxu0 0.0
    %1523 = vmatpush1.msra.mxu0 0.0
    %1524 = vmatprep.subr.mxu0 0.0
    %1525 = vmatpush1.msra.mxu0 0.0
    %1526 = vmatprep.subr.mxu0 0.0
    %1527 = vmatpush1.msra.mxu0 0.0
    %1528 = vmatprep.subr.mxu0 0.0
    %1529 = vmatpush1.msra.mxu0 0.0
    %1530 = vmatprep.subr.mxu0 0.0
    %1531 = vmatpush1.msra.mxu0 0.0
    %1532 = vmatprep.subr.mxu0 0.0
    %1533 = vmatpush1.msra.mxu0 0.0
    %1534 = vmatprep.subr.mxu0 0.0
    %1535 = vmatpush1.msra.mxu0 0.0
    %1536 = vmatprep.subr.mxu0 0.0
    %1537 = vmatpush1.msra.mxu0 0.0
    %1538 = vmatprep.subr.mxu0 0.0
    %1539 = vmatpush1.msra.mxu0 0.0
    %1540 = vmatprep.subr.mxu0 0.0
    %1541 = vmatpush1.msra.mxu0 0.0
    %1542 = vmatprep.subr.mxu0 0.0
    %1543 = vmatpush1.msra.mxu0 0.0
    %1544 = vmatprep.subr.mxu0 0.0
    %1545 = vmatpush1.msra.mxu0 0.0
    %1546 = vmatprep.subr.mxu0 0.0
    %1547 = vmatpush1.msra.mxu0 0.0
    %1548 = vmatprep.subr.mxu0 0.0
    %1549 = vmatpush1.msra.mxu0 0.0
    %1550 = vmatprep.subr.mxu0 0.0
    %1551 = vmatpush1.msra.mxu0 0.0
    %1552 = vmatprep.subr.mxu0 0.0
    %1553 = vmatpush1.msra.mxu0 0.0
    %1554 = vmatprep.subr.mxu0 0.0
    %1555 = vmatpush1.msra.mxu0 0.0
    %1556 = vmatprep.subr.mxu0 0.0
    %1557 = vmatpush1.msra.mxu0 0.0
    %1558 = vmatprep.subr.mxu0 0.0
    %1559 = vmatpush1.msra.mxu0 0.0
    %1560 = vmatprep.subr.mxu0 0.0
    %1561 = vmatpush1.msra.mxu0 0.0
    %1562 = vmatprep.subr.mxu0 0.0
    %1563 = vmatpush1.msra.mxu0 0.0
    %1564 = vmatprep.subr.mxu0 0.0
    %1565 = vmatpush1.msra.mxu0 0.0
    %1566 = vmatprep.subr.mxu0 0.0
    %1567 = vmatpush1.msra.mxu0 0.0
    %1568 = vmatprep.subr.mxu0 0.0
    %1569 = vmatpush1.msra.mxu0 0.0
    %1570 = vmatprep.subr.mxu0 0.0
    %1571 = vmatpush1.msra.mxu0 0.0
    %1572 = vmatprep.subr.mxu0 0.0
    %1573 = vmatpush1.msra.mxu0 0.0
    %1574 = vmatprep.subr.mxu0 0.0
    %1575 = vmatpush1.msra.mxu0 0.0
    %1576 = vmatprep.subr.mxu0 0.0
    %1577 = vmatpush1.msra.mxu0 0.0
    %1578 = vmatprep.subr.mxu0 0.0
    %1579 = vmatpush1.msra.mxu0 0.0
    %1580 = vmatprep.mubr.f32.mxu0 0.0
    %1581 = vmatmul.mubr.f32.gmra.mrb[0].mxu0 %v1514
    %v1582 = vpop.f32.mrb[0].mxu0
    %v1583 = vadd.f32 0.0, %v1582
    %v1584 = vpop.f32.mrb[0].mxu0
    %1585 = vdwg.mxu0
    %v1587 = vsel %vm933, %v1364, 0
    %1589 = vmatprep.subr.mxu0 0.0
    %1590 = vmatpush1.msra.mxu0 %v75
    %1591 = vmatprep.subr.mxu0 0.0
    %1592 = vmatpush1.msra.mxu0 0.0
    %1593 = vmatprep.subr.mxu0 0.0
    %1594 = vmatpush1.msra.mxu0 0.0
    %1595 = vmatprep.subr.mxu0 0.0
    %1596 = vmatpush1.msra.mxu0 0.0
    %1597 = vmatprep.subr.mxu0 0.0
    %1598 = vmatpush1.msra.mxu0 0.0
    %1599 = vmatprep.subr.mxu0 0.0
    %1600 = vmatpush1.msra.mxu0 0.0
    %1601 = vmatprep.subr.mxu0 0.0
    %1602 = vmatpush1.msra.mxu0 0.0
    %1603 = vmatprep.subr.mxu0 0.0
    %1604 = vmatpush1.msra.mxu0 0.0
    %1605 = vmatprep.subr.mxu0 0.0
    %1606 = vmatpush1.msra.mxu0 0.0
    %1607 = vmatprep.subr.mxu0 0.0
    %1608 = vmatpush1.msra.mxu0 0.0
    %1609 = vmatprep.subr.mxu0 0.0
    %1610 = vmatpush1.msra.mxu0 0.0
    %1611 = vmatprep.subr.mxu0 0.0
    %1612 = vmatpush1.msra.mxu0 0.0
    %1613 = vmatprep.subr.mxu0 0.0
    %1614 = vmatpush1.msra.mxu0 0.0
    %1615 = vmatprep.subr.mxu0 0.0
    %1616 = vmatpush1.msra.mxu0 0.0
    %1617 = vmatprep.subr.mxu0 0.0
    %1618 = vmatpush1.msra.mxu0 0.0
    %1619 = vmatprep.subr.mxu0 0.0
    %1620 = vmatpush1.msra.mxu0 0.0
    %1621 = vmatprep.subr.mxu0 0.0
    %1622 = vmatpush1.msra.mxu0 0.0
    %1623 = vmatprep.subr.mxu0 0.0
    %1624 = vmatpush1.msra.mxu0 0.0
    %1625 = vmatprep.subr.mxu0 0.0
    %1626 = vmatpush1.msra.mxu0 0.0
    %1627 = vmatprep.subr.mxu0 0.0
    %1628 = vmatpush1.msra.mxu0 0.0
    %1629 = vmatprep.subr.mxu0 0.0
    %1630 = vmatpush1.msra.mxu0 0.0
    %1631 = vmatprep.subr.mxu0 0.0
    %1632 = vmatpush1.msra.mxu0 0.0
    %1633 = vmatprep.subr.mxu0 0.0
    %1634 = vmatpush1.msra.mxu0 0.0
    %1635 = vmatprep.subr.mxu0 0.0
    %1636 = vmatpush1.msra.mxu0 0.0
    %1637 = vmatprep.subr.mxu0 0.0
    %1638 = vmatpush1.msra.mxu0 0.0
    %1639 = vmatprep.subr.mxu0 0.0
    %1640 = vmatpush1.msra.mxu0 0.0
    %1641 = vmatprep.subr.mxu0 0.0
    %1642 = vmatpush1.msra.mxu0 0.0
    %1643 = vmatprep.subr.mxu0 0.0
    %1644 = vmatpush1.msra.mxu0 0.0
    %1645 = vmatprep.subr.mxu0 0.0
    %1646 = vmatpush1.msra.mxu0 0.0
    %1647 = vmatprep.subr.mxu0 0.0
    %1648 = vmatpush1.msra.mxu0 0.0
    %1649 = vmatprep.subr.mxu0 0.0
    %1650 = vmatpush1.msra.mxu0 0.0
    %1651 = vmatprep.subr.mxu0 0.0
    %1652 = vmatpush1.msra.mxu0 0.0
    %1653 = vmatprep.mubr.f32.mxu0 0.0
    %1654 = vmatmul.mubr.f32.gmra.mrb[0].mxu0 %v1587
    %v1655 = vpop.f32.mrb[0].mxu0
    %v1656 = vadd.f32 0.0, %v1655
    %v1657 = vpop.f32.mrb[0].mxu0
    %1658 = vdwg.mxu0
    %v1660 = vsel %vm933, %v1437, 0
    %1662 = vmatprep.subr.mxu0 0.0
    %1663 = vmatpush1.msra.mxu0 %v76
    %1664 = vmatprep.subr.mxu0 0.0
    %1665 = vmatpush1.msra.mxu0 0.0
    %1666 = vmatprep.subr.mxu0 0.0
    %1667 = vmatpush1.msra.mxu0 0.0
    %1668 = vmatprep.subr.mxu0 0.0
    %1669 = vmatpush1.msra.mxu0 0.0
    %1670 = vmatprep.subr.mxu0 0.0
    %1671 = vmatpush1.msra.mxu0 0.0
    %1672 = vmatprep.subr.mxu0 0.0
    %1673 = vmatpush1.msra.mxu0 0.0
    %1674 = vmatprep.subr.mxu0 0.0
    %1675 = vmatpush1.msra.mxu0 0.0
    %1676 = vmatprep.subr.mxu0 0.0
    %1677 = vmatpush1.msra.mxu0 0.0
    %1678 = vmatprep.subr.mxu0 0.0
    %1679 = vmatpush1.msra.mxu0 0.0
    %1680 = vmatprep.subr.mxu0 0.0
    %1681 = vmatpush1.msra.mxu0 0.0
    %1682 = vmatprep.subr.mxu0 0.0
    %1683 = vmatpush1.msra.mxu0 0.0
    %1684 = vmatprep.subr.mxu0 0.0
    %1685 = vmatpush1.msra.mxu0 0.0
    %1686 = vmatprep.subr.mxu0 0.0
    %1687 = vmatpush1.msra.mxu0 0.0
    %1688 = vmatprep.subr.mxu0 0.0
    %1689 = vmatpush1.msra.mxu0 0.0
    %1690 = vmatprep.subr.mxu0 0.0
    %1691 = vmatpush1.msra.mxu0 0.0
    %1692 = vmatprep.subr.mxu0 0.0
    %1693 = vmatpush1.msra.mxu0 0.0
    %1694 = vmatprep.subr.mxu0 0.0
    %1695 = vmatpush1.msra.mxu0 0.0
    %1696 = vmatprep.subr.mxu0 0.0
    %1697 = vmatpush1.msra.mxu0 0.0
    %1698 = vmatprep.subr.mxu0 0.0
    %1699 = vmatpush1.msra.mxu0 0.0
    %1700 = vmatprep.subr.mxu0 0.0
    %1701 = vmatpush1.msra.mxu0 0.0
    %1702 = vmatprep.subr.mxu0 0.0
    %1703 = vmatpush1.msra.mxu0 0.0
    %1704 = vmatprep.subr.mxu0 0.0
    %1705 = vmatpush1.msra.mxu0 0.0
    %1706 = vmatprep.subr.mxu0 0.0
    %1707 = vmatpush1.msra.mxu0 0.0
    %1708 = vmatprep.subr.mxu0 0.0
    %1709 = vmatpush1.msra.mxu0 0.0
    %1710 = vmatprep.subr.mxu0 0.0
    %1711 = vmatpush1.msra.mxu0 0.0
    %1712 = vmatprep.subr.mxu0 0.0
    %1713 = vmatpush1.msra.mxu0 0.0
    %1714 = vmatprep.subr.mxu0 0.0
    %1715 = vmatpush1.msra.mxu0 0.0
    %1716 = vmatprep.subr.mxu0 0.0
    %1717 = vmatpush1.msra.mxu0 0.0
    %1718 = vmatprep.subr.mxu0 0.0
    %1719 = vmatpush1.msra.mxu0 0.0
    %1720 = vmatprep.subr.mxu0 0.0
    %1721 = vmatpush1.msra.mxu0 0.0
    %1722 = vmatprep.subr.mxu0 0.0
    %1723 = vmatpush1.msra.mxu0 0.0
    %1724 = vmatprep.subr.mxu0 0.0
    %1725 = vmatpush1.msra.mxu0 0.0
    %1726 = vmatprep.mubr.f32.mxu0 0.0
    %1727 = vmatmul.mubr.f32.gmra.mrb[0].mxu0 %v1660
    %v1728 = vpop.f32.mrb[0].mxu0
    %v1729 = vadd.f32 0.0, %v1728
    %v1730 = vpop.f32.mrb[0].mxu0
    %1731 = vdwg.mxu0
    %v1733 = vsel %vm933, %v1510, 0
    %1735 = vmatprep.subr.mxu0 0.0
    %1736 = vmatpush1.msra.mxu0 %v77
    %1737 = vmatprep.subr.mxu0 0.0
    %1738 = vmatpush1.msra.mxu0 0.0
    %1739 = vmatprep.subr.mxu0 0.0
    %1740 = vmatpush1.msra.mxu0 0.0
    %1741 = vmatprep.subr.mxu0 0.0
    %1742 = vmatpush1.msra.mxu0 0.0
    %1743 = vmatprep.subr.mxu0 0.0
    %1744 = vmatpush1.msra.mxu0 0.0
    %1745 = vmatprep.subr.mxu0 0.0
    %1746 = vmatpush1.msra.mxu0 0.0
    %1747 = vmatprep.subr.mxu0 0.0
    %1748 = vmatpush1.msra.mxu0 0.0
    %1749 = vmatprep.subr.mxu0 0.0
    %1750 = vmatpush1.msra.mxu0 0.0
    %1751 = vmatprep.subr.mxu0 0.0
    %1752 = vmatpush1.msra.mxu0 0.0
    %1753 = vmatprep.subr.mxu0 0.0
    %1754 = vmatpush1.msra.mxu0 0.0
    %1755 = vmatprep.subr.mxu0 0.0
    %1756 = vmatpush1.msra.mxu0 0.0
    %1757 = vmatprep.subr.mxu0 0.0
    %1758 = vmatpush1.msra.mxu0 0.0
    %1759 = vmatprep.subr.mxu0 0.0
    %1760 = vmatpush1.msra.mxu0 0.0
    %1761 = vmatprep.subr.mxu0 0.0
    %1762 = vmatpush1.msra.mxu0 0.0
    %1763 = vmatprep.subr.mxu0 0.0
    %1764 = vmatpush1.msra.mxu0 0.0
    %1765 = vmatprep.subr.mxu0 0.0
    %1766 = vmatpush1.msra.mxu0 0.0
    %1767 = vmatprep.subr.mxu0 0.0
    %1768 = vmatpush1.msra.mxu0 0.0
    %1769 = vmatprep.subr.mxu0 0.0
    %1770 = vmatpush1.msra.mxu0 0.0
    %1771 = vmatprep.subr.mxu0 0.0
    %1772 = vmatpush1.msra.mxu0 0.0
    %1773 = vmatprep.subr.mxu0 0.0
    %1774 = vmatpush1.msra.mxu0 0.0
    %1775 = vmatprep.subr.mxu0 0.0
    %1776 = vmatpush1.msra.mxu0 0.0
    %1777 = vmatprep.subr.mxu0 0.0
    %1778 = vmatpush1.msra.mxu0 0.0
    %1779 = vmatprep.subr.mxu0 0.0
    %1780 = vmatpush1.msra.mxu0 0.0
    %1781 = vmatprep.subr.mxu0 0.0
    %1782 = vmatpush1.msra.mxu0 0.0
    %1783 = vmatprep.subr.mxu0 0.0
    %1784 = vmatpush1.msra.mxu0 0.0
    %1785 = vmatprep.subr.mxu0 0.0
    %1786 = vmatpush1.msra.mxu0 0.0
    %1787 = vmatprep.subr.mxu0 0.0
    %1788 = vmatpush1.msra.mxu0 0.0
    %1789 = vmatprep.subr.mxu0 0.0
    %1790 = vmatpush1.msra.mxu0 0.0
    %1791 = vmatprep.subr.mxu0 0.0
    %1792 = vmatpush1.msra.mxu0 0.0
    %1793 = vmatprep.subr.mxu0 0.0
    %1794 = vmatpush1.msra.mxu0 0.0
    %1795 = vmatprep.subr.mxu0 0.0
    %1796 = vmatpush1.msra.mxu0 0.0
    %1797 = vmatprep.subr.mxu0 0.0
    %1798 = vmatpush1.msra.mxu0 0.0
    %1799 = vmatprep.mubr.f32.mxu0 0.0
    %1800 = vmatmul.mubr.f32.gmra.mrb[0].mxu0 %v1733
    %v1801 = vpop.f32.mrb[0].mxu0
    %v1802 = vadd.f32 0.0, %v1801
    %v1803 = vpop.f32.mrb[0].mxu0
    %1804 = vdwg.mxu0
    %v1806 = vsel %vm933, %v1583, 0
    %1808 = vmatprep.subr.mxu0 0.0
    %1809 = vmatpush1.msra.mxu0 %v78
    %1810 = vmatprep.subr.mxu0 0.0
    %1811 = vmatpush1.msra.mxu0 0.0
    %1812 = vmatprep.subr.mxu0 0.0
    %1813 = vmatpush1.msra.mxu0 0.0
    %1814 = vmatprep.subr.mxu0 0.0
    %1815 = vmatpush1.msra.mxu0 0.0
    %1816 = vmatprep.subr.mxu0 0.0
    %1817 = vmatpush1.msra.mxu0 0.0
    %1818 = vmatprep.subr.mxu0 0.0
    %1819 = vmatpush1.msra.mxu0 0.0
    %1820 = vmatprep.subr.mxu0 0.0
    %1821 = vmatpush1.msra.mxu0 0.0
    %1822 = vmatprep.subr.mxu0 0.0
    %1823 = vmatpush1.msra.mxu0 0.0
    %1824 = vmatprep.subr.mxu0 0.0
    %1825 = vmatpush1.msra.mxu0 0.0
    %1826 = vmatprep.subr.mxu0 0.0
    %1827 = vmatpush1.msra.mxu0 0.0
    %1828 = vmatprep.subr.mxu0 0.0
    %1829 = vmatpush1.msra.mxu0 0.0
    %1830 = vmatprep.subr.mxu0 0.0
    %1831 = vmatpush1.msra.mxu0 0.0
    %1832 = vmatprep.subr.mxu0 0.0
    %1833 = vmatpush1.msra.mxu0 0.0
    %1834 = vmatprep.subr.mxu0 0.0
    %1835 = vmatpush1.msra.mxu0 0.0
    %1836 = vmatprep.subr.mxu0 0.0
    %1837 = vmatpush1.msra.mxu0 0.0
    %1838 = vmatprep.subr.mxu0 0.0
    %1839 = vmatpush1.msra.mxu0 0.0
    %1840 = vmatprep.subr.mxu0 0.0
    %1841 = vmatpush1.msra.mxu0 0.0
    %1842 = vmatprep.subr.mxu0 0.0
    %1843 = vmatpush1.msra.mxu0 0.0
    %1844 = vmatprep.subr.mxu0 0.0
    %1845 = vmatpush1.msra.mxu0 0.0
    %1846 = vmatprep.subr.mxu0 0.0
    %1847 = vmatpush1.msra.mxu0 0.0
    %1848 = vmatprep.subr.mxu0 0.0
    %1849 = vmatpush1.msra.mxu0 0.0
    %1850 = vmatprep.subr.mxu0 0.0
    %1851 = vmatpush1.msra.mxu0 0.0
    %1852 = vmatprep.subr.mxu0 0.0
    %1853 = vmatpush1.msra.mxu0 0.0
    %1854 = vmatprep.subr.mxu0 0.0
    %1855 = vmatpush1.msra.mxu0 0.0
    %1856 = vmatprep.subr.mxu0 0.0
    %1857 = vmatpush1.msra.mxu0 0.0
    %1858 = vmatprep.subr.mxu0 0.0
    %1859 = vmatpush1.msra.mxu0 0.0
    %1860 = vmatprep.subr.mxu0 0.0
    %1861 = vmatpush1.msra.mxu0 0.0
    %1862 = vmatprep.subr.mxu0 0.0
    %1863 = vmatpush1.msra.mxu0 0.0
    %1864 = vmatprep.subr.mxu0 0.0
    %1865 = vmatpush1.msra.mxu0 0.0
    %1866 = vmatprep.subr.mxu0 0.0
    %1867 = vmatpush1.msra.mxu0 0.0
    %1868 = vmatprep.subr.mxu0 0.0
    %1869 = vmatpush1.msra.mxu0 0.0
    %1870 = vmatprep.subr.mxu0 0.0
    %1871 = vmatpush1.msra.mxu0 0.0
    %1872 = vmatprep.mubr.f32.mxu0 0.0
    %1873 = vmatmul.mubr.f32.gmra.mrb[0].mxu0 %v1806
    %v1874 = vpop.f32.mrb[0].mxu0
    %v1875 = vadd.f32 0.0, %v1874
    %v1876 = vpop.f32.mrb[0].mxu0
    %1877 = vdwg.mxu0
    %v1878 = vsel %vm83, %v1656, 0.0
    %v1879 = vsel %vm83, %v1729, 0.0
    %v1880 = vadd.f32 %v1878, %v1879
    %v1881 = vsel %vm83, %v1802, 0.0
    %v1882 = vadd.f32 %v1880, %v1881
    %v1883 = vsel %vm83, %v1875, 0.0
    %v1884 = vadd.f32 %v1882, %v1883
    %s1885 = scalar_lea.vmem %s0, 24
    %v1886 = vld [vmem:[%s1885] sm:$0xff]
    %v1887 = vld [vmem:[%s1885 + $0x8] sm:$0xff]
    %v1888 = vld [vmem:[%s1885 + $0x10] sm:$0xff]
    %v1890 = vsel %vm83, %v1886, 0
    %1892 = vmatprep.subr.mxu0 0.0
    %1893 = vmatpush1.msra.mxu0 %v27
    %1894 = vmatprep.subr.mxu0 0.0
    %1895 = vmatpush1.msra.mxu0 %v28
    %1896 = vmatprep.subr.mxu0 0.0
    %1897 = vmatpush1.msra.mxu0 %v29
    %1898 = vmatprep.subr.mxu0 0.0
    %1899 = vmatpush1.msra.mxu0 %v30
    %1900 = vmatprep.subr.mxu0 0.0
    %1901 = vmatpush1.msra.mxu0 0.0
    %1902 = vmatprep.subr.mxu0 0.0
    %1903 = vmatpush1.msra.mxu0 0.0
    %1904 = vmatprep.subr.mxu0 0.0
    %1905 = vmatpush1.msra.mxu0 0.0
    %1906 = vmatprep.subr.mxu0 0.0
    %1907 = vmatpush1.msra.mxu0 0.0
    %1908 = vmatprep.subr.mxu0 0.0
    %1909 = vmatpush1.msra.mxu0 0.0
    %1910 = vmatprep.subr.mxu0 0.0
    %1911 = vmatpush1.msra.mxu0 0.0
    %1912 = vmatprep.subr.mxu0 0.0
    %1913 = vmatpush1.msra.mxu0 0.0
    %1914 = vmatprep.subr.mxu0 0.0
    %1915 = vmatpush1.msra.mxu0 0.0
    %1916 = vmatprep.subr.mxu0 0.0
    %1917 = vmatpush1.msra.mxu0 0.0
    %1918 = vmatprep.subr.mxu0 0.0
    %1919 = vmatpush1.msra.mxu0 0.0
    %1920 = vmatprep.subr.mxu0 0.0
    %1921 = vmatpush1.msra.mxu0 0.0
    %1922 = vmatprep.subr.mxu0 0.0
    %1923 = vmatpush1.msra.mxu0 0.0
    %1924 = vmatprep.subr.mxu0 0.0
    %1925 = vmatpush1.msra.mxu0 0.0
    %1926 = vmatprep.subr.mxu0 0.0
    %1927 = vmatpush1.msra.mxu0 0.0
    %1928 = vmatprep.subr.mxu0 0.0
    %1929 = vmatpush1.msra.mxu0 0.0
    %1930 = vmatprep.subr.mxu0 0.0
    %1931 = vmatpush1.msra.mxu0 0.0
    %1932 = vmatprep.subr.mxu0 0.0
    %1933 = vmatpush1.msra.mxu0 0.0
    %1934 = vmatprep.subr.mxu0 0.0
    %1935 = vmatpush1.msra.mxu0 0.0
    %1936 = vmatprep.subr.mxu0 0.0
    %1937 = vmatpush1.msra.mxu0 0.0
    %1938 = vmatprep.subr.mxu0 0.0
    %1939 = vmatpush1.msra.mxu0 0.0
    %1940 = vmatprep.subr.mxu0 0.0
    %1941 = vmatpush1.msra.mxu0 0.0
    %1942 = vmatprep.subr.mxu0 0.0
    %1943 = vmatpush1.msra.mxu0 0.0
    %1944 = vmatprep.subr.mxu0 0.0
    %1945 = vmatpush1.msra.mxu0 0.0
    %1946 = vmatprep.subr.mxu0 0.0
    %1947 = vmatpush1.msra.mxu0 0.0
    %1948 = vmatprep.subr.mxu0 0.0
    %1949 = vmatpush1.msra.mxu0 0.0
    %1950 = vmatprep.subr.mxu0 0.0
    %1951 = vmatpush1.msra.mxu0 0.0
    %1952 = vmatprep.subr.mxu0 0.0
    %1953 = vmatpush1.msra.mxu0 0.0
    %1954 = vmatprep.subr.mxu0 0.0
    %1955 = vmatpush1.msra.mxu0 0.0
    %1956 = vmatprep.mubr.f32.mxu0 0.0
    %1957 = vmatmul.mubr.f32.gmra.mrb[0].mxu0 %v1890
    %v1958 = vpop.f32.mrb[0].mxu0
    %v1959 = vadd.f32 0.0, %v1958
    %v1960 = vpop.f32.mrb[0].mxu0
    %1961 = vdwg.mxu0
    %1962 = vmatprep.subr.mxu0 0.0
    %1963 = vmatpush1.msra.mxu0 %v31
    %1964 = vmatprep.subr.mxu0 0.0
    %1965 = vmatpush1.msra.mxu0 %v32
    %1966 = vmatprep.subr.mxu0 0.0
    %1967 = vmatpush1.msra.mxu0 %v33
    %1968 = vmatprep.subr.mxu0 0.0
    %1969 = vmatpush1.msra.mxu0 %v34
    %1970 = vmatprep.subr.mxu0 0.0
    %1971 = vmatpush1.msra.mxu0 0.0
    %1972 = vmatprep.subr.mxu0 0.0
    %1973 = vmatpush1.msra.mxu0 0.0
    %1974 = vmatprep.subr.mxu0 0.0
    %1975 = vmatpush1.msra.mxu0 0.0
    %1976 = vmatprep.subr.mxu0 0.0
    %1977 = vmatpush1.msra.mxu0 0.0
    %1978 = vmatprep.subr.mxu0 0.0
    %1979 = vmatpush1.msra.mxu0 0.0
    %1980 = vmatprep.subr.mxu0 0.0
    %1981 = vmatpush1.msra.mxu0 0.0
    %1982 = vmatprep.subr.mxu0 0.0
    %1983 = vmatpush1.msra.mxu0 0.0
    %1984 = vmatprep.subr.mxu0 0.0
    %1985 = vmatpush1.msra.mxu0 0.0
    %1986 = vmatprep.subr.mxu0 0.0
    %1987 = vmatpush1.msra.mxu0 0.0
    %1988 = vmatprep.subr.mxu0 0.0
    %1989 = vmatpush1.msra.mxu0 0.0
    %1990 = vmatprep.subr.mxu0 0.0
    %1991 = vmatpush1.msra.mxu0 0.0
    %1992 = vmatprep.subr.mxu0 0.0
    %1993 = vmatpush1.msra.mxu0 0.0
    %1994 = vmatprep.subr.mxu0 0.0
    %1995 = vmatpush1.msra.mxu0 0.0
    %1996 = vmatprep.subr.mxu0 0.0
    %1997 = vmatpush1.msra.mxu0 0.0
    %1998 = vmatprep.subr.mxu0 0.0
    %1999 = vmatpush1.msra.mxu0 0.0
    %2000 = vmatprep.subr.mxu0 0.0
    %2001 = vmatpush1.msra.mxu0 0.0
    %2002 = vmatprep.subr.mxu0 0.0
    %2003 = vmatpush1.msra.mxu0 0.0
    %2004 = vmatprep.subr.mxu0 0.0
    %2005 = vmatpush1.msra.mxu0 0.0
    %2006 = vmatprep.subr.mxu0 0.0
    %2007 = vmatpush1.msra.mxu0 0.0
    %2008 = vmatprep.subr.mxu0 0.0
    %2009 = vmatpush1.msra.mxu0 0.0
    %2010 = vmatprep.subr.mxu0 0.0
    %2011 = vmatpush1.msra.mxu0 0.0
    %2012 = vmatprep.subr.mxu0 0.0
    %2013 = vmatpush1.msra.mxu0 0.0
    %2014 = vmatprep.subr.mxu0 0.0
    %2015 = vmatpush1.msra.mxu0 0.0
    %2016 = vmatprep.subr.mxu0 0.0
    %2017 = vmatpush1.msra.mxu0 0.0
    %2018 = vmatprep.subr.mxu0 0.0
    %2019 = vmatpush1.msra.mxu0 0.0
    %2020 = vmatprep.subr.mxu0 0.0
    %2021 = vmatpush1.msra.mxu0 0.0
    %2022 = vmatprep.subr.mxu0 0.0
    %2023 = vmatpush1.msra.mxu0 0.0
    %2024 = vmatprep.subr.mxu0 0.0
    %2025 = vmatpush1.msra.mxu0 0.0
    %2026 = vmatprep.mubr.f32.mxu0 0.0
    %2027 = vmatmul.mubr.f32.gmra.mrb[0].mxu0 %v1890
    %v2028 = vpop.f32.mrb[0].mxu0
    %v2029 = vadd.f32 0.0, %v2028
    %v2030 = vpop.f32.mrb[0].mxu0
    %2031 = vdwg.mxu0
    %2032 = vmatprep.subr.mxu0 0.0
    %2033 = vmatpush1.msra.mxu0 %v35
    %2034 = vmatprep.subr.mxu0 0.0
    %2035 = vmatpush1.msra.mxu0 %v36
    %2036 = vmatprep.subr.mxu0 0.0
    %2037 = vmatpush1.msra.mxu0 %v37
    %2038 = vmatprep.subr.mxu0 0.0
    %2039 = vmatpush1.msra.mxu0 %v38
    %2040 = vmatprep.subr.mxu0 0.0
    %2041 = vmatpush1.msra.mxu0 0.0
    %2042 = vmatprep.subr.mxu0 0.0
    %2043 = vmatpush1.msra.mxu0 0.0
    %2044 = vmatprep.subr.mxu0 0.0
    %2045 = vmatpush1.msra.mxu0 0.0
    %2046 = vmatprep.subr.mxu0 0.0
    %2047 = vmatpush1.msra.mxu0 0.0
    %2048 = vmatprep.subr.mxu0 0.0
    %2049 = vmatpush1.msra.mxu0 0.0
    %2050 = vmatprep.subr.mxu0 0.0
    %2051 = vmatpush1.msra.mxu0 0.0
    %2052 = vmatprep.subr.mxu0 0.0
    %2053 = vmatpush1.msra.mxu0 0.0
    %2054 = vmatprep.subr.mxu0 0.0
    %2055 = vmatpush1.msra.mxu0 0.0
    %2056 = vmatprep.subr.mxu0 0.0
    %2057 = vmatpush1.msra.mxu0 0.0
    %2058 = vmatprep.subr.mxu0 0.0
    %2059 = vmatpush1.msra.mxu0 0.0
    %2060 = vmatprep.subr.mxu0 0.0
    %2061 = vmatpush1.msra.mxu0 0.0
    %2062 = vmatprep.subr.mxu0 0.0
    %2063 = vmatpush1.msra.mxu0 0.0
    %2064 = vmatprep.subr.mxu0 0.0
    %2065 = vmatpush1.msra.mxu0 0.0
    %2066 = vmatprep.subr.mxu0 0.0
    %2067 = vmatpush1.msra.mxu0 0.0
    %2068 = vmatprep.subr.mxu0 0.0
    %2069 = vmatpush1.msra.mxu0 0.0
    %2070 = vmatprep.subr.mxu0 0.0
    %2071 = vmatpush1.msra.mxu0 0.0
    %2072 = vmatprep.subr.mxu0 0.0
    %2073 = vmatpush1.msra.mxu0 0.0
    %2074 = vmatprep.subr.mxu0 0.0
    %2075 = vmatpush1.msra.mxu0 0.0
    %2076 = vmatprep.subr.mxu0 0.0
    %2077 = vmatpush1.msra.mxu0 0.0
    %2078 = vmatprep.subr.mxu0 0.0
    %2079 = vmatpush1.msra.mxu0 0.0
    %2080 = vmatprep.subr.mxu0 0.0
    %2081 = vmatpush1.msra.mxu0 0.0
    %2082 = vmatprep.subr.mxu0 0.0
    %2083 = vmatpush1.msra.mxu0 0.0
    %2084 = vmatprep.subr.mxu0 0.0
    %2085 = vmatpush1.msra.mxu0 0.0
    %2086 = vmatprep.subr.mxu0 0.0
    %2087 = vmatpush1.msra.mxu0 0.0
    %2088 = vmatprep.subr.mxu0 0.0
    %2089 = vmatpush1.msra.mxu0 0.0
    %2090 = vmatprep.subr.mxu0 0.0
    %2091 = vmatpush1.msra.mxu0 0.0
    %2092 = vmatprep.subr.mxu0 0.0
    %2093 = vmatpush1.msra.mxu0 0.0
    %2094 = vmatprep.subr.mxu0 0.0
    %2095 = vmatpush1.msra.mxu0 0.0
    %2096 = vmatprep.mubr.f32.mxu0 0.0
    %2097 = vmatmul.mubr.f32.gmra.mrb[0].mxu0 %v1890
    %v2098 = vpop.f32.mrb[0].mxu0
    %v2099 = vadd.f32 0.0, %v2098
    %v2100 = vpop.f32.mrb[0].mxu0
    %2101 = vdwg.mxu0
    %2102 = vmatprep.subr.mxu0 0.0
    %2103 = vmatpush1.msra.mxu0 %v39
    %2104 = vmatprep.subr.mxu0 0.0
    %2105 = vmatpush1.msra.mxu0 %v40
    %2106 = vmatprep.subr.mxu0 0.0
    %2107 = vmatpush1.msra.mxu0 %v41
    %2108 = vmatprep.subr.mxu0 0.0
    %2109 = vmatpush1.msra.mxu0 %v42
    %2110 = vmatprep.subr.mxu0 0.0
    %2111 = vmatpush1.msra.mxu0 0.0
    %2112 = vmatprep.subr.mxu0 0.0
    %2113 = vmatpush1.msra.mxu0 0.0
    %2114 = vmatprep.subr.mxu0 0.0
    %2115 = vmatpush1.msra.mxu0 0.0
    %2116 = vmatprep.subr.mxu0 0.0
    %2117 = vmatpush1.msra.mxu0 0.0
    %2118 = vmatprep.subr.mxu0 0.0
    %2119 = vmatpush1.msra.mxu0 0.0
    %2120 = vmatprep.subr.mxu0 0.0
    %2121 = vmatpush1.msra.mxu0 0.0
    %2122 = vmatprep.subr.mxu0 0.0
    %2123 = vmatpush1.msra.mxu0 0.0
    %2124 = vmatprep.subr.mxu0 0.0
    %2125 = vmatpush1.msra.mxu0 0.0
    %2126 = vmatprep.subr.mxu0 0.0
    %2127 = vmatpush1.msra.mxu0 0.0
    %2128 = vmatprep.subr.mxu0 0.0
    %2129 = vmatpush1.msra.mxu0 0.0
    %2130 = vmatprep.subr.mxu0 0.0
    %2131 = vmatpush1.msra.mxu0 0.0
    %2132 = vmatprep.subr.mxu0 0.0
    %2133 = vmatpush1.msra.mxu0 0.0
    %2134 = vmatprep.subr.mxu0 0.0
    %2135 = vmatpush1.msra.mxu0 0.0
    %2136 = vmatprep.subr.mxu0 0.0
    %2137 = vmatpush1.msra.mxu0 0.0
    %2138 = vmatprep.subr.mxu0 0.0
    %2139 = vmatpush1.msra.mxu0 0.0
    %2140 = vmatprep.subr.mxu0 0.0
    %2141 = vmatpush1.msra.mxu0 0.0
    %2142 = vmatprep.subr.mxu0 0.0
    %2143 = vmatpush1.msra.mxu0 0.0
    %2144 = vmatprep.subr.mxu0 0.0
    %2145 = vmatpush1.msra.mxu0 0.0
    %2146 = vmatprep.subr.mxu0 0.0
    %2147 = vmatpush1.msra.mxu0 0.0
    %2148 = vmatprep.subr.mxu0 0.0
    %2149 = vmatpush1.msra.mxu0 0.0
    %2150 = vmatprep.subr.mxu0 0.0
    %2151 = vmatpush1.msra.mxu0 0.0
    %2152 = vmatprep.subr.mxu0 0.0
    %2153 = vmatpush1.msra.mxu0 0.0
    %2154 = vmatprep.subr.mxu0 0.0
    %2155 = vmatpush1.msra.mxu0 0.0
    %2156 = vmatprep.subr.mxu0 0.0
    %2157 = vmatpush1.msra.mxu0 0.0
    %2158 = vmatprep.subr.mxu0 0.0
    %2159 = vmatpush1.msra.mxu0 0.0
    %2160 = vmatprep.subr.mxu0 0.0
    %2161 = vmatpush1.msra.mxu0 0.0
    %2162 = vmatprep.subr.mxu0 0.0
    %2163 = vmatpush1.msra.mxu0 0.0
    %2164 = vmatprep.subr.mxu0 0.0
    %2165 = vmatpush1.msra.mxu0 0.0
    %2166 = vmatprep.mubr.f32.mxu0 0.0
    %2167 = vmatmul.mubr.f32.gmra.mrb[0].mxu0 %v1890
    %v2168 = vpop.f32.mrb[0].mxu0
    %v2169 = vadd.f32 0.0, %v2168
    %v2170 = vpop.f32.mrb[0].mxu0
    %2171 = vdwg.mxu0
    %v2173 = vsel %vm83, %v1887, 0
    %2175 = vmatprep.subr.mxu0 0.0
    %2176 = vmatpush1.msra.mxu0 %v43
    %2177 = vmatprep.subr.mxu0 0.0
    %2178 = vmatpush1.msra.mxu0 %v44
    %2179 = vmatprep.subr.mxu0 0.0
    %2180 = vmatpush1.msra.mxu0 %v45
    %2181 = vmatprep.subr.mxu0 0.0
    %2182 = vmatpush1.msra.mxu0 %v46
    %2183 = vmatprep.subr.mxu0 0.0
    %2184 = vmatpush1.msra.mxu0 0.0
    %2185 = vmatprep.subr.mxu0 0.0
    %2186 = vmatpush1.msra.mxu0 0.0
    %2187 = vmatprep.subr.mxu0 0.0
    %2188 = vmatpush1.msra.mxu0 0.0
    %2189 = vmatprep.subr.mxu0 0.0
    %2190 = vmatpush1.msra.mxu0 0.0
    %2191 = vmatprep.subr.mxu0 0.0
    %2192 = vmatpush1.msra.mxu0 0.0
    %2193 = vmatprep.subr.mxu0 0.0
    %2194 = vmatpush1.msra.mxu0 0.0
    %2195 = vmatprep.subr.mxu0 0.0
    %2196 = vmatpush1.msra.mxu0 0.0
    %2197 = vmatprep.subr.mxu0 0.0
    %2198 = vmatpush1.msra.mxu0 0.0
    %2199 = vmatprep.subr.mxu0 0.0
    %2200 = vmatpush1.msra.mxu0 0.0
    %2201 = vmatprep.subr.mxu0 0.0
    %2202 = vmatpush1.msra.mxu0 0.0
    %2203 = vmatprep.subr.mxu0 0.0
    %2204 = vmatpush1.msra.mxu0 0.0
    %2205 = vmatprep.subr.mxu0 0.0
    %2206 = vmatpush1.msra.mxu0 0.0
    %2207 = vmatprep.subr.mxu0 0.0
    %2208 = vmatpush1.msra.mxu0 0.0
    %2209 = vmatprep.subr.mxu0 0.0
    %2210 = vmatpush1.msra.mxu0 0.0
    %2211 = vmatprep.subr.mxu0 0.0
    %2212 = vmatpush1.msra.mxu0 0.0
    %2213 = vmatprep.subr.mxu0 0.0
    %2214 = vmatpush1.msra.mxu0 0.0
    %2215 = vmatprep.subr.mxu0 0.0
    %2216 = vmatpush1.msra.mxu0 0.0
    %2217 = vmatprep.subr.mxu0 0.0
    %2218 = vmatpush1.msra.mxu0 0.0
    %2219 = vmatprep.subr.mxu0 0.0
    %2220 = vmatpush1.msra.mxu0 0.0
    %2221 = vmatprep.subr.mxu0 0.0
    %2222 = vmatpush1.msra.mxu0 0.0
    %2223 = vmatprep.subr.mxu0 0.0
    %2224 = vmatpush1.msra.mxu0 0.0
    %2225 = vmatprep.subr.mxu0 0.0
    %2226 = vmatpush1.msra.mxu0 0.0
    %2227 = vmatprep.subr.mxu0 0.0
    %2228 = vmatpush1.msra.mxu0 0.0
    %2229 = vmatprep.subr.mxu0 0.0
    %2230 = vmatpush1.msra.mxu0 0.0
    %2231 = vmatprep.subr.mxu0 0.0
    %2232 = vmatpush1.msra.mxu0 0.0
    %2233 = vmatprep.subr.mxu0 0.0
    %2234 = vmatpush1.msra.mxu0 0.0
    %2235 = vmatprep.subr.mxu0 0.0
    %2236 = vmatpush1.msra.mxu0 0.0
    %2237 = vmatprep.subr.mxu0 0.0
    %2238 = vmatpush1.msra.mxu0 0.0
    %2239 = vmatprep.mubr.f32.mxu0 0.0
    %2240 = vmatmul.mubr.f32.gmra.mrb[0].mxu0 %v2173
    %v2241 = vpop.f32.mrb[0].mxu0
    %v2242 = vadd.f32 0.0, %v2241
    %v2243 = vpop.f32.mrb[0].mxu0
    %2244 = vdwg.mxu0
    %2245 = vmatprep.subr.mxu0 0.0
    %2246 = vmatpush1.msra.mxu0 %v47
    %2247 = vmatprep.subr.mxu0 0.0
    %2248 = vmatpush1.msra.mxu0 %v48
    %2249 = vmatprep.subr.mxu0 0.0
    %2250 = vmatpush1.msra.mxu0 %v49
    %2251 = vmatprep.subr.mxu0 0.0
    %2252 = vmatpush1.msra.mxu0 %v50
    %2253 = vmatprep.subr.mxu0 0.0
    %2254 = vmatpush1.msra.mxu0 0.0
    %2255 = vmatprep.subr.mxu0 0.0
    %2256 = vmatpush1.msra.mxu0 0.0
    %2257 = vmatprep.subr.mxu0 0.0
    %2258 = vmatpush1.msra.mxu0 0.0
    %2259 = vmatprep.subr.mxu0 0.0
    %2260 = vmatpush1.msra.mxu0 0.0
    %2261 = vmatprep.subr.mxu0 0.0
    %2262 = vmatpush1.msra.mxu0 0.0
    %2263 = vmatprep.subr.mxu0 0.0
    %2264 = vmatpush1.msra.mxu0 0.0
    %2265 = vmatprep.subr.mxu0 0.0
    %2266 = vmatpush1.msra.mxu0 0.0
    %2267 = vmatprep.subr.mxu0 0.0
    %2268 = vmatpush1.msra.mxu0 0.0
    %2269 = vmatprep.subr.mxu0 0.0
    %2270 = vmatpush1.msra.mxu0 0.0
    %2271 = vmatprep.subr.mxu0 0.0
    %2272 = vmatpush1.msra.mxu0 0.0
    %2273 = vmatprep.subr.mxu0 0.0
    %2274 = vmatpush1.msra.mxu0 0.0
    %2275 = vmatprep.subr.mxu0 0.0
    %2276 = vmatpush1.msra.mxu0 0.0
    %2277 = vmatprep.subr.mxu0 0.0
    %2278 = vmatpush1.msra.mxu0 0.0
    %2279 = vmatprep.subr.mxu0 0.0
    %2280 = vmatpush1.msra.mxu0 0.0
    %2281 = vmatprep.subr.mxu0 0.0
    %2282 = vmatpush1.msra.mxu0 0.0
    %2283 = vmatprep.subr.mxu0 0.0
    %2284 = vmatpush1.msra.mxu0 0.0
    %2285 = vmatprep.subr.mxu0 0.0
    %2286 = vmatpush1.msra.mxu0 0.0
    %2287 = vmatprep.subr.mxu0 0.0
    %2288 = vmatpush1.msra.mxu0 0.0
    %2289 = vmatprep.subr.mxu0 0.0
    %2290 = vmatpush1.msra.mxu0 0.0
    %2291 = vmatprep.subr.mxu0 0.0
    %2292 = vmatpush1.msra.mxu0 0.0
    %2293 = vmatprep.subr.mxu0 0.0
    %2294 = vmatpush1.msra.mxu0 0.0
    %2295 = vmatprep.subr.mxu0 0.0
    %2296 = vmatpush1.msra.mxu0 0.0
    %2297 = vmatprep.subr.mxu0 0.0
    %2298 = vmatpush1.msra.mxu0 0.0
    %2299 = vmatprep.subr.mxu0 0.0
    %2300 = vmatpush1.msra.mxu0 0.0
    %2301 = vmatprep.subr.mxu0 0.0
    %2302 = vmatpush1.msra.mxu0 0.0
    %2303 = vmatprep.subr.mxu0 0.0
    %2304 = vmatpush1.msra.mxu0 0.0
    %2305 = vmatprep.subr.mxu0 0.0
    %2306 = vmatpush1.msra.mxu0 0.0
    %2307 = vmatprep.subr.mxu0 0.0
    %2308 = vmatpush1.msra.mxu0 0.0
    %2309 = vmatprep.mubr.f32.mxu0 0.0
    %2310 = vmatmul.mubr.f32.gmra.mrb[0].mxu0 %v2173
    %v2311 = vpop.f32.mrb[0].mxu0
    %v2312 = vadd.f32 0.0, %v2311
    %v2313 = vpop.f32.mrb[0].mxu0
    %2314 = vdwg.mxu0
    %2315 = vmatprep.subr.mxu0 0.0
    %2316 = vmatpush1.msra.mxu0 %v51
    %2317 = vmatprep.subr.mxu0 0.0
    %2318 = vmatpush1.msra.mxu0 %v52
    %2319 = vmatprep.subr.mxu0 0.0
    %2320 = vmatpush1.msra.mxu0 %v53
    %2321 = vmatprep.subr.mxu0 0.0
    %2322 = vmatpush1.msra.mxu0 %v54
    %2323 = vmatprep.subr.mxu0 0.0
    %2324 = vmatpush1.msra.mxu0 0.0
    %2325 = vmatprep.subr.mxu0 0.0
    %2326 = vmatpush1.msra.mxu0 0.0
    %2327 = vmatprep.subr.mxu0 0.0
    %2328 = vmatpush1.msra.mxu0 0.0
    %2329 = vmatprep.subr.mxu0 0.0
    %2330 = vmatpush1.msra.mxu0 0.0
    %2331 = vmatprep.subr.mxu0 0.0
    %2332 = vmatpush1.msra.mxu0 0.0
    %2333 = vmatprep.subr.mxu0 0.0
    %2334 = vmatpush1.msra.mxu0 0.0
    %2335 = vmatprep.subr.mxu0 0.0
    %2336 = vmatpush1.msra.mxu0 0.0
    %2337 = vmatprep.subr.mxu0 0.0
    %2338 = vmatpush1.msra.mxu0 0.0
    %2339 = vmatprep.subr.mxu0 0.0
    %2340 = vmatpush1.msra.mxu0 0.0
    %2341 = vmatprep.subr.mxu0 0.0
    %2342 = vmatpush1.msra.mxu0 0.0
    %2343 = vmatprep.subr.mxu0 0.0
    %2344 = vmatpush1.msra.mxu0 0.0
    %2345 = vmatprep.subr.mxu0 0.0
    %2346 = vmatpush1.msra.mxu0 0.0
    %2347 = vmatprep.subr.mxu0 0.0
    %2348 = vmatpush1.msra.mxu0 0.0
    %2349 = vmatprep.subr.mxu0 0.0
    %2350 = vmatpush1.msra.mxu0 0.0
    %2351 = vmatprep.subr.mxu0 0.0
    %2352 = vmatpush1.msra.mxu0 0.0
    %2353 = vmatprep.subr.mxu0 0.0
    %2354 = vmatpush1.msra.mxu0 0.0
    %2355 = vmatprep.subr.mxu0 0.0
    %2356 = vmatpush1.msra.mxu0 0.0
    %2357 = vmatprep.subr.mxu0 0.0
    %2358 = vmatpush1.msra.mxu0 0.0
    %2359 = vmatprep.subr.mxu0 0.0
    %2360 = vmatpush1.msra.mxu0 0.0
    %2361 = vmatprep.subr.mxu0 0.0
    %2362 = vmatpush1.msra.mxu0 0.0
    %2363 = vmatprep.subr.mxu0 0.0
    %2364 = vmatpush1.msra.mxu0 0.0
    %2365 = vmatprep.subr.mxu0 0.0
    %2366 = vmatpush1.msra.mxu0 0.0
    %2367 = vmatprep.subr.mxu0 0.0
    %2368 = vmatpush1.msra.mxu0 0.0
    %2369 = vmatprep.subr.mxu0 0.0
    %2370 = vmatpush1.msra.mxu0 0.0
    %2371 = vmatprep.subr.mxu0 0.0
    %2372 = vmatpush1.msra.mxu0 0.0
    %2373 = vmatprep.subr.mxu0 0.0
    %2374 = vmatpush1.msra.mxu0 0.0
    %2375 = vmatprep.subr.mxu0 0.0
    %2376 = vmatpush1.msra.mxu0 0.0
    %2377 = vmatprep.subr.mxu0 0.0
    %2378 = vmatpush1.msra.mxu0 0.0
    %2379 = vmatprep.mubr.f32.mxu0 0.0
    %2380 = vmatmul.mubr.f32.gmra.mrb[0].mxu0 %v2173
    %v2381 = vpop.f32.mrb[0].mxu0
    %v2382 = vadd.f32 0.0, %v2381
    %v2383 = vpop.f32.mrb[0].mxu0
    %2384 = vdwg.mxu0
    %2385 = vmatprep.subr.mxu0 0.0
    %2386 = vmatpush1.msra.mxu0 %v55
    %2387 = vmatprep.subr.mxu0 0.0
    %2388 = vmatpush1.msra.mxu0 %v56
    %2389 = vmatprep.subr.mxu0 0.0
    %2390 = vmatpush1.msra.mxu0 %v57
    %2391 = vmatprep.subr.mxu0 0.0
    %2392 = vmatpush1.msra.mxu0 %v58
    %2393 = vmatprep.subr.mxu0 0.0
    %2394 = vmatpush1.msra.mxu0 0.0
    %2395 = vmatprep.subr.mxu0 0.0
    %2396 = vmatpush1.msra.mxu0 0.0
    %2397 = vmatprep.subr.mxu0 0.0
    %2398 = vmatpush1.msra.mxu0 0.0
    %2399 = vmatprep.subr.mxu0 0.0
    %2400 = vmatpush1.msra.mxu0 0.0
    %2401 = vmatprep.subr.mxu0 0.0
    %2402 = vmatpush1.msra.mxu0 0.0
    %2403 = vmatprep.subr.mxu0 0.0
    %2404 = vmatpush1.msra.mxu0 0.0
    %2405 = vmatprep.subr.mxu0 0.0
    %2406 = vmatpush1.msra.mxu0 0.0
    %2407 = vmatprep.subr.mxu0 0.0
    %2408 = vmatpush1.msra.mxu0 0.0
    %2409 = vmatprep.subr.mxu0 0.0
    %2410 = vmatpush1.msra.mxu0 0.0
    %2411 = vmatprep.subr.mxu0 0.0
    %2412 = vmatpush1.msra.mxu0 0.0
    %2413 = vmatprep.subr.mxu0 0.0
    %2414 = vmatpush1.msra.mxu0 0.0
    %2415 = vmatprep.subr.mxu0 0.0
    %2416 = vmatpush1.msra.mxu0 0.0
    %2417 = vmatprep.subr.mxu0 0.0
    %2418 = vmatpush1.msra.mxu0 0.0
    %2419 = vmatprep.subr.mxu0 0.0
    %2420 = vmatpush1.msra.mxu0 0.0
    %2421 = vmatprep.subr.mxu0 0.0
    %2422 = vmatpush1.msra.mxu0 0.0
    %2423 = vmatprep.subr.mxu0 0.0
    %2424 = vmatpush1.msra.mxu0 0.0
    %2425 = vmatprep.subr.mxu0 0.0
    %2426 = vmatpush1.msra.mxu0 0.0
    %2427 = vmatprep.subr.mxu0 0.0
    %2428 = vmatpush1.msra.mxu0 0.0
    %2429 = vmatprep.subr.mxu0 0.0
    %2430 = vmatpush1.msra.mxu0 0.0
    %2431 = vmatprep.subr.mxu0 0.0
    %2432 = vmatpush1.msra.mxu0 0.0
    %2433 = vmatprep.subr.mxu0 0.0
    %2434 = vmatpush1.msra.mxu0 0.0
    %2435 = vmatprep.subr.mxu0 0.0
    %2436 = vmatpush1.msra.mxu0 0.0
    %2437 = vmatprep.subr.mxu0 0.0
    %2438 = vmatpush1.msra.mxu0 0.0
    %2439 = vmatprep.subr.mxu0 0.0
    %2440 = vmatpush1.msra.mxu0 0.0
    %2441 = vmatprep.subr.mxu0 0.0
    %2442 = vmatpush1.msra.mxu0 0.0
    %2443 = vmatprep.subr.mxu0 0.0
    %2444 = vmatpush1.msra.mxu0 0.0
    %2445 = vmatprep.subr.mxu0 0.0
    %2446 = vmatpush1.msra.mxu0 0.0
    %2447 = vmatprep.subr.mxu0 0.0
    %2448 = vmatpush1.msra.mxu0 0.0
    %2449 = vmatprep.mubr.f32.mxu0 0.0
    %2450 = vmatmul.mubr.f32.gmra.mrb[0].mxu0 %v2173
    %v2451 = vpop.f32.mrb[0].mxu0
    %v2452 = vadd.f32 0.0, %v2451
    %v2453 = vpop.f32.mrb[0].mxu0
    %2454 = vdwg.mxu0
    %v2456 = vsel %vm83, %v1888, 0
    %2458 = vmatprep.subr.mxu0 0.0
    %2459 = vmatpush1.msra.mxu0 %v59
    %2460 = vmatprep.subr.mxu0 0.0
    %2461 = vmatpush1.msra.mxu0 %v60
    %2462 = vmatprep.subr.mxu0 0.0
    %2463 = vmatpush1.msra.mxu0 %v61
    %2464 = vmatprep.subr.mxu0 0.0
    %2465 = vmatpush1.msra.mxu0 %v62
    %2466 = vmatprep.subr.mxu0 0.0
    %2467 = vmatpush1.msra.mxu0 0.0
    %2468 = vmatprep.subr.mxu0 0.0
    %2469 = vmatpush1.msra.mxu0 0.0
    %2470 = vmatprep.subr.mxu0 0.0
    %2471 = vmatpush1.msra.mxu0 0.0
    %2472 = vmatprep.subr.mxu0 0.0
    %2473 = vmatpush1.msra.mxu0 0.0
    %2474 = vmatprep.subr.mxu0 0.0
    %2475 = vmatpush1.msra.mxu0 0.0
    %2476 = vmatprep.subr.mxu0 0.0
    %2477 = vmatpush1.msra.mxu0 0.0
    %2478 = vmatprep.subr.mxu0 0.0
    %2479 = vmatpush1.msra.mxu0 0.0
    %2480 = vmatprep.subr.mxu0 0.0
    %2481 = vmatpush1.msra.mxu0 0.0
    %2482 = vmatprep.subr.mxu0 0.0
    %2483 = vmatpush1.msra.mxu0 0.0
    %2484 = vmatprep.subr.mxu0 0.0
    %2485 = vmatpush1.msra.mxu0 0.0
    %2486 = vmatprep.subr.mxu0 0.0
    %2487 = vmatpush1.msra.mxu0 0.0
    %2488 = vmatprep.subr.mxu0 0.0
    %2489 = vmatpush1.msra.mxu0 0.0
    %2490 = vmatprep.subr.mxu0 0.0
    %2491 = vmatpush1.msra.mxu0 0.0
    %2492 = vmatprep.subr.mxu0 0.0
    %2493 = vmatpush1.msra.mxu0 0.0
    %2494 = vmatprep.subr.mxu0 0.0
    %2495 = vmatpush1.msra.mxu0 0.0
    %2496 = vmatprep.subr.mxu0 0.0
    %2497 = vmatpush1.msra.mxu0 0.0
    %2498 = vmatprep.subr.mxu0 0.0
    %2499 = vmatpush1.msra.mxu0 0.0
    %2500 = vmatprep.subr.mxu0 0.0
    %2501 = vmatpush1.msra.mxu0 0.0
    %2502 = vmatprep.subr.mxu0 0.0
    %2503 = vmatpush1.msra.mxu0 0.0
    %2504 = vmatprep.subr.mxu0 0.0
    %2505 = vmatpush1.msra.mxu0 0.0
    %2506 = vmatprep.subr.mxu0 0.0
    %2507 = vmatpush1.msra.mxu0 0.0
    %2508 = vmatprep.subr.mxu0 0.0
    %2509 = vmatpush1.msra.mxu0 0.0
    %2510 = vmatprep.subr.mxu0 0.0
    %2511 = vmatpush1.msra.mxu0 0.0
    %2512 = vmatprep.subr.mxu0 0.0
    %2513 = vmatpush1.msra.mxu0 0.0
    %2514 = vmatprep.subr.mxu0 0.0
    %2515 = vmatpush1.msra.mxu0 0.0
    %2516 = vmatprep.subr.mxu0 0.0
    %2517 = vmatpush1.msra.mxu0 0.0
    %2518 = vmatprep.subr.mxu0 0.0
    %2519 = vmatpush1.msra.mxu0 0.0
    %2520 = vmatprep.subr.mxu0 0.0
    %2521 = vmatpush1.msra.mxu0 0.0
    %2522 = vmatprep.mubr.f32.mxu0 0.0
    %2523 = vmatmul.mubr.f32.gmra.mrb[0].mxu0 %v2456
    %v2524 = vpop.f32.mrb[0].mxu0
    %v2525 = vadd.f32 0.0, %v2524
    %v2526 = vpop.f32.mrb[0].mxu0
    %2527 = vdwg.mxu0
    %2528 = vmatprep.subr.mxu0 0.0
    %2529 = vmatpush1.msra.mxu0 %v63
    %2530 = vmatprep.subr.mxu0 0.0
    %2531 = vmatpush1.msra.mxu0 %v64
    %2532 = vmatprep.subr.mxu0 0.0
    %2533 = vmatpush1.msra.mxu0 %v65
    %2534 = vmatprep.subr.mxu0 0.0
    %2535 = vmatpush1.msra.mxu0 %v66
    %2536 = vmatprep.subr.mxu0 0.0
    %2537 = vmatpush1.msra.mxu0 0.0
    %2538 = vmatprep.subr.mxu0 0.0
    %2539 = vmatpush1.msra.mxu0 0.0
    %2540 = vmatprep.subr.mxu0 0.0
    %2541 = vmatpush1.msra.mxu0 0.0
    %2542 = vmatprep.subr.mxu0 0.0
    %2543 = vmatpush1.msra.mxu0 0.0
    %2544 = vmatprep.subr.mxu0 0.0
    %2545 = vmatpush1.msra.mxu0 0.0
    %2546 = vmatprep.subr.mxu0 0.0
    %2547 = vmatpush1.msra.mxu0 0.0
    %2548 = vmatprep.subr.mxu0 0.0
    %2549 = vmatpush1.msra.mxu0 0.0
    %2550 = vmatprep.subr.mxu0 0.0
    %2551 = vmatpush1.msra.mxu0 0.0
    %2552 = vmatprep.subr.mxu0 0.0
    %2553 = vmatpush1.msra.mxu0 0.0
    %2554 = vmatprep.subr.mxu0 0.0
    %2555 = vmatpush1.msra.mxu0 0.0
    %2556 = vmatprep.subr.mxu0 0.0
    %2557 = vmatpush1.msra.mxu0 0.0
    %2558 = vmatprep.subr.mxu0 0.0
    %2559 = vmatpush1.msra.mxu0 0.0
    %2560 = vmatprep.subr.mxu0 0.0
    %2561 = vmatpush1.msra.mxu0 0.0
    %2562 = vmatprep.subr.mxu0 0.0
    %2563 = vmatpush1.msra.mxu0 0.0
    %2564 = vmatprep.subr.mxu0 0.0
    %2565 = vmatpush1.msra.mxu0 0.0
    %2566 = vmatprep.subr.mxu0 0.0
    %2567 = vmatpush1.msra.mxu0 0.0
    %2568 = vmatprep.subr.mxu0 0.0
    %2569 = vmatpush1.msra.mxu0 0.0
    %2570 = vmatprep.subr.mxu0 0.0
    %2571 = vmatpush1.msra.mxu0 0.0
    %2572 = vmatprep.subr.mxu0 0.0
    %2573 = vmatpush1.msra.mxu0 0.0
    %2574 = vmatprep.subr.mxu0 0.0
    %2575 = vmatpush1.msra.mxu0 0.0
    %2576 = vmatprep.subr.mxu0 0.0
    %2577 = vmatpush1.msra.mxu0 0.0
    %2578 = vmatprep.subr.mxu0 0.0
    %2579 = vmatpush1.msra.mxu0 0.0
    %2580 = vmatprep.subr.mxu0 0.0
    %2581 = vmatpush1.msra.mxu0 0.0
    %2582 = vmatprep.subr.mxu0 0.0
    %2583 = vmatpush1.msra.mxu0 0.0
    %2584 = vmatprep.subr.mxu0 0.0
    %2585 = vmatpush1.msra.mxu0 0.0
    %2586 = vmatprep.subr.mxu0 0.0
    %2587 = vmatpush1.msra.mxu0 0.0
    %2588 = vmatprep.subr.mxu0 0.0
    %2589 = vmatpush1.msra.mxu0 0.0
    %2590 = vmatprep.subr.mxu0 0.0
    %2591 = vmatpush1.msra.mxu0 0.0
    %2592 = vmatprep.mubr.f32.mxu0 0.0
    %2593 = vmatmul.mubr.f32.gmra.mrb[0].mxu0 %v2456
    %v2594 = vpop.f32.mrb[0].mxu0
    %v2595 = vadd.f32 0.0, %v2594
    %v2596 = vpop.f32.mrb[0].mxu0
    %2597 = vdwg.mxu0
    %2598 = vmatprep.subr.mxu0 0.0
    %2599 = vmatpush1.msra.mxu0 %v67
    %2600 = vmatprep.subr.mxu0 0.0
    %2601 = vmatpush1.msra.mxu0 %v68
    %2602 = vmatprep.subr.mxu0 0.0
    %2603 = vmatpush1.msra.mxu0 %v69
    %2604 = vmatprep.subr.mxu0 0.0
    %2605 = vmatpush1.msra.mxu0 %v70
    %2606 = vmatprep.subr.mxu0 0.0
    %2607 = vmatpush1.msra.mxu0 0.0
    %2608 = vmatprep.subr.mxu0 0.0
    %2609 = vmatpush1.msra.mxu0 0.0
    %2610 = vmatprep.subr.mxu0 0.0
    %2611 = vmatpush1.msra.mxu0 0.0
    %2612 = vmatprep.subr.mxu0 0.0
    %2613 = vmatpush1.msra.mxu0 0.0
    %2614 = vmatprep.subr.mxu0 0.0
    %2615 = vmatpush1.msra.mxu0 0.0
    %2616 = vmatprep.subr.mxu0 0.0
    %2617 = vmatpush1.msra.mxu0 0.0
    %2618 = vmatprep.subr.mxu0 0.0
    %2619 = vmatpush1.msra.mxu0 0.0
    %2620 = vmatprep.subr.mxu0 0.0
    %2621 = vmatpush1.msra.mxu0 0.0
    %2622 = vmatprep.subr.mxu0 0.0
    %2623 = vmatpush1.msra.mxu0 0.0
    %2624 = vmatprep.subr.mxu0 0.0
    %2625 = vmatpush1.msra.mxu0 0.0
    %2626 = vmatprep.subr.mxu0 0.0
    %2627 = vmatpush1.msra.mxu0 0.0
    %2628 = vmatprep.subr.mxu0 0.0
    %2629 = vmatpush1.msra.mxu0 0.0
    %2630 = vmatprep.subr.mxu0 0.0
    %2631 = vmatpush1.msra.mxu0 0.0
    %2632 = vmatprep.subr.mxu0 0.0
    %2633 = vmatpush1.msra.mxu0 0.0
    %2634 = vmatprep.subr.mxu0 0.0
    %2635 = vmatpush1.msra.mxu0 0.0
    %2636 = vmatprep.subr.mxu0 0.0
    %2637 = vmatpush1.msra.mxu0 0.0
    %2638 = vmatprep.subr.mxu0 0.0
    %2639 = vmatpush1.msra.mxu0 0.0
    %2640 = vmatprep.subr.mxu0 0.0
    %2641 = vmatpush1.msra.mxu0 0.0
    %2642 = vmatprep.subr.mxu0 0.0
    %2643 = vmatpush1.msra.mxu0 0.0
    %2644 = vmatprep.subr.mxu0 0.0
    %2645 = vmatpush1.msra.mxu0 0.0
    %2646 = vmatprep.subr.mxu0 0.0
    %2647 = vmatpush1.msra.mxu0 0.0
    %2648 = vmatprep.subr.mxu0 0.0
    %2649 = vmatpush1.msra.mxu0 0.0
    %2650 = vmatprep.subr.mxu0 0.0
    %2651 = vmatpush1.msra.mxu0 0.0
    %2652 = vmatprep.subr.mxu0 0.0
    %2653 = vmatpush1.msra.mxu0 0.0
    %2654 = vmatprep.subr.mxu0 0.0
    %2655 = vmatpush1.msra.mxu0 0.0
    %2656 = vmatprep.subr.mxu0 0.0
    %2657 = vmatpush1.msra.mxu0 0.0
    %2658 = vmatprep.subr.mxu0 0.0
    %2659 = vmatpush1.msra.mxu0 0.0
    %2660 = vmatprep.subr.mxu0 0.0
    %2661 = vmatpush1.msra.mxu0 0.0
    %2662 = vmatprep.mubr.f32.mxu0 0.0
    %2663 = vmatmul.mubr.f32.gmra.mrb[0].mxu0 %v2456
    %v2664 = vpop.f32.mrb[0].mxu0
    %v2665 = vadd.f32 0.0, %v2664
    %v2666 = vpop.f32.mrb[0].mxu0
    %2667 = vdwg.mxu0
    %2668 = vmatprep.subr.mxu0 0.0
    %2669 = vmatpush1.msra.mxu0 %v71
    %2670 = vmatprep.subr.mxu0 0.0
    %2671 = vmatpush1.msra.mxu0 %v72
    %2672 = vmatprep.subr.mxu0 0.0
    %2673 = vmatpush1.msra.mxu0 %v73
    %2674 = vmatprep.subr.mxu0 0.0
    %2675 = vmatpush1.msra.mxu0 %v74
    %2676 = vmatprep.subr.mxu0 0.0
    %2677 = vmatpush1.msra.mxu0 0.0
    %2678 = vmatprep.subr.mxu0 0.0
    %2679 = vmatpush1.msra.mxu0 0.0
    %2680 = vmatprep.subr.mxu0 0.0
    %2681 = vmatpush1.msra.mxu0 0.0
    %2682 = vmatprep.subr.mxu0 0.0
    %2683 = vmatpush1.msra.mxu0 0.0
    %2684 = vmatprep.subr.mxu0 0.0
    %2685 = vmatpush1.msra.mxu0 0.0
    %2686 = vmatprep.subr.mxu0 0.0
    %2687 = vmatpush1.msra.mxu0 0.0
    %2688 = vmatprep.subr.mxu0 0.0
    %2689 = vmatpush1.msra.mxu0 0.0
    %2690 = vmatprep.subr.mxu0 0.0
    %2691 = vmatpush1.msra.mxu0 0.0
    %2692 = vmatprep.subr.mxu0 0.0
    %2693 = vmatpush1.msra.mxu0 0.0
    %2694 = vmatprep.subr.mxu0 0.0
    %2695 = vmatpush1.msra.mxu0 0.0
    %2696 = vmatprep.subr.mxu0 0.0
    %2697 = vmatpush1.msra.mxu0 0.0
    %2698 = vmatprep.subr.mxu0 0.0
    %2699 = vmatpush1.msra.mxu0 0.0
    %2700 = vmatprep.subr.mxu0 0.0
    %2701 = vmatpush1.msra.mxu0 0.0
    %2702 = vmatprep.subr.mxu0 0.0
    %2703 = vmatpush1.msra.mxu0 0.0
    %2704 = vmatprep.subr.mxu0 0.0
    %2705 = vmatpush1.msra.mxu0 0.0
    %2706 = vmatprep.subr.mxu0 0.0
    %2707 = vmatpush1.msra.mxu0 0.0
    %2708 = vmatprep.subr.mxu0 0.0
    %2709 = vmatpush1.msra.mxu0 0.0
    %2710 = vmatprep.subr.mxu0 0.0
    %2711 = vmatpush1.msra.mxu0 0.0
    %2712 = vmatprep.subr.mxu0 0.0
    %2713 = vmatpush1.msra.mxu0 0.0
    %2714 = vmatprep.subr.mxu0 0.0
    %2715 = vmatpush1.msra.mxu0 0.0
    %2716 = vmatprep.subr.mxu0 0.0
    %2717 = vmatpush1.msra.mxu0 0.0
    %2718 = vmatprep.subr.mxu0 0.0
    %2719 = vmatpush1.msra.mxu0 0.0
    %2720 = vmatprep.subr.mxu0 0.0
    %2721 = vmatpush1.msra.mxu0 0.0
    %2722 = vmatprep.subr.mxu0 0.0
    %2723 = vmatpush1.msra.mxu0 0.0
    %2724 = vmatprep.subr.mxu0 0.0
    %2725 = vmatpush1.msra.mxu0 0.0
    %2726 = vmatprep.subr.mxu0 0.0
    %2727 = vmatpush1.msra.mxu0 0.0
    %2728 = vmatprep.subr.mxu0 0.0
    %2729 = vmatpush1.msra.mxu0 0.0
    %2730 = vmatprep.subr.mxu0 0.0
    %2731 = vmatpush1.msra.mxu0 0.0
    %2732 = vmatprep.mubr.f32.mxu0 0.0
    %2733 = vmatmul.mubr.f32.gmra.mrb[0].mxu0 %v2456
    %v2734 = vpop.f32.mrb[0].mxu0
    %v2735 = vadd.f32 0.0, %v2734
    %v2736 = vpop.f32.mrb[0].mxu0
    %2737 = vdwg.mxu0
    %v2739 = vsel %vm933, %v1959, 0
    %v2742 = vsel %vm933, %v2242, 0
    %2744 = vmatprep.subr.mxu0 0.0
    %2745 = vmatpush1.xpose.msra.mxu0 %v2742
    %2746 = vmatprep.subr.mxu0 0.0
    %2747 = vmatpush1.xpose.msra.mxu0 0.0
    %2748 = vmatprep.subr.mxu0 0.0
    %2749 = vmatpush1.xpose.msra.mxu0 0.0
    %2750 = vmatprep.subr.mxu0 0.0
    %2751 = vmatpush1.xpose.msra.mxu0 0.0
    %2752 = vmatprep.subr.mxu0 0.0
    %2753 = vmatpush1.xpose.msra.mxu0 0.0
    %2754 = vmatprep.subr.mxu0 0.0
    %2755 = vmatpush1.xpose.msra.mxu0 0.0
    %2756 = vmatprep.subr.mxu0 0.0
    %2757 = vmatpush1.xpose.msra.mxu0 0.0
    %2758 = vmatprep.subr.mxu0 0.0
    %2759 = vmatpush1.xpose.msra.mxu0 0.0
    %2760 = vmatprep.subr.mxu0 0.0
    %2761 = vmatpush1.xpose.msra.mxu0 0.0
    %2762 = vmatprep.subr.mxu0 0.0
    %2763 = vmatpush1.xpose.msra.mxu0 0.0
    %2764 = vmatprep.subr.mxu0 0.0
    %2765 = vmatpush1.xpose.msra.mxu0 0.0
    %2766 = vmatprep.subr.mxu0 0.0
    %2767 = vmatpush1.xpose.msra.mxu0 0.0
    %2768 = vmatprep.subr.mxu0 0.0
    %2769 = vmatpush1.xpose.msra.mxu0 0.0
    %2770 = vmatprep.subr.mxu0 0.0
    %2771 = vmatpush1.xpose.msra.mxu0 0.0
    %2772 = vmatprep.subr.mxu0 0.0
    %2773 = vmatpush1.xpose.msra.mxu0 0.0
    %2774 = vmatprep.subr.mxu0 0.0
    %2775 = vmatpush1.xpose.msra.mxu0 0.0
    %2776 = vmatprep.subr.mxu0 0.0
    %2777 = vmatpush1.xpose.msra.mxu0 0.0
    %2778 = vmatprep.subr.mxu0 0.0
    %2779 = vmatpush1.xpose.msra.mxu0 0.0
    %2780 = vmatprep.subr.mxu0 0.0
    %2781 = vmatpush1.xpose.msra.mxu0 0.0
    %2782 = vmatprep.subr.mxu0 0.0
    %2783 = vmatpush1.xpose.msra.mxu0 0.0
    %2784 = vmatprep.subr.mxu0 0.0
    %2785 = vmatpush1.xpose.msra.mxu0 0.0
    %2786 = vmatprep.subr.mxu0 0.0
    %2787 = vmatpush1.xpose.msra.mxu0 0.0
    %2788 = vmatprep.subr.mxu0 0.0
    %2789 = vmatpush1.xpose.msra.mxu0 0.0
    %2790 = vmatprep.subr.mxu0 0.0
    %2791 = vmatpush1.xpose.msra.mxu0 0.0
    %2792 = vmatprep.subr.mxu0 0.0
    %2793 = vmatpush1.xpose.msra.mxu0 0.0
    %2794 = vmatprep.subr.mxu0 0.0
    %2795 = vmatpush1.xpose.msra.mxu0 0.0
    %2796 = vmatprep.subr.mxu0 0.0
    %2797 = vmatpush1.xpose.msra.mxu0 0.0
    %2798 = vmatprep.subr.mxu0 0.0
    %2799 = vmatpush1.xpose.msra.mxu0 0.0
    %2800 = vmatprep.subr.mxu0 0.0
    %2801 = vmatpush1.xpose.msra.mxu0 0.0
    %2802 = vmatprep.subr.mxu0 0.0
    %2803 = vmatpush1.xpose.msra.mxu0 0.0
    %2804 = vmatprep.subr.mxu0 0.0
    %2805 = vmatpush1.xpose.msra.mxu0 0.0
    %2806 = vmatprep.subr.mxu0 0.0
    %2807 = vmatpush1.xpose.msra.mxu0 0.0
    %2808 = vmatprep.mubr.f32.mxu0 0.0
    %2809 = vmatmul.mubr.f32.gmra.mrb[0].mxu0 %v2739
    %v2810 = vpop.f32.mrb[0].mxu0
    %v2811 = vadd.f32 0.0, %v2810
    %v2812 = vpop.f32.mrb[0].mxu0
    %2813 = vdwg.mxu0
    %v2815 = vsel %vm933, %v2029, 0
    %v2818 = vsel %vm933, %v2312, 0
    %2820 = vmatprep.subr.mxu0 0.0
    %2821 = vmatpush1.xpose.msra.mxu0 %v2818
    %2822 = vmatprep.subr.mxu0 0.0
    %2823 = vmatpush1.xpose.msra.mxu0 0.0
    %2824 = vmatprep.subr.mxu0 0.0
    %2825 = vmatpush1.xpose.msra.mxu0 0.0
    %2826 = vmatprep.subr.mxu0 0.0
    %2827 = vmatpush1.xpose.msra.mxu0 0.0
    %2828 = vmatprep.subr.mxu0 0.0
    %2829 = vmatpush1.xpose.msra.mxu0 0.0
    %2830 = vmatprep.subr.mxu0 0.0
    %2831 = vmatpush1.xpose.msra.mxu0 0.0
    %2832 = vmatprep.subr.mxu0 0.0
    %2833 = vmatpush1.xpose.msra.mxu0 0.0
    %2834 = vmatprep.subr.mxu0 0.0
    %2835 = vmatpush1.xpose.msra.mxu0 0.0
    %2836 = vmatprep.subr.mxu0 0.0
    %2837 = vmatpush1.xpose.msra.mxu0 0.0
    %2838 = vmatprep.subr.mxu0 0.0
    %2839 = vmatpush1.xpose.msra.mxu0 0.0
    %2840 = vmatprep.subr.mxu0 0.0
    %2841 = vmatpush1.xpose.msra.mxu0 0.0
    %2842 = vmatprep.subr.mxu0 0.0
    %2843 = vmatpush1.xpose.msra.mxu0 0.0
    %2844 = vmatprep.subr.mxu0 0.0
    %2845 = vmatpush1.xpose.msra.mxu0 0.0
    %2846 = vmatprep.subr.mxu0 0.0
    %2847 = vmatpush1.xpose.msra.mxu0 0.0
    %2848 = vmatprep.subr.mxu0 0.0
    %2849 = vmatpush1.xpose.msra.mxu0 0.0
    %2850 = vmatprep.subr.mxu0 0.0
    %2851 = vmatpush1.xpose.msra.mxu0 0.0
    %2852 = vmatprep.subr.mxu0 0.0
    %2853 = vmatpush1.xpose.msra.mxu0 0.0
    %2854 = vmatprep.subr.mxu0 0.0
    %2855 = vmatpush1.xpose.msra.mxu0 0.0
    %2856 = vmatprep.subr.mxu0 0.0
    %2857 = vmatpush1.xpose.msra.mxu0 0.0
    %2858 = vmatprep.subr.mxu0 0.0
    %2859 = vmatpush1.xpose.msra.mxu0 0.0
    %2860 = vmatprep.subr.mxu0 0.0
    %2861 = vmatpush1.xpose.msra.mxu0 0.0
    %2862 = vmatprep.subr.mxu0 0.0
    %2863 = vmatpush1.xpose.msra.mxu0 0.0
    %2864 = vmatprep.subr.mxu0 0.0
    %2865 = vmatpush1.xpose.msra.mxu0 0.0
    %2866 = vmatprep.subr.mxu0 0.0
    %2867 = vmatpush1.xpose.msra.mxu0 0.0
    %2868 = vmatprep.subr.mxu0 0.0
    %2869 = vmatpush1.xpose.msra.mxu0 0.0
    %2870 = vmatprep.subr.mxu0 0.0
    %2871 = vmatpush1.xpose.msra.mxu0 0.0
    %2872 = vmatprep.subr.mxu0 0.0
    %2873 = vmatpush1.xpose.msra.mxu0 0.0
    %2874 = vmatprep.subr.mxu0 0.0
    %2875 = vmatpush1.xpose.msra.mxu0 0.0
    %2876 = vmatprep.subr.mxu0 0.0
    %2877 = vmatpush1.xpose.msra.mxu0 0.0
    %2878 = vmatprep.subr.mxu0 0.0
    %2879 = vmatpush1.xpose.msra.mxu0 0.0
    %2880 = vmatprep.subr.mxu0 0.0
    %2881 = vmatpush1.xpose.msra.mxu0 0.0
    %2882 = vmatprep.subr.mxu0 0.0
    %2883 = vmatpush1.xpose.msra.mxu0 0.0
    %2884 = vmatprep.mubr.f32.mxu0 0.0
    %2885 = vmatmul.mubr.f32.gmra.mrb[0].mxu0 %v2815
    %v2886 = vpop.f32.mrb[0].mxu0
    %v2887 = vadd.f32 0.0, %v2886
    %v2888 = vpop.f32.mrb[0].mxu0
    %2889 = vdwg.mxu0
    %v2891 = vsel %vm933, %v2099, 0
    %v2894 = vsel %vm933, %v2382, 0
    %2896 = vmatprep.subr.mxu0 0.0
    %2897 = vmatpush1.xpose.msra.mxu0 %v2894
    %2898 = vmatprep.subr.mxu0 0.0
    %2899 = vmatpush1.xpose.msra.mxu0 0.0
    %2900 = vmatprep.subr.mxu0 0.0
    %2901 = vmatpush1.xpose.msra.mxu0 0.0
    %2902 = vmatprep.subr.mxu0 0.0
    %2903 = vmatpush1.xpose.msra.mxu0 0.0
    %2904 = vmatprep.subr.mxu0 0.0
    %2905 = vmatpush1.xpose.msra.mxu0 0.0
    %2906 = vmatprep.subr.mxu0 0.0
    %2907 = vmatpush1.xpose.msra.mxu0 0.0
    %2908 = vmatprep.subr.mxu0 0.0
    %2909 = vmatpush1.xpose.msra.mxu0 0.0
    %2910 = vmatprep.subr.mxu0 0.0
    %2911 = vmatpush1.xpose.msra.mxu0 0.0
    %2912 = vmatprep.subr.mxu0 0.0
    %2913 = vmatpush1.xpose.msra.mxu0 0.0
    %2914 = vmatprep.subr.mxu0 0.0
    %2915 = vmatpush1.xpose.msra.mxu0 0.0
    %2916 = vmatprep.subr.mxu0 0.0
    %2917 = vmatpush1.xpose.msra.mxu0 0.0
    %2918 = vmatprep.subr.mxu0 0.0
    %2919 = vmatpush1.xpose.msra.mxu0 0.0
    %2920 = vmatprep.subr.mxu0 0.0
    %2921 = vmatpush1.xpose.msra.mxu0 0.0
    %2922 = vmatprep.subr.mxu0 0.0
    %2923 = vmatpush1.xpose.msra.mxu0 0.0
    %2924 = vmatprep.subr.mxu0 0.0
    %2925 = vmatpush1.xpose.msra.mxu0 0.0
    %2926 = vmatprep.subr.mxu0 0.0
    %2927 = vmatpush1.xpose.msra.mxu0 0.0
    %2928 = vmatprep.subr.mxu0 0.0
    %2929 = vmatpush1.xpose.msra.mxu0 0.0
    %2930 = vmatprep.subr.mxu0 0.0
    %2931 = vmatpush1.xpose.msra.mxu0 0.0
    %2932 = vmatprep.subr.mxu0 0.0
    %2933 = vmatpush1.xpose.msra.mxu0 0.0
    %2934 = vmatprep.subr.mxu0 0.0
    %2935 = vmatpush1.xpose.msra.mxu0 0.0
    %2936 = vmatprep.subr.mxu0 0.0
    %2937 = vmatpush1.xpose.msra.mxu0 0.0
    %2938 = vmatprep.subr.mxu0 0.0
    %2939 = vmatpush1.xpose.msra.mxu0 0.0
    %2940 = vmatprep.subr.mxu0 0.0
    %2941 = vmatpush1.xpose.msra.mxu0 0.0
    %2942 = vmatprep.subr.mxu0 0.0
    %2943 = vmatpush1.xpose.msra.mxu0 0.0
    %2944 = vmatprep.subr.mxu0 0.0
    %2945 = vmatpush1.xpose.msra.mxu0 0.0
    %2946 = vmatprep.subr.mxu0 0.0
    %2947 = vmatpush1.xpose.msra.mxu0 0.0
    %2948 = vmatprep.subr.mxu0 0.0
    %2949 = vmatpush1.xpose.msra.mxu0 0.0
    %2950 = vmatprep.subr.mxu0 0.0
    %2951 = vmatpush1.xpose.msra.mxu0 0.0
    %2952 = vmatprep.subr.mxu0 0.0
    %2953 = vmatpush1.xpose.msra.mxu0 0.0
    %2954 = vmatprep.subr.mxu0 0.0
    %2955 = vmatpush1.xpose.msra.mxu0 0.0
    %2956 = vmatprep.subr.mxu0 0.0
    %2957 = vmatpush1.xpose.msra.mxu0 0.0
    %2958 = vmatprep.subr.mxu0 0.0
    %2959 = vmatpush1.xpose.msra.mxu0 0.0
    %2960 = vmatprep.mubr.f32.mxu0 0.0
    %2961 = vmatmul.mubr.f32.gmra.mrb[0].mxu0 %v2891
    %v2962 = vpop.f32.mrb[0].mxu0
    %v2963 = vadd.f32 0.0, %v2962
    %v2964 = vpop.f32.mrb[0].mxu0
    %2965 = vdwg.mxu0
    %v2967 = vsel %vm933, %v2169, 0
    %v2970 = vsel %vm933, %v2452, 0
    %2972 = vmatprep.subr.mxu0 0.0
    %2973 = vmatpush1.xpose.msra.mxu0 %v2970
    %2974 = vmatprep.subr.mxu0 0.0
    %2975 = vmatpush1.xpose.msra.mxu0 0.0
    %2976 = vmatprep.subr.mxu0 0.0
    %2977 = vmatpush1.xpose.msra.mxu0 0.0
    %2978 = vmatprep.subr.mxu0 0.0
    %2979 = vmatpush1.xpose.msra.mxu0 0.0
    %2980 = vmatprep.subr.mxu0 0.0
    %2981 = vmatpush1.xpose.msra.mxu0 0.0
    %2982 = vmatprep.subr.mxu0 0.0
    %2983 = vmatpush1.xpose.msra.mxu0 0.0
    %2984 = vmatprep.subr.mxu0 0.0
    %2985 = vmatpush1.xpose.msra.mxu0 0.0
    %2986 = vmatprep.subr.mxu0 0.0
    %2987 = vmatpush1.xpose.msra.mxu0 0.0
    %2988 = vmatprep.subr.mxu0 0.0
    %2989 = vmatpush1.xpose.msra.mxu0 0.0
    %2990 = vmatprep.subr.mxu0 0.0
    %2991 = vmatpush1.xpose.msra.mxu0 0.0
    %2992 = vmatprep.subr.mxu0 0.0
    %2993 = vmatpush1.xpose.msra.mxu0 0.0
    %2994 = vmatprep.subr.mxu0 0.0
    %2995 = vmatpush1.xpose.msra.mxu0 0.0
    %2996 = vmatprep.subr.mxu0 0.0
    %2997 = vmatpush1.xpose.msra.mxu0 0.0
    %2998 = vmatprep.subr.mxu0 0.0
    %2999 = vmatpush1.xpose.msra.mxu0 0.0
    %3000 = vmatprep.subr.mxu0 0.0
    %3001 = vmatpush1.xpose.msra.mxu0 0.0
    %3002 = vmatprep.subr.mxu0 0.0
    %3003 = vmatpush1.xpose.msra.mxu0 0.0
    %3004 = vmatprep.subr.mxu0 0.0
    %3005 = vmatpush1.xpose.msra.mxu0 0.0
    %3006 = vmatprep.subr.mxu0 0.0
    %3007 = vmatpush1.xpose.msra.mxu0 0.0
    %3008 = vmatprep.subr.mxu0 0.0
    %3009 = vmatpush1.xpose.msra.mxu0 0.0
    %3010 = vmatprep.subr.mxu0 0.0
    %3011 = vmatpush1.xpose.msra.mxu0 0.0
    %3012 = vmatprep.subr.mxu0 0.0
    %3013 = vmatpush1.xpose.msra.mxu0 0.0
    %3014 = vmatprep.subr.mxu0 0.0
    %3015 = vmatpush1.xpose.msra.mxu0 0.0
    %3016 = vmatprep.subr.mxu0 0.0
    %3017 = vmatpush1.xpose.msra.mxu0 0.0
    %3018 = vmatprep.subr.mxu0 0.0
    %3019 = vmatpush1.xpose.msra.mxu0 0.0
    %3020 = vmatprep.subr.mxu0 0.0
    %3021 = vmatpush1.xpose.msra.mxu0 0.0
    %3022 = vmatprep.subr.mxu0 0.0
    %3023 = vmatpush1.xpose.msra.mxu0 0.0
    %3024 = vmatprep.subr.mxu0 0.0
    %3025 = vmatpush1.xpose.msra.mxu0 0.0
    %3026 = vmatprep.subr.mxu0 0.0
    %3027 = vmatpush1.xpose.msra.mxu0 0.0
    %3028 = vmatprep.subr.mxu0 0.0
    %3029 = vmatpush1.xpose.msra.mxu0 0.0
    %3030 = vmatprep.subr.mxu0 0.0
    %3031 = vmatpush1.xpose.msra.mxu0 0.0
    %3032 = vmatprep.subr.mxu0 0.0
    %3033 = vmatpush1.xpose.msra.mxu0 0.0
    %3034 = vmatprep.subr.mxu0 0.0
    %3035 = vmatpush1.xpose.msra.mxu0 0.0
    %3036 = vmatprep.mubr.f32.mxu0 0.0
    %3037 = vmatmul.mubr.f32.gmra.mrb[0].mxu0 %v2967
    %v3038 = vpop.f32.mrb[0].mxu0
    %v3039 = vadd.f32 0.0, %v3038
    %v3040 = vpop.f32.mrb[0].mxu0
    %3041 = vdwg.mxu0
    %s3042 = scalar_lea.vmem %s1, 8
    %v3043 = vld [vmem:[%s3042] sm:$0xff]
    %vm3044 = vcmp.eq.f32.partialorder %v3043, 0.0
    %v3045 = vsel %vm3044, 1, 0
    %vm3046 = vcmp.eq.s32.totalorder %v3045, 1
    %v3047 = vsel %vm3046, -1e-20, %v2811
    %v3048 = vsel %vm3046, -1e-20, %v2887
    %v3049 = vsel %vm3046, -1e-20, %v2963
    %v3050 = vsel %vm3046, -1e-20, %v3039
    %v3051 = vmul.f32 %v3047, 0.35355338
    %v3052 = vmul.f32 %v3048, 0.35355338
    %v3053 = vmul.f32 %v3049, 0.35355338
    %v3054 = vmul.f32 %v3050, 0.35355338
    %v3055 = vsel %vm933, %v3051, -inf
    %3056 = vmax.xlane.f32.xlu0 %v3055
    %v3057 = vpop.xlane.xlu0 %3056
    %v3058 = vsel %vm933, %v3052, -inf
    %3059 = vmax.xlane.f32.xlu0 %v3058
    %v3060 = vpop.xlane.xlu0 %3059
    %v3061 = vsel %vm933, %v3053, -inf
    %3062 = vmax.xlane.f32.xlu0 %v3061
    %v3063 = vpop.xlane.xlu0 %3062
    %v3064 = vsel %vm933, %v3054, -inf
    %3065 = vmax.xlane.f32.xlu0 %v3064
    %v3066 = vpop.xlane.xlu0 %3065
    %v3067 = vsub.f32 %v3051, %v3057
    %v3068 = vsub.f32 %v3052, %v3060
    %v3069 = vsub.f32 %v3053, %v3063
    %v3070 = vsub.f32 %v3054, %v3066
    %v3071 = vmul.f32 %v3067, 1.442695
    %v3072 = vpow.pop %v3071
    %v3073 = vmul.f32 %v3068, 1.442695
    %v3074 = vpow.pop %v3073
    %v3075 = vmul.f32 %v3069, 1.442695
    %v3076 = vpow.pop %v3075
    %v3077 = vmul.f32 %v3070, 1.442695
    %v3078 = vpow.pop %v3077
    %v3079 = vsel %vm933, %v3072, 0.0
    %3080 = vadd.xlane.f32.xlu0 %v3079
    %v3081 = vpop.xlane.xlu0 %3080
    %v3082 = vsel %vm933, %v3074, 0.0
    %3083 = vadd.xlane.f32.xlu0 %v3082
    %v3084 = vpop.xlane.xlu0 %3083
    %v3085 = vsel %vm933, %v3076, 0.0
    %3086 = vadd.xlane.f32.xlu0 %v3085
    %v3087 = vpop.xlane.xlu0 %3086
    %v3088 = vsel %vm933, %v3078, 0.0
    %3089 = vadd.xlane.f32.xlu0 %v3088
    %v3090 = vpop.xlane.xlu0 %3089
    %v3091 = vrcp.pop %v3081
    %v3092 = vrcp.pop %v3084
    %v3093 = vrcp.pop %v3087
    %v3094 = vrcp.pop %v3090
    %v3095 = vmul.f32 %v3072, %v3091
    %v3096 = vmul.f32 %v3074, %v3092
    %v3097 = vmul.f32 %v3076, %v3093
    %v3098 = vmul.f32 %v3078, %v3094
    %v3100 = vsel %vm933, %v3095, 0
    %3102 = vmatprep.subr.mxu0 0.0
    %3103 = vmatpush1.msra.mxu0 %v2525
    %3104 = vmatprep.subr.mxu0 0.0
    %3105 = vmatpush1.msra.mxu0 0.0
    %3106 = vmatprep.subr.mxu0 0.0
    %3107 = vmatpush1.msra.mxu0 0.0
    %3108 = vmatprep.subr.mxu0 0.0
    %3109 = vmatpush1.msra.mxu0 0.0
    %3110 = vmatprep.subr.mxu0 0.0
    %3111 = vmatpush1.msra.mxu0 0.0
    %3112 = vmatprep.subr.mxu0 0.0
    %3113 = vmatpush1.msra.mxu0 0.0
    %3114 = vmatprep.subr.mxu0 0.0
    %3115 = vmatpush1.msra.mxu0 0.0
    %3116 = vmatprep.subr.mxu0 0.0
    %3117 = vmatpush1.msra.mxu0 0.0
    %3118 = vmatprep.subr.mxu0 0.0
    %3119 = vmatpush1.msra.mxu0 0.0
    %3120 = vmatprep.subr.mxu0 0.0
    %3121 = vmatpush1.msra.mxu0 0.0
    %3122 = vmatprep.subr.mxu0 0.0
    %3123 = vmatpush1.msra.mxu0 0.0
    %3124 = vmatprep.subr.mxu0 0.0
    %3125 = vmatpush1.msra.mxu0 0.0
    %3126 = vmatprep.subr.mxu0 0.0
    %3127 = vmatpush1.msra.mxu0 0.0
    %3128 = vmatprep.subr.mxu0 0.0
    %3129 = vmatpush1.msra.mxu0 0.0
    %3130 = vmatprep.subr.mxu0 0.0
    %3131 = vmatpush1.msra.mxu0 0.0
    %3132 = vmatprep.subr.mxu0 0.0
    %3133 = vmatpush1.msra.mxu0 0.0
    %3134 = vmatprep.subr.mxu0 0.0
    %3135 = vmatpush1.msra.mxu0 0.0
    %3136 = vmatprep.subr.mxu0 0.0
    %3137 = vmatpush1.msra.mxu0 0.0
    %3138 = vmatprep.subr.mxu0 0.0
    %3139 = vmatpush1.msra.mxu0 0.0
    %3140 = vmatprep.subr.mxu0 0.0
    %3141 = vmatpush1.msra.mxu0 0.0
    %3142 = vmatprep.subr.mxu0 0.0
    %3143 = vmatpush1.msra.mxu0 0.0
    %3144 = vmatprep.subr.mxu0 0.0
    %3145 = vmatpush1.msra.mxu0 0.0
    %3146 = vmatprep.subr.mxu0 0.0
    %3147 = vmatpush1.msra.mxu0 0.0
    %3148 = vmatprep.subr.mxu0 0.0
    %3149 = vmatpush1.msra.mxu0 0.0
    %3150 = vmatprep.subr.mxu0 0.0
    %3151 = vmatpush1.msra.mxu0 0.0
    %3152 = vmatprep.subr.mxu0 0.0
    %3153 = vmatpush1.msra.mxu0 0.0
    %3154 = vmatprep.subr.mxu0 0.0
    %3155 = vmatpush1.msra.mxu0 0.0
    %3156 = vmatprep.subr.mxu0 0.0
    %3157 = vmatpush1.msra.mxu0 0.0
    %3158 = vmatprep.subr.mxu0 0.0
    %3159 = vmatpush1.msra.mxu0 0.0
    %3160 = vmatprep.subr.mxu0 0.0
    %3161 = vmatpush1.msra.mxu0 0.0
    %3162 = vmatprep.subr.mxu0 0.0
    %3163 = vmatpush1.msra.mxu0 0.0
    %3164 = vmatprep.subr.mxu0 0.0
    %3165 = vmatpush1.msra.mxu0 0.0
    %3166 = vmatprep.mubr.f32.mxu0 0.0
    %3167 = vmatmul.mubr.f32.gmra.mrb[0].mxu0 %v3100
    %v3168 = vpop.f32.mrb[0].mxu0
    %v3169 = vadd.f32 0.0, %v3168
    %v3170 = vpop.f32.mrb[0].mxu0
    %3171 = vdwg.mxu0
    %v3173 = vsel %vm933, %v3096, 0
    %3175 = vmatprep.subr.mxu0 0.0
    %3176 = vmatpush1.msra.mxu0 %v2595
    %3177 = vmatprep.subr.mxu0 0.0
    %3178 = vmatpush1.msra.mxu0 0.0
    %3179 = vmatprep.subr.mxu0 0.0
    %3180 = vmatpush1.msra.mxu0 0.0
    %3181 = vmatprep.subr.mxu0 0.0
    %3182 = vmatpush1.msra.mxu0 0.0
    %3183 = vmatprep.subr.mxu0 0.0
    %3184 = vmatpush1.msra.mxu0 0.0
    %3185 = vmatprep.subr.mxu0 0.0
    %3186 = vmatpush1.msra.mxu0 0.0
    %3187 = vmatprep.subr.mxu0 0.0
    %3188 = vmatpush1.msra.mxu0 0.0
    %3189 = vmatprep.subr.mxu0 0.0
    %3190 = vmatpush1.msra.mxu0 0.0
    %3191 = vmatprep.subr.mxu0 0.0
    %3192 = vmatpush1.msra.mxu0 0.0
    %3193 = vmatprep.subr.mxu0 0.0
    %3194 = vmatpush1.msra.mxu0 0.0
    %3195 = vmatprep.subr.mxu0 0.0
    %3196 = vmatpush1.msra.mxu0 0.0
    %3197 = vmatprep.subr.mxu0 0.0
    %3198 = vmatpush1.msra.mxu0 0.0
    %3199 = vmatprep.subr.mxu0 0.0
    %3200 = vmatpush1.msra.mxu0 0.0
    %3201 = vmatprep.subr.mxu0 0.0
    %3202 = vmatpush1.msra.mxu0 0.0
    %3203 = vmatprep.subr.mxu0 0.0
    %3204 = vmatpush1.msra.mxu0 0.0
    %3205 = vmatprep.subr.mxu0 0.0
    %3206 = vmatpush1.msra.mxu0 0.0
    %3207 = vmatprep.subr.mxu0 0.0
    %3208 = vmatpush1.msra.mxu0 0.0
    %3209 = vmatprep.subr.mxu0 0.0
    %3210 = vmatpush1.msra.mxu0 0.0
    %3211 = vmatprep.subr.mxu0 0.0
    %3212 = vmatpush1.msra.mxu0 0.0
    %3213 = vmatprep.subr.mxu0 0.0
    %3214 = vmatpush1.msra.mxu0 0.0
    %3215 = vmatprep.subr.mxu0 0.0
    %3216 = vmatpush1.msra.mxu0 0.0
    %3217 = vmatprep.subr.mxu0 0.0
    %3218 = vmatpush1.msra.mxu0 0.0
    %3219 = vmatprep.subr.mxu0 0.0
    %3220 = vmatpush1.msra.mxu0 0.0
    %3221 = vmatprep.subr.mxu0 0.0
    %3222 = vmatpush1.msra.mxu0 0.0
    %3223 = vmatprep.subr.mxu0 0.0
    %3224 = vmatpush1.msra.mxu0 0.0
    %3225 = vmatprep.subr.mxu0 0.0
    %3226 = vmatpush1.msra.mxu0 0.0
    %3227 = vmatprep.subr.mxu0 0.0
    %3228 = vmatpush1.msra.mxu0 0.0
    %3229 = vmatprep.subr.mxu0 0.0
    %3230 = vmatpush1.msra.mxu0 0.0
    %3231 = vmatprep.subr.mxu0 0.0
    %3232 = vmatpush1.msra.mxu0 0.0
    %3233 = vmatprep.subr.mxu0 0.0
    %3234 = vmatpush1.msra.mxu0 0.0
    %3235 = vmatprep.subr.mxu0 0.0
    %3236 = vmatpush1.msra.mxu0 0.0
    %3237 = vmatprep.subr.mxu0 0.0
    %3238 = vmatpush1.msra.mxu0 0.0
    %3239 = vmatprep.mubr.f32.mxu0 0.0
    %3240 = vmatmul.mubr.f32.gmra.mrb[0].mxu0 %v3173
    %v3241 = vpop.f32.mrb[0].mxu0
    %v3242 = vadd.f32 0.0, %v3241
    %v3243 = vpop.f32.mrb[0].mxu0
    %3244 = vdwg.mxu0
    %v3246 = vsel %vm933, %v3097, 0
    %3248 = vmatprep.subr.mxu0 0.0
    %3249 = vmatpush1.msra.mxu0 %v2665
    %3250 = vmatprep.subr.mxu0 0.0
    %3251 = vmatpush1.msra.mxu0 0.0
    %3252 = vmatprep.subr.mxu0 0.0
    %3253 = vmatpush1.msra.mxu0 0.0
    %3254 = vmatprep.subr.mxu0 0.0
    %3255 = vmatpush1.msra.mxu0 0.0
    %3256 = vmatprep.subr.mxu0 0.0
    %3257 = vmatpush1.msra.mxu0 0.0
    %3258 = vmatprep.subr.mxu0 0.0
    %3259 = vmatpush1.msra.mxu0 0.0
    %3260 = vmatprep.subr.mxu0 0.0
    %3261 = vmatpush1.msra.mxu0 0.0
    %3262 = vmatprep.subr.mxu0 0.0
    %3263 = vmatpush1.msra.mxu0 0.0
    %3264 = vmatprep.subr.mxu0 0.0
    %3265 = vmatpush1.msra.mxu0 0.0
    %3266 = vmatprep.subr.mxu0 0.0
    %3267 = vmatpush1.msra.mxu0 0.0
    %3268 = vmatprep.subr.mxu0 0.0
    %3269 = vmatpush1.msra.mxu0 0.0
    %3270 = vmatprep.subr.mxu0 0.0
    %3271 = vmatpush1.msra.mxu0 0.0
    %3272 = vmatprep.subr.mxu0 0.0
    %3273 = vmatpush1.msra.mxu0 0.0
    %3274 = vmatprep.subr.mxu0 0.0
    %3275 = vmatpush1.msra.mxu0 0.0
    %3276 = vmatprep.subr.mxu0 0.0
    %3277 = vmatpush1.msra.mxu0 0.0
    %3278 = vmatprep.subr.mxu0 0.0
    %3279 = vmatpush1.msra.mxu0 0.0
    %3280 = vmatprep.subr.mxu0 0.0
    %3281 = vmatpush1.msra.mxu0 0.0
    %3282 = vmatprep.subr.mxu0 0.0
    %3283 = vmatpush1.msra.mxu0 0.0
    %3284 = vmatprep.subr.mxu0 0.0
    %3285 = vmatpush1.msra.mxu0 0.0
    %3286 = vmatprep.subr.mxu0 0.0
    %3287 = vmatpush1.msra.mxu0 0.0
    %3288 = vmatprep.subr.mxu0 0.0
    %3289 = vmatpush1.msra.mxu0 0.0
    %3290 = vmatprep.subr.mxu0 0.0
    %3291 = vmatpush1.msra.mxu0 0.0
    %3292 = vmatprep.subr.mxu0 0.0
    %3293 = vmatpush1.msra.mxu0 0.0
    %3294 = vmatprep.subr.mxu0 0.0
    %3295 = vmatpush1.msra.mxu0 0.0
    %3296 = vmatprep.subr.mxu0 0.0
    %3297 = vmatpush1.msra.mxu0 0.0
    %3298 = vmatprep.subr.mxu0 0.0
    %3299 = vmatpush1.msra.mxu0 0.0
    %3300 = vmatprep.subr.mxu0 0.0
    %3301 = vmatpush1.msra.mxu0 0.0
    %3302 = vmatprep.subr.mxu0 0.0
    %3303 = vmatpush1.msra.mxu0 0.0
    %3304 = vmatprep.subr.mxu0 0.0
    %3305 = vmatpush1.msra.mxu0 0.0
    %3306 = vmatprep.subr.mxu0 0.0
    %3307 = vmatpush1.msra.mxu0 0.0
    %3308 = vmatprep.subr.mxu0 0.0
    %3309 = vmatpush1.msra.mxu0 0.0
    %3310 = vmatprep.subr.mxu0 0.0
    %3311 = vmatpush1.msra.mxu0 0.0
    %3312 = vmatprep.mubr.f32.mxu0 0.0
    %3313 = vmatmul.mubr.f32.gmra.mrb[0].mxu0 %v3246
    %v3314 = vpop.f32.mrb[0].mxu0
    %v3315 = vadd.f32 0.0, %v3314
    %v3316 = vpop.f32.mrb[0].mxu0
    %3317 = vdwg.mxu0
    %v3319 = vsel %vm933, %v3098, 0
    %3321 = vmatprep.subr.mxu0 0.0
    %3322 = vmatpush1.msra.mxu0 %v2735
    %3323 = vmatprep.subr.mxu0 0.0
    %3324 = vmatpush1.msra.mxu0 0.0
    %3325 = vmatprep.subr.mxu0 0.0
    %3326 = vmatpush1.msra.mxu0 0.0
    %3327 = vmatprep.subr.mxu0 0.0
    %3328 = vmatpush1.msra.mxu0 0.0
    %3329 = vmatprep.subr.mxu0 0.0
    %3330 = vmatpush1.msra.mxu0 0.0
    %3331 = vmatprep.subr.mxu0 0.0
    %3332 = vmatpush1.msra.mxu0 0.0
    %3333 = vmatprep.subr.mxu0 0.0
    %3334 = vmatpush1.msra.mxu0 0.0
    %3335 = vmatprep.subr.mxu0 0.0
    %3336 = vmatpush1.msra.mxu0 0.0
    %3337 = vmatprep.subr.mxu0 0.0
    %3338 = vmatpush1.msra.mxu0 0.0
    %3339 = vmatprep.subr.mxu0 0.0
    %3340 = vmatpush1.msra.mxu0 0.0
    %3341 = vmatprep.subr.mxu0 0.0
    %3342 = vmatpush1.msra.mxu0 0.0
    %3343 = vmatprep.subr.mxu0 0.0
    %3344 = vmatpush1.msra.mxu0 0.0
    %3345 = vmatprep.subr.mxu0 0.0
    %3346 = vmatpush1.msra.mxu0 0.0
    %3347 = vmatprep.subr.mxu0 0.0
    %3348 = vmatpush1.msra.mxu0 0.0
    %3349 = vmatprep.subr.mxu0 0.0
    %3350 = vmatpush1.msra.mxu0 0.0
    %3351 = vmatprep.subr.mxu0 0.0
    %3352 = vmatpush1.msra.mxu0 0.0
    %3353 = vmatprep.subr.mxu0 0.0
    %3354 = vmatpush1.msra.mxu0 0.0
    %3355 = vmatprep.subr.mxu0 0.0
    %3356 = vmatpush1.msra.mxu0 0.0
    %3357 = vmatprep.subr.mxu0 0.0
    %3358 = vmatpush1.msra.mxu0 0.0
    %3359 = vmatprep.subr.mxu0 0.0
    %3360 = vmatpush1.msra.mxu0 0.0
    %3361 = vmatprep.subr.mxu0 0.0
    %3362 = vmatpush1.msra.mxu0 0.0
    %3363 = vmatprep.subr.mxu0 0.0
    %3364 = vmatpush1.msra.mxu0 0.0
    %3365 = vmatprep.subr.mxu0 0.0
    %3366 = vmatpush1.msra.mxu0 0.0
    %3367 = vmatprep.subr.mxu0 0.0
    %3368 = vmatpush1.msra.mxu0 0.0
    %3369 = vmatprep.subr.mxu0 0.0
    %3370 = vmatpush1.msra.mxu0 0.0
    %3371 = vmatprep.subr.mxu0 0.0
    %3372 = vmatpush1.msra.mxu0 0.0
    %3373 = vmatprep.subr.mxu0 0.0
    %3374 = vmatpush1.msra.mxu0 0.0
    %3375 = vmatprep.subr.mxu0 0.0
    %3376 = vmatpush1.msra.mxu0 0.0
    %3377 = vmatprep.subr.mxu0 0.0
    %3378 = vmatpush1.msra.mxu0 0.0
    %3379 = vmatprep.subr.mxu0 0.0
    %3380 = vmatpush1.msra.mxu0 0.0
    %3381 = vmatprep.subr.mxu0 0.0
    %3382 = vmatpush1.msra.mxu0 0.0
    %3383 = vmatprep.subr.mxu0 0.0
    %3384 = vmatpush1.msra.mxu0 0.0
    %3385 = vmatprep.mubr.f32.mxu0 0.0
    %3386 = vmatmul.mubr.f32.gmra.mrb[0].mxu0 %v3319
    %v3387 = vpop.f32.mrb[0].mxu0
    %v3388 = vadd.f32 0.0, %v3387
    %v3389 = vpop.f32.mrb[0].mxu0
    %3390 = vdwg.mxu0
    %v3392 = vsel %vm933, %v3169, 0
    %3394 = vmatprep.subr.mxu0 0.0
    %3395 = vmatpush1.msra.mxu0 %v75
    %3396 = vmatprep.subr.mxu0 0.0
    %3397 = vmatpush1.msra.mxu0 0.0
    %3398 = vmatprep.subr.mxu0 0.0
    %3399 = vmatpush1.msra.mxu0 0.0
    %3400 = vmatprep.subr.mxu0 0.0
    %3401 = vmatpush1.msra.mxu0 0.0
    %3402 = vmatprep.subr.mxu0 0.0
    %3403 = vmatpush1.msra.mxu0 0.0
    %3404 = vmatprep.subr.mxu0 0.0
    %3405 = vmatpush1.msra.mxu0 0.0
    %3406 = vmatprep.subr.mxu0 0.0
    %3407 = vmatpush1.msra.mxu0 0.0
    %3408 = vmatprep.subr.mxu0 0.0
    %3409 = vmatpush1.msra.mxu0 0.0
    %3410 = vmatprep.subr.mxu0 0.0
    %3411 = vmatpush1.msra.mxu0 0.0
    %3412 = vmatprep.subr.mxu0 0.0
    %3413 = vmatpush1.msra.mxu0 0.0
    %3414 = vmatprep.subr.mxu0 0.0
    %3415 = vmatpush1.msra.mxu0 0.0
    %3416 = vmatprep.subr.mxu0 0.0
    %3417 = vmatpush1.msra.mxu0 0.0
    %3418 = vmatprep.subr.mxu0 0.0
    %3419 = vmatpush1.msra.mxu0 0.0
    %3420 = vmatprep.subr.mxu0 0.0
    %3421 = vmatpush1.msra.mxu0 0.0
    %3422 = vmatprep.subr.mxu0 0.0
    %3423 = vmatpush1.msra.mxu0 0.0
    %3424 = vmatprep.subr.mxu0 0.0
    %3425 = vmatpush1.msra.mxu0 0.0
    %3426 = vmatprep.subr.mxu0 0.0
    %3427 = vmatpush1.msra.mxu0 0.0
    %3428 = vmatprep.subr.mxu0 0.0
    %3429 = vmatpush1.msra.mxu0 0.0
    %3430 = vmatprep.subr.mxu0 0.0
    %3431 = vmatpush1.msra.mxu0 0.0
    %3432 = vmatprep.subr.mxu0 0.0
    %3433 = vmatpush1.msra.mxu0 0.0
    %3434 = vmatprep.subr.mxu0 0.0
    %3435 = vmatpush1.msra.mxu0 0.0
    %3436 = vmatprep.subr.mxu0 0.0
    %3437 = vmatpush1.msra.mxu0 0.0
    %3438 = vmatprep.subr.mxu0 0.0
    %3439 = vmatpush1.msra.mxu0 0.0
    %3440 = vmatprep.subr.mxu0 0.0
    %3441 = vmatpush1.msra.mxu0 0.0
    %3442 = vmatprep.subr.mxu0 0.0
    %3443 = vmatpush1.msra.mxu0 0.0
    %3444 = vmatprep.subr.mxu0 0.0
    %3445 = vmatpush1.msra.mxu0 0.0
    %3446 = vmatprep.subr.mxu0 0.0
    %3447 = vmatpush1.msra.mxu0 0.0
    %3448 = vmatprep.subr.mxu0 0.0
    %3449 = vmatpush1.msra.mxu0 0.0
    %3450 = vmatprep.subr.mxu0 0.0
    %3451 = vmatpush1.msra.mxu0 0.0
    %3452 = vmatprep.subr.mxu0 0.0
    %3453 = vmatpush1.msra.mxu0 0.0
    %3454 = vmatprep.subr.mxu0 0.0
    %3455 = vmatpush1.msra.mxu0 0.0
    %3456 = vmatprep.subr.mxu0 0.0
    %3457 = vmatpush1.msra.mxu0 0.0
    %3458 = vmatprep.mubr.f32.mxu0 0.0
    %3459 = vmatmul.mubr.f32.gmra.mrb[0].mxu0 %v3392
    %v3460 = vpop.f32.mrb[0].mxu0
    %v3461 = vadd.f32 0.0, %v3460
    %v3462 = vpop.f32.mrb[0].mxu0
    %3463 = vdwg.mxu0
    %v3465 = vsel %vm933, %v3242, 0
    %3467 = vmatprep.subr.mxu0 0.0
    %3468 = vmatpush1.msra.mxu0 %v76
    %3469 = vmatprep.subr.mxu0 0.0
    %3470 = vmatpush1.msra.mxu0 0.0
    %3471 = vmatprep.subr.mxu0 0.0
    %3472 = vmatpush1.msra.mxu0 0.0
    %3473 = vmatprep.subr.mxu0 0.0
    %3474 = vmatpush1.msra.mxu0 0.0
    %3475 = vmatprep.subr.mxu0 0.0
    %3476 = vmatpush1.msra.mxu0 0.0
    %3477 = vmatprep.subr.mxu0 0.0
    %3478 = vmatpush1.msra.mxu0 0.0
    %3479 = vmatprep.subr.mxu0 0.0
    %3480 = vmatpush1.msra.mxu0 0.0
    %3481 = vmatprep.subr.mxu0 0.0
    %3482 = vmatpush1.msra.mxu0 0.0
    %3483 = vmatprep.subr.mxu0 0.0
    %3484 = vmatpush1.msra.mxu0 0.0
    %3485 = vmatprep.subr.mxu0 0.0
    %3486 = vmatpush1.msra.mxu0 0.0
    %3487 = vmatprep.subr.mxu0 0.0
    %3488 = vmatpush1.msra.mxu0 0.0
    %3489 = vmatprep.subr.mxu0 0.0
    %3490 = vmatpush1.msra.mxu0 0.0
    %3491 = vmatprep.subr.mxu0 0.0
    %3492 = vmatpush1.msra.mxu0 0.0
    %3493 = vmatprep.subr.mxu0 0.0
    %3494 = vmatpush1.msra.mxu0 0.0
    %3495 = vmatprep.subr.mxu0 0.0
    %3496 = vmatpush1.msra.mxu0 0.0
    %3497 = vmatprep.subr.mxu0 0.0
    %3498 = vmatpush1.msra.mxu0 0.0
    %3499 = vmatprep.subr.mxu0 0.0
    %3500 = vmatpush1.msra.mxu0 0.0
    %3501 = vmatprep.subr.mxu0 0.0
    %3502 = vmatpush1.msra.mxu0 0.0
    %3503 = vmatprep.subr.mxu0 0.0
    %3504 = vmatpush1.msra.mxu0 0.0
    %3505 = vmatprep.subr.mxu0 0.0
    %3506 = vmatpush1.msra.mxu0 0.0
    %3507 = vmatprep.subr.mxu0 0.0
    %3508 = vmatpush1.msra.mxu0 0.0
    %3509 = vmatprep.subr.mxu0 0.0
    %3510 = vmatpush1.msra.mxu0 0.0
    %3511 = vmatprep.subr.mxu0 0.0
    %3512 = vmatpush1.msra.mxu0 0.0
    %3513 = vmatprep.subr.mxu0 0.0
    %3514 = vmatpush1.msra.mxu0 0.0
    %3515 = vmatprep.subr.mxu0 0.0
    %3516 = vmatpush1.msra.mxu0 0.0
    %3517 = vmatprep.subr.mxu0 0.0
    %3518 = vmatpush1.msra.mxu0 0.0
    %3519 = vmatprep.subr.mxu0 0.0
    %3520 = vmatpush1.msra.mxu0 0.0
    %3521 = vmatprep.subr.mxu0 0.0
    %3522 = vmatpush1.msra.mxu0 0.0
    %3523 = vmatprep.subr.mxu0 0.0
    %3524 = vmatpush1.msra.mxu0 0.0
    %3525 = vmatprep.subr.mxu0 0.0
    %3526 = vmatpush1.msra.mxu0 0.0
    %3527 = vmatprep.subr.mxu0 0.0
    %3528 = vmatpush1.msra.mxu0 0.0
    %3529 = vmatprep.subr.mxu0 0.0
    %3530 = vmatpush1.msra.mxu0 0.0
    %3531 = vmatprep.mubr.f32.mxu0 0.0
    %3532 = vmatmul.mubr.f32.gmra.mrb[0].mxu0 %v3465
    %v3533 = vpop.f32.mrb[0].mxu0
    %v3534 = vadd.f32 0.0, %v3533
    %v3535 = vpop.f32.mrb[0].mxu0
    %3536 = vdwg.mxu0
    %v3538 = vsel %vm933, %v3315, 0
    %3540 = vmatprep.subr.mxu0 0.0
    %3541 = vmatpush1.msra.mxu0 %v77
    %3542 = vmatprep.subr.mxu0 0.0
    %3543 = vmatpush1.msra.mxu0 0.0
    %3544 = vmatprep.subr.mxu0 0.0
    %3545 = vmatpush1.msra.mxu0 0.0
    %3546 = vmatprep.subr.mxu0 0.0
    %3547 = vmatpush1.msra.mxu0 0.0
    %3548 = vmatprep.subr.mxu0 0.0
    %3549 = vmatpush1.msra.mxu0 0.0
    %3550 = vmatprep.subr.mxu0 0.0
    %3551 = vmatpush1.msra.mxu0 0.0
    %3552 = vmatprep.subr.mxu0 0.0
    %3553 = vmatpush1.msra.mxu0 0.0
    %3554 = vmatprep.subr.mxu0 0.0
    %3555 = vmatpush1.msra.mxu0 0.0
    %3556 = vmatprep.subr.mxu0 0.0
    %3557 = vmatpush1.msra.mxu0 0.0
    %3558 = vmatprep.subr.mxu0 0.0
    %3559 = vmatpush1.msra.mxu0 0.0
    %3560 = vmatprep.subr.mxu0 0.0
    %3561 = vmatpush1.msra.mxu0 0.0
    %3562 = vmatprep.subr.mxu0 0.0
    %3563 = vmatpush1.msra.mxu0 0.0
    %3564 = vmatprep.subr.mxu0 0.0
    %3565 = vmatpush1.msra.mxu0 0.0
    %3566 = vmatprep.subr.mxu0 0.0
    %3567 = vmatpush1.msra.mxu0 0.0
    %3568 = vmatprep.subr.mxu0 0.0
    %3569 = vmatpush1.msra.mxu0 0.0
    %3570 = vmatprep.subr.mxu0 0.0
    %3571 = vmatpush1.msra.mxu0 0.0
    %3572 = vmatprep.subr.mxu0 0.0
    %3573 = vmatpush1.msra.mxu0 0.0
    %3574 = vmatprep.subr.mxu0 0.0
    %3575 = vmatpush1.msra.mxu0 0.0
    %3576 = vmatprep.subr.mxu0 0.0
    %3577 = vmatpush1.msra.mxu0 0.0
    %3578 = vmatprep.subr.mxu0 0.0
    %3579 = vmatpush1.msra.mxu0 0.0
    %3580 = vmatprep.subr.mxu0 0.0
    %3581 = vmatpush1.msra.mxu0 0.0
    %3582 = vmatprep.subr.mxu0 0.0
    %3583 = vmatpush1.msra.mxu0 0.0
    %3584 = vmatprep.subr.mxu0 0.0
    %3585 = vmatpush1.msra.mxu0 0.0
    %3586 = vmatprep.subr.mxu0 0.0
    %3587 = vmatpush1.msra.mxu0 0.0
    %3588 = vmatprep.subr.mxu0 0.0
    %3589 = vmatpush1.msra.mxu0 0.0
    %3590 = vmatprep.subr.mxu0 0.0
    %3591 = vmatpush1.msra.mxu0 0.0
    %3592 = vmatprep.subr.mxu0 0.0
    %3593 = vmatpush1.msra.mxu0 0.0
    %3594 = vmatprep.subr.mxu0 0.0
    %3595 = vmatpush1.msra.mxu0 0.0
    %3596 = vmatprep.subr.mxu0 0.0
    %3597 = vmatpush1.msra.mxu0 0.0
    %3598 = vmatprep.subr.mxu0 0.0
    %3599 = vmatpush1.msra.mxu0 0.0
    %3600 = vmatprep.subr.mxu0 0.0
    %3601 = vmatpush1.msra.mxu0 0.0
    %3602 = vmatprep.subr.mxu0 0.0
    %3603 = vmatpush1.msra.mxu0 0.0
    %3604 = vmatprep.mubr.f32.mxu0 0.0
    %3605 = vmatmul.mubr.f32.gmra.mrb[0].mxu0 %v3538
    %v3606 = vpop.f32.mrb[0].mxu0
    %v3607 = vadd.f32 0.0, %v3606
    %v3608 = vpop.f32.mrb[0].mxu0
    %3609 = vdwg.mxu0
    %v3611 = vsel %vm933, %v3388, 0
    %3613 = vmatprep.subr.mxu0 0.0
    %3614 = vmatpush1.msra.mxu0 %v78
    %3615 = vmatprep.subr.mxu0 0.0
    %3616 = vmatpush1.msra.mxu0 0.0
    %3617 = vmatprep.subr.mxu0 0.0
    %3618 = vmatpush1.msra.mxu0 0.0
    %3619 = vmatprep.subr.mxu0 0.0
    %3620 = vmatpush1.msra.mxu0 0.0
    %3621 = vmatprep.subr.mxu0 0.0
    %3622 = vmatpush1.msra.mxu0 0.0
    %3623 = vmatprep.subr.mxu0 0.0
    %3624 = vmatpush1.msra.mxu0 0.0
    %3625 = vmatprep.subr.mxu0 0.0
    %3626 = vmatpush1.msra.mxu0 0.0
    %3627 = vmatprep.subr.mxu0 0.0
    %3628 = vmatpush1.msra.mxu0 0.0
    %3629 = vmatprep.subr.mxu0 0.0
    %3630 = vmatpush1.msra.mxu0 0.0
    %3631 = vmatprep.subr.mxu0 0.0
    %3632 = vmatpush1.msra.mxu0 0.0
    %3633 = vmatprep.subr.mxu0 0.0
    %3634 = vmatpush1.msra.mxu0 0.0
    %3635 = vmatprep.subr.mxu0 0.0
    %3636 = vmatpush1.msra.mxu0 0.0
    %3637 = vmatprep.subr.mxu0 0.0
    %3638 = vmatpush1.msra.mxu0 0.0
    %3639 = vmatprep.subr.mxu0 0.0
    %3640 = vmatpush1.msra.mxu0 0.0
    %3641 = vmatprep.subr.mxu0 0.0
    %3642 = vmatpush1.msra.mxu0 0.0
    %3643 = vmatprep.subr.mxu0 0.0
    %3644 = vmatpush1.msra.mxu0 0.0
    %3645 = vmatprep.subr.mxu0 0.0
    %3646 = vmatpush1.msra.mxu0 0.0
    %3647 = vmatprep.subr.mxu0 0.0
    %3648 = vmatpush1.msra.mxu0 0.0
    %3649 = vmatprep.subr.mxu0 0.0
    %3650 = vmatpush1.msra.mxu0 0.0
    %3651 = vmatprep.subr.mxu0 0.0
    %3652 = vmatpush1.msra.mxu0 0.0
    %3653 = vmatprep.subr.mxu0 0.0
    %3654 = vmatpush1.msra.mxu0 0.0
    %3655 = vmatprep.subr.mxu0 0.0
    %3656 = vmatpush1.msra.mxu0 0.0
    %3657 = vmatprep.subr.mxu0 0.0
    %3658 = vmatpush1.msra.mxu0 0.0
    %3659 = vmatprep.subr.mxu0 0.0
    %3660 = vmatpush1.msra.mxu0 0.0
    %3661 = vmatprep.subr.mxu0 0.0
    %3662 = vmatpush1.msra.mxu0 0.0
    %3663 = vmatprep.subr.mxu0 0.0
    %3664 = vmatpush1.msra.mxu0 0.0
    %3665 = vmatprep.subr.mxu0 0.0
    %3666 = vmatpush1.msra.mxu0 0.0
    %3667 = vmatprep.subr.mxu0 0.0
    %3668 = vmatpush1.msra.mxu0 0.0
    %3669 = vmatprep.subr.mxu0 0.0
    %3670 = vmatpush1.msra.mxu0 0.0
    %3671 = vmatprep.subr.mxu0 0.0
    %3672 = vmatpush1.msra.mxu0 0.0
    %3673 = vmatprep.subr.mxu0 0.0
    %3674 = vmatpush1.msra.mxu0 0.0
    %3675 = vmatprep.subr.mxu0 0.0
    %3676 = vmatpush1.msra.mxu0 0.0
    %3677 = vmatprep.mubr.f32.mxu0 0.0
    %3678 = vmatmul.mubr.f32.gmra.mrb[0].mxu0 %v3611
    %v3679 = vpop.f32.mrb[0].mxu0
    %v3680 = vadd.f32 0.0, %v3679
    %v3681 = vpop.f32.mrb[0].mxu0
    %3682 = vdwg.mxu0
    %v3683 = vsel %vm83, %v3461, 0.0
    %v3684 = vsel %vm83, %v3534, 0.0
    %v3685 = vadd.f32 %v3683, %v3684
    %v3686 = vsel %vm83, %v3607, 0.0
    %v3687 = vadd.f32 %v3685, %v3686
    %v3688 = vsel %vm83, %v3680, 0.0
    %v3689 = vadd.f32 %v3687, %v3688
    %v3690 = vlaneseq
    %v3691 = vshrl.u32 %v3690, 7
    %v3692 = vsub.s32 0, %v3691
    %v3693 = vrot.slane %v79, %v3692
    %v3694 = vadd.f32 %v1884, %v3693
    %v3695 = vadd.f32 %v3689, %v3693
    %v3696 = vadd.f32 %v3694, %v80
    %v3697 = vadd.f32 %v3695, %v1886
    %v3698 = vsel %vm83, %v3696, 0.0
    %3699 = vadd.xlane.f32.xlu0 %v3698
    %v3700 = vpop.xlane.xlu0 %3699
    %v3701 = vsel %vm83, %v3697, 0.0
    %3702 = vadd.xlane.f32.xlu0 %v3701
    %v3703 = vpop.xlane.xlu0 %3702
    %v3704 = vrcp.pop 32.0
    %v3705 = vmul.f32 %v3700, %v3704
    %v3706 = vmul.f32 %v3703, %v3704
    %v3707 = vsub.f32 %v3696, %v3705
    %v3708 = vsub.f32 %v3697, %v3706
    %v3709 = vmul.f32 %v3707, %v3707
    %v3710 = vmul.f32 %v3708, %v3708
    %v3711 = vsel %vm83, %v3709, 0.0
    %3712 = vadd.xlane.f32.xlu0 %v3711
    %v3713 = vpop.xlane.xlu0 %3712
    %v3714 = vsel %vm83, %v3710, 0.0
    %3715 = vadd.xlane.f32.xlu0 %v3714
    %v3716 = vpop.xlane.xlu0 %3715
    %v3717 = vmul.f32 %v3713, %v3704
    %v3718 = vmul.f32 %v3716, %v3704
    %v3719 = vadd.f32 %v3717, 1e-05
    %v3720 = vadd.f32 %v3718, 1e-05
    %v3721 = vrsqrt.pop %v3719
    %v3722 = vrsqrt.pop %v3720
    %v3723 = vmul.f32 %v3707, %v3721
    %v3724 = vmul.f32 %v3708, %v3722
    %v3725 = vlaneseq
    %v3726 = vshrl.u32 %v3725, 7
    %v3727 = vsub.s32 1, %v3726
    %v3728 = vrot.slane %v79, %v3727
    %v3729 = vmul.f32 %v3723, %v3728
    %v3730 = vmul.f32 %v3724, %v3728
    %v3731 = vlaneseq
    %v3732 = vshrl.u32 %v3731, 7
    %v3733 = vsub.s32 2, %v3732
    %v3734 = vrot.slane %v79, %v3733
    %v3735 = vadd.f32 %v3729, %v3734
    %v3736 = vadd.f32 %v3730, %v3734
    %v3737 = vld [vmem:[%s4] sm:$0xff]
    %v3738 = vld [vmem:[%s4 + $0x8] sm:$0xff]
    %v3739 = vld [vmem:[%s4 + $0x10] sm:$0xff]
    %v3740 = vld [vmem:[%s4 + $0x18] sm:$0xff]
    %v3741 = vlaneseq
    %v3742 = vshrl.u32 %v3741, 7
    %v3743 = vsub.s32 6, %v3742
    %v3744 = vrot.slane %v79, %v3743
    %v3746 = vsel %vm83, %v3735, 0
    %v3749 = vsel %vm83, %v3736, 0
    %3751 = vmatprep.subr.mxu0 0.0
    %3752 = vmatpush1.msra.mxu0 %v3737
    %3753 = vmatprep.subr.mxu0 0.0
    %3754 = vmatpush1.msra.mxu0 %v3738
    %3755 = vmatprep.subr.mxu0 0.0
    %3756 = vmatpush1.msra.mxu0 %v3739
    %3757 = vmatprep.subr.mxu0 0.0
    %3758 = vmatpush1.msra.mxu0 %v3740
    %3759 = vmatprep.subr.mxu0 0.0
    %3760 = vmatpush1.msra.mxu0 0.0
    %3761 = vmatprep.subr.mxu0 0.0
    %3762 = vmatpush1.msra.mxu0 0.0
    %3763 = vmatprep.subr.mxu0 0.0
    %3764 = vmatpush1.msra.mxu0 0.0
    %3765 = vmatprep.subr.mxu0 0.0
    %3766 = vmatpush1.msra.mxu0 0.0
    %3767 = vmatprep.subr.mxu0 0.0
    %3768 = vmatpush1.msra.mxu0 0.0
    %3769 = vmatprep.subr.mxu0 0.0
    %3770 = vmatpush1.msra.mxu0 0.0
    %3771 = vmatprep.subr.mxu0 0.0
    %3772 = vmatpush1.msra.mxu0 0.0
    %3773 = vmatprep.subr.mxu0 0.0
    %3774 = vmatpush1.msra.mxu0 0.0
    %3775 = vmatprep.subr.mxu0 0.0
    %3776 = vmatpush1.msra.mxu0 0.0
    %3777 = vmatprep.subr.mxu0 0.0
    %3778 = vmatpush1.msra.mxu0 0.0
    %3779 = vmatprep.subr.mxu0 0.0
    %3780 = vmatpush1.msra.mxu0 0.0
    %3781 = vmatprep.subr.mxu0 0.0
    %3782 = vmatpush1.msra.mxu0 0.0
    %3783 = vmatprep.subr.mxu0 0.0
    %3784 = vmatpush1.msra.mxu0 0.0
    %3785 = vmatprep.subr.mxu0 0.0
    %3786 = vmatpush1.msra.mxu0 0.0
    %3787 = vmatprep.subr.mxu0 0.0
    %3788 = vmatpush1.msra.mxu0 0.0
    %3789 = vmatprep.subr.mxu0 0.0
    %3790 = vmatpush1.msra.mxu0 0.0
    %3791 = vmatprep.subr.mxu0 0.0
    %3792 = vmatpush1.msra.mxu0 0.0
    %3793 = vmatprep.subr.mxu0 0.0
    %3794 = vmatpush1.msra.mxu0 0.0
    %3795 = vmatprep.subr.mxu0 0.0
    %3796 = vmatpush1.msra.mxu0 0.0
    %3797 = vmatprep.subr.mxu0 0.0
    %3798 = vmatpush1.msra.mxu0 0.0
    %3799 = vmatprep.subr.mxu0 0.0
    %3800 = vmatpush1.msra.mxu0 0.0
    %3801 = vmatprep.subr.mxu0 0.0
    %3802 = vmatpush1.msra.mxu0 0.0
    %3803 = vmatprep.subr.mxu0 0.0
    %3804 = vmatpush1.msra.mxu0 0.0
    %3805 = vmatprep.subr.mxu0 0.0
    %3806 = vmatpush1.msra.mxu0 0.0
    %3807 = vmatprep.subr.mxu0 0.0
    %3808 = vmatpush1.msra.mxu0 0.0
    %3809 = vmatprep.subr.mxu0 0.0
    %3810 = vmatpush1.msra.mxu0 0.0
    %3811 = vmatprep.subr.mxu0 0.0
    %3812 = vmatpush1.msra.mxu0 0.0
    %3813 = vmatprep.subr.mxu0 0.0
    %3814 = vmatpush1.msra.mxu0 0.0
    %3815 = vmatprep.mubr.f32.mxu0 0.0
    %3816 = vmatmul.mubr.f32.gmra.mrb[0].mxu0 %v3746
    %v3817 = vpop.f32.mrb[0].mxu0
    %v3818 = vadd.f32 %v3744, %v3817
    %v3819 = vpop.f32.mrb[0].mxu0
    %3820 = vmatprep.mubr.f32.mxu0 0.0
    %3821 = vmatmul.mubr.f32.gmra.mrb[0].mxu0 %v3749
    %v3822 = vpop.f32.mrb[0].mxu0
    %v3823 = vadd.f32 %v3744, %v3822
    %v3824 = vpop.f32.mrb[0].mxu0
    %3825 = vdwg.mxu0
    %v3826 = vmax.f32 %v3818, 0.0
    %v3827 = vmax.f32 %v3823, 0.0
    %v3828 = vld [vmem:[%s5] sm:$0xff]
    %v3829 = vld [vmem:[%s5 + $0x8] sm:$0xff]
    %v3830 = vld [vmem:[%s5 + $0x10] sm:$0xff]
    %v3831 = vld [vmem:[%s5 + $0x18] sm:$0xff]
    %v3832 = vld [vmem:[%s5 + $0x20] sm:$0xff]
    %v3833 = vld [vmem:[%s5 + $0x28] sm:$0xff]
    %v3834 = vld [vmem:[%s5 + $0x30] sm:$0xff]
    %v3835 = vld [vmem:[%s5 + $0x38] sm:$0xff]
    %v3836 = vld [vmem:[%s5 + $0x40] sm:$0xff]
    %v3837 = vld [vmem:[%s5 + $0x48] sm:$0xff]
    %v3838 = vld [vmem:[%s5 + $0x50] sm:$0xff]
    %v3839 = vld [vmem:[%s5 + $0x58] sm:$0xff]
    %v3840 = vld [vmem:[%s5 + $0x60] sm:$0xff]
    %v3841 = vld [vmem:[%s5 + $0x68] sm:$0xff]
    %v3842 = vld [vmem:[%s5 + $0x70] sm:$0xff]
    %v3843 = vld [vmem:[%s5 + $0x78] sm:$0xff]
    %v3844 = vlaneseq
    %v3845 = vshrl.u32 %v3844, 7
    %v3846 = vsub.s32 5, %v3845
    %v3847 = vrot.slane %v79, %v3846
    %3848 = vmatprep.subr.mxu0 0.0
    %3849 = vmatpush1.msra.mxu0 %v3828
    %3850 = vmatprep.subr.mxu0 0.0
    %3851 = vmatpush1.msra.mxu0 %v3829
    %3852 = vmatprep.subr.mxu0 0.0
    %3853 = vmatpush1.msra.mxu0 %v3830
    %3854 = vmatprep.subr.mxu0 0.0
    %3855 = vmatpush1.msra.mxu0 %v3831
    %3856 = vmatprep.subr.mxu0 0.0
    %3857 = vmatpush1.msra.mxu0 %v3832
    %3858 = vmatprep.subr.mxu0 0.0
    %3859 = vmatpush1.msra.mxu0 %v3833
    %3860 = vmatprep.subr.mxu0 0.0
    %3861 = vmatpush1.msra.mxu0 %v3834
    %3862 = vmatprep.subr.mxu0 0.0
    %3863 = vmatpush1.msra.mxu0 %v3835
    %3864 = vmatprep.subr.mxu0 0.0
    %3865 = vmatpush1.msra.mxu0 %v3836
    %3866 = vmatprep.subr.mxu0 0.0
    %3867 = vmatpush1.msra.mxu0 %v3837
    %3868 = vmatprep.subr.mxu0 0.0
    %3869 = vmatpush1.msra.mxu0 %v3838
    %3870 = vmatprep.subr.mxu0 0.0
    %3871 = vmatpush1.msra.mxu0 %v3839
    %3872 = vmatprep.subr.mxu0 0.0
    %3873 = vmatpush1.msra.mxu0 %v3840
    %3874 = vmatprep.subr.mxu0 0.0
    %3875 = vmatpush1.msra.mxu0 %v3841
    %3876 = vmatprep.subr.mxu0 0.0
    %3877 = vmatpush1.msra.mxu0 %v3842
    %3878 = vmatprep.subr.mxu0 0.0
    %3879 = vmatpush1.msra.mxu0 %v3843
    %3880 = vmatprep.subr.mxu0 0.0
    %3881 = vmatpush1.msra.mxu0 0.0
    %3882 = vmatprep.subr.mxu0 0.0
    %3883 = vmatpush1.msra.mxu0 0.0
    %3884 = vmatprep.subr.mxu0 0.0
    %3885 = vmatpush1.msra.mxu0 0.0
    %3886 = vmatprep.subr.mxu0 0.0
    %3887 = vmatpush1.msra.mxu0 0.0
    %3888 = vmatprep.subr.mxu0 0.0
    %3889 = vmatpush1.msra.mxu0 0.0
    %3890 = vmatprep.subr.mxu0 0.0
    %3891 = vmatpush1.msra.mxu0 0.0
    %3892 = vmatprep.subr.mxu0 0.0
    %3893 = vmatpush1.msra.mxu0 0.0
    %3894 = vmatprep.subr.mxu0 0.0
    %3895 = vmatpush1.msra.mxu0 0.0
    %3896 = vmatprep.subr.mxu0 0.0
    %3897 = vmatpush1.msra.mxu0 0.0
    %3898 = vmatprep.subr.mxu0 0.0
    %3899 = vmatpush1.msra.mxu0 0.0
    %3900 = vmatprep.subr.mxu0 0.0
    %3901 = vmatpush1.msra.mxu0 0.0
    %3902 = vmatprep.subr.mxu0 0.0
    %3903 = vmatpush1.msra.mxu0 0.0
    %3904 = vmatprep.subr.mxu0 0.0
    %3905 = vmatpush1.msra.mxu0 0.0
    %3906 = vmatprep.subr.mxu0 0.0
    %3907 = vmatpush1.msra.mxu0 0.0
    %3908 = vmatprep.subr.mxu0 0.0
    %3909 = vmatpush1.msra.mxu0 0.0
    %3910 = vmatprep.subr.mxu0 0.0
    %3911 = vmatpush1.msra.mxu0 0.0
    %3912 = vmatprep.mubr.f32.mxu0 0.0
    %3913 = vmatmul.mubr.f32.gmra.mrb[0].mxu0 %v3826
    %v3914 = vpop.f32.mrb[0].mxu0
    %v3915 = vadd.f32 %v3847, %v3914
    %v3916 = vpop.f32.mrb[0].mxu0
    %3917 = vmatprep.mubr.f32.mxu0 0.0
    %3918 = vmatmul.mubr.f32.gmra.mrb[0].mxu0 %v3827
    %v3919 = vpop.f32.mrb[0].mxu0
    %v3920 = vadd.f32 %v3847, %v3919
    %v3921 = vpop.f32.mrb[0].mxu0
    %3922 = vdwg.mxu0
    %v3923 = vadd.f32 %v3915, %v3735
    %v3924 = vadd.f32 %v3920, %v3736
    %v3925 = vsel %vm83, %v3923, 0.0
    %3926 = vadd.xlane.f32.xlu0 %v3925
    %v3927 = vpop.xlane.xlu0 %3926
    %v3928 = vsel %vm83, %v3924, 0.0
    %3929 = vadd.xlane.f32.xlu0 %v3928
    %v3930 = vpop.xlane.xlu0 %3929
    %v3931 = vmul.f32 %v3927, %v3704
    %v3932 = vmul.f32 %v3930, %v3704
    %v3933 = vsub.f32 %v3923, %v3931
    %v3934 = vsub.f32 %v3924, %v3932
    %v3935 = vmul.f32 %v3933, %v3933
    %v3936 = vmul.f32 %v3934, %v3934
    %v3937 = vsel %vm83, %v3935, 0.0
    %3938 = vadd.xlane.f32.xlu0 %v3937
    %v3939 = vpop.xlane.xlu0 %3938
    %v3940 = vsel %vm83, %v3936, 0.0
    %3941 = vadd.xlane.f32.xlu0 %v3940
    %v3942 = vpop.xlane.xlu0 %3941
    %v3943 = vmul.f32 %v3939, %v3704
    %v3944 = vmul.f32 %v3942, %v3704
    %v3945 = vadd.f32 %v3943, 1e-05
    %v3946 = vadd.f32 %v3944, 1e-05
    %v3947 = vrsqrt.pop %v3945
    %v3948 = vrsqrt.pop %v3946
    %v3949 = vmul.f32 %v3933, %v3947
    %v3950 = vmul.f32 %v3934, %v3948
    %v3951 = vlaneseq
    %v3952 = vshrl.u32 %v3951, 7
    %v3953 = vsub.s32 3, %v3952
    %v3954 = vrot.slane %v79, %v3953
    %v3955 = vmul.f32 %v3949, %v3954
    %v3956 = vmul.f32 %v3950, %v3954
    %v3957 = vlaneseq
    %v3958 = vshrl.u32 %v3957, 7
    %v3959 = vsub.s32 4, %v3958
    %v3960 = vrot.slane %v79, %v3959
    %v3961 = vadd.f32 %v3955, %v3960
    %v3962 = vadd.f32 %v3956, %v3960
    %3963 = vst.msk [vmem:[#allocation2] sm:$0xff] %vm83, %v3961
    %3964 = vst.msk [vmem:[#allocation2 + $0x8] sm:$0xff] %vm83, %v3962
    // Predicated region
    $region30: #{transformer_block.1} parent=1 // pred_check
      _
    $region31: #{transformer_block.1} parent=1 // pred_check_branch
      %3966 = sbr.rel (0) target = $region33
    $region32: #{transformer_block.1} parent=1 // pred_region
      %s3968 = ssub.s32 256, 256
      %3969 = vsyncadd [#allocation3], %s3968
      %s3970 = sshll.u32 [#allocation2], 4
      %s3971 = int_to_ptr.vmem [resolvable:$true] %s3970
      %3976 = dma.vmem_to_hbm [thread:$0]  %s3971, 256, %s7, [#allocation3], 128, 128, 8
    $region33: #{transformer_block.1} parent=1 // pred_fallthru
      _
    // Predicated region
    $region34: #{transformer_block.1} parent=1 // pred_check
      _
    $region35: #{transformer_block.1} parent=1 // pred_check_branch
      %3978 = sbr.rel (0) target = $region37
    $region36: #{transformer_block.1} parent=1 // pred_region
      %3979 = dma.done [#allocation3], 256
    $region37: #{transformer_block.1} parent=1 // pred_fallthru
      _
    %3980 = vsyncpa [#allocation3], 1

</llo_original>
